<compile_context>
chip_gen: v6e
topology: v6e:2x2x1
jax: 0.10.0
libtpu: 0.0.40
codegen_flags: <defaults>
</compile_context>

<pallas_src>
import functools
import math

import jax
import jax.numpy as jnp
from jax import lax
from jax.experimental import pallas as pl
from jax.experimental.pallas import tpu as pltpu


# ---------------------------------------------------------------------------
# helpers
# ---------------------------------------------------------------------------

def _pick_tile(dim, target, align):
    """Largest tile <= target that divides `dim` and is a multiple of `align`
    (or the full dim if it is already small / no aligned divisor exists)."""
    if dim <= target:
        return dim
    t = (target // align) * align
    while t >= align:
        if dim % t == 0:
            return t
        t -= align
    return dim


_SQRT1_2 = 0.7071067811865476


def _erf_approx(x):
    # Abramowitz & Stegun 7.1.26 rational approximation (|err| < 1.5e-7),
    # built only from exp/mul/add/div so it lowers cleanly inside Mosaic.
    # TODO(synk): substitutes torch's exact erf-GELU to allow in-kernel fusion.
    a1, a2, a3, a4, a5 = (0.254829592, -0.284496736, 1.421413741,
                          -1.453152027, 1.061405429)
    p = 0.3275911
    sign = jnp.where(x >= 0.0, 1.0, -1.0)
    ax = jnp.abs(x)
    t = 1.0 / (1.0 + p * ax)
    poly = ((((a5 * t + a4) * t + a3) * t + a2) * t + a1) * t
    return sign * (1.0 - poly * jnp.exp(-ax * ax))


def _gelu_exact(x):
    return 0.5 * x * (1.0 + _erf_approx(x * _SQRT1_2))


def _layernorm(x, g, b, eps):
    mu = jnp.mean(x, axis=-1, keepdims=True)
    xc = x - mu
    var = jnp.mean(xc * xc, axis=-1, keepdims=True)
    return xc * lax.rsqrt(var + eps) * g + b


# ---------------------------------------------------------------------------
# Pallas kernels
# ---------------------------------------------------------------------------

def _ln_matmul_kernel(x_ref, g_ref, b_ref, w_ref, bias_ref, o_ref, xn_ref, *,
                      eps, activation):
    """out = act(LayerNorm(x) @ W + bias); grid (M//tm, N//tn).

    K is untiled so the LN statistics see the full feature row.  The LN result
    is cached in `xn_ref` (VMEM scratch) at j==0 and reused for every N tile,
    so the rsqrt/EUP work is not repeated per column tile."""
    j = pl.program_id(1)

    @pl.when(j == 0)
    def _():
        xn_ref[...] = _layernorm(x_ref[...], g_ref[...], b_ref[...], eps)

    y = jnp.dot(xn_ref[...], w_ref[...],
                preferred_element_type=jnp.float32) + bias_ref[...]
    if activation == "gelu_exact":
        y = _gelu_exact(y)
    elif activation == "gelu_tanh":
        y = jax.nn.gelu(y, approximate=True)
    o_ref[...] = y.astype(o_ref.dtype)


def _matmul_residual_kernel(x_ref, w_ref, bias_ref, res_ref, o_ref, acc_ref):
    """out = x @ W + bias + residual, tiled over (M, N, K) with f32 accumulator."""
    k = pl.program_id(2)

    @pl.when(k == 0)
    def _():
        acc_ref[...] = jnp.zeros_like(acc_ref)

    acc_ref[...] += jnp.dot(x_ref[...], w_ref[...],
                            preferred_element_type=jnp.float32)

    @pl.when(k == pl.num_programs(2) - 1)
    def _():
        o_ref[...] = (acc_ref[...] + bias_ref[...] + res_ref[...]).astype(o_ref.dtype)


def _ln_matmul_gate_kernel(x_ref, g_ref, b_ref, w_ref, bias_ref, res_ref,
                           gate_ref, o_ref, *, eps):
    """Baseline integration: out = res*(1-g) + (LN(baseline) @ W_adapter + b)*g."""
    xn = _layernorm(x_ref[...], g_ref[...], b_ref[...], eps)
    ab = jnp.dot(xn, w_ref[...], preferred_element_type=jnp.float32) + bias_ref[...]
    g = gate_ref[0]                                   # sigmoid(gate), SMEM scalar
    o_ref[...] = (res_ref[...] * (1.0 - g) + ab * g).astype(o_ref.dtype)


def _skip_fuse_kernel(h_ref, e_ref, wh_ref, we_ref, bias_ref, hres_ref, o_ref, *,
                      scale):
    """UNet skip: out = h + scale * (h @ W_h + enc @ W_e + bias)  (no concat)."""
    fuse = (jnp.dot(h_ref[...], wh_ref[...], preferred_element_type=jnp.float32)
            + jnp.dot(e_ref[...], we_ref[...], preferred_element_type=jnp.float32)
            + bias_ref[...])
    o_ref[...] = (hres_ref[...] + scale * fuse).astype(o_ref.dtype)


def _ln_matmul_t_kernel(x_ref, g_ref, b_ref, w_ref, o_ref, xn_ref, *, eps):
    """Tied lm_head: out = LayerNorm(x) @ wte.T, wte kept as [V, D] (no transpose copy).
    LN cached in VMEM scratch and reused across all vocab tiles."""
    j = pl.program_id(1)

    @pl.when(j == 0)
    def _():
        xn_ref[...] = _layernorm(x_ref[...], g_ref[...], b_ref[...], eps)

    o_ref[...] = lax.dot_general(xn_ref[...], w_ref[...], (((1,), (1,)), ((), ())),
                                 preferred_element_type=jnp.float32).astype(o_ref.dtype)


def _flash_attn_kernel(q_ref, k_ref, v_ref, gate_ref, o_ref,
                       m_sc, l_sc, acc_sc, *, scale, tq, tk):
    """Flash attention, all heads batched per invocation, causal mask in-kernel.
    KV blocks fully above the causal diagonal are skipped entirely."""
    qi = pl.program_id(1)
    ki = pl.program_id(2)

    @pl.when(ki == 0)
    def _():
        m_sc[...] = jnp.full(m_sc.shape, -jnp.inf, jnp.float32)
        l_sc[...] = jnp.zeros(l_sc.shape, jnp.float32)
        acc_sc[...] = jnp.zeros(acc_sc.shape, jnp.float32)

    # Skip kv blocks that lie entirely above the diagonal (fully masked):
    # their contribution is exp(-10000) ~ 0 in the reference.
    @pl.when(ki * tk < (qi + 1) * tq)
    def _():
        q = q_ref[0] * scale                          # [H, tq, Dh]  (scale folded into q)
        k = k_ref[0]                                  # [H, tk, Dh]
        v = v_ref[0]                                  # [H, tk, Dh]

        s = jnp.einsum('hqd,hkd->hqk', q, k, preferred_element_type=jnp.float32)

        # causal additive mask (-10000 above the diagonal, matching the reference buffer)
        row = qi * tq + lax.broadcasted_iota(jnp.int32, (1, tq, tk), 1)
        col = ki * tk + lax.broadcasted_iota(jnp.int32, (1, tq, tk), 2)
        s = s + jnp.where(col > row, -10000.0, 0.0)

        m_prev = m_sc[...]
        m_new = jnp.maximum(m_prev, jnp.max(s, axis=-1, keepdims=True))
        alpha = jnp.exp(m_prev - m_new)
        p = jnp.exp(s - m_new)
        l_sc[...] = alpha * l_sc[...] + jnp.sum(p, axis=-1, keepdims=True)
        acc_sc[...] = alpha * acc_sc[...] + jnp.einsum(
            'hqk,hkd->hqd', p, v, preferred_element_type=jnp.float32)
        m_sc[...] = m_new

    @pl.when(ki == pl.num_programs(2) - 1)
    def _():
        inv_l = pl.reciprocal(l_sc[...], approx=True)
        o_ref[0] = (acc_sc[...] * inv_l * gate_ref[...]).astype(o_ref.dtype)


# ---------------------------------------------------------------------------
# kernel wrappers
# ---------------------------------------------------------------------------

_PARAMS_2D = pltpu.CompilerParams(dimension_semantics=("parallel", "parallel"))
# For kernels that cache a per-row-tile value in scratch at j==0, the column
# axis must not be megacore-sharded -> mark it "arbitrary".
_PARAMS_ROWCACHE = pltpu.CompilerParams(
    dimension_semantics=("parallel", "arbitrary"))
_PARAMS_3D = pltpu.CompilerParams(
    dimension_semantics=("parallel", "parallel", "arbitrary"))


def ln_matmul(x, gamma, beta, w, bias, *, eps, activation=None):
    lead, K = x.shape[:-1], x.shape[-1]
    N = w.shape[1]
    x2 = x.reshape(-1, K)
    M = x2.shape[0]
    tm = _pick_tile(M, 128, 8)
    tn = _pick_tile(N, 256, 128)
    out = pl.pallas_call(
        functools.partial(_ln_matmul_kernel, eps=eps, activation=activation),
        grid=(M // tm, N // tn),
        in_specs=[
            pl.BlockSpec((tm, K), lambda i, j: (i, 0)),
            pl.BlockSpec((1, K), lambda i, j: (0, 0)),
            pl.BlockSpec((1, K), lambda i, j: (0, 0)),
            pl.BlockSpec((K, tn), lambda i, j: (0, j)),
            pl.BlockSpec((1, tn), lambda i, j: (0, j)),
        ],
        out_specs=pl.BlockSpec((tm, tn), lambda i, j: (i, j)),
        out_shape=jax.ShapeDtypeStruct((M, N), jnp.float32),
        scratch_shapes=[pltpu.VMEM((tm, K), jnp.float32)],
        compiler_params=_PARAMS_ROWCACHE,
    )(x2, gamma.reshape(1, K), beta.reshape(1, K), w, bias.reshape(1, N))
    return out.reshape(*lead, N)


def matmul_residual(x, w, bias, residual):
    lead, K = x.shape[:-1], x.shape[-1]
    N = w.shape[1]
    x2 = x.reshape(-1, K)
    r2 = residual.reshape(-1, N)
    M = x2.shape[0]
    tm = _pick_tile(M, 128, 8)
    tn = _pick_tile(N, 256, 128)
    tk = _pick_tile(K, 512, 128)
    out = pl.pallas_call(
        _matmul_residual_kernel,
        grid=(M // tm, N // tn, K // tk),
        in_specs=[
            pl.BlockSpec((tm, tk), lambda i, j, k: (i, k)),
            pl.BlockSpec((tk, tn), lambda i, j, k: (k, j)),
            pl.BlockSpec((1, tn), lambda i, j, k: (0, j)),
            pl.BlockSpec((tm, tn), lambda i, j, k: (i, j)),
        ],
        out_specs=pl.BlockSpec((tm, tn), lambda i, j, k: (i, j)),
        out_shape=jax.ShapeDtypeStruct((M, N), jnp.float32),
        scratch_shapes=[pltpu.VMEM((tm, tn), jnp.float32)],
        compiler_params=_PARAMS_3D,
    )(x2, w, bias.reshape(1, N), r2)
    return out.reshape(*lead, N)


def ln_matmul_gate_blend(x, gamma, beta, w, bias, residual, gate_sig, *, eps):
    lead, K = x.shape[:-1], x.shape[-1]
    N = w.shape[1]
    x2 = x.reshape(-1, K)
    r2 = residual.reshape(-1, N)
    M = x2.shape[0]
    tm = _pick_tile(M, 128, 8)
    tn = _pick_tile(N, 256, 128)
    out = pl.pallas_call(
        functools.partial(_ln_matmul_gate_kernel, eps=eps),
        grid=(M // tm, N // tn),
        in_specs=[
            pl.BlockSpec((tm, K), lambda i, j: (i, 0)),
            pl.BlockSpec((1, K), lambda i, j: (0, 0)),
            pl.BlockSpec((1, K), lambda i, j: (0, 0)),
            pl.BlockSpec((K, tn), lambda i, j: (0, j)),
            pl.BlockSpec((1, tn), lambda i, j: (0, j)),
            pl.BlockSpec((tm, tn), lambda i, j: (i, j)),
            pl.BlockSpec(memory_space=pltpu.MemorySpace.SMEM),
        ],
        out_specs=pl.BlockSpec((tm, tn), lambda i, j: (i, j)),
        out_shape=jax.ShapeDtypeStruct((M, N), jnp.float32),
        compiler_params=_PARAMS_2D,
    )(x2, gamma.reshape(1, K), beta.reshape(1, K), w, bias.reshape(1, N),
      r2, gate_sig)
    return out.reshape(*lead, N)


def skip_fuse(h, enc, w_h, w_e, bias, scale):
    B, S, D = h.shape
    h2 = h.reshape(-1, D)
    e2 = enc.reshape(-1, D)
    M = h2.shape[0]
    tm = _pick_tile(M, 128, 8)
    tn = _pick_tile(D, 256, 128)
    out = pl.pallas_call(
        functools.partial(_skip_fuse_kernel, scale=float(scale)),
        grid=(M // tm, D // tn),
        in_specs=[
            pl.BlockSpec((tm, D), lambda i, j: (i, 0)),   # h  (matmul operand)
            pl.BlockSpec((tm, D), lambda i, j: (i, 0)),   # enc
            pl.BlockSpec((D, tn), lambda i, j: (0, j)),
            pl.BlockSpec((D, tn), lambda i, j: (0, j)),
            pl.BlockSpec((1, tn), lambda i, j: (0, j)),
            pl.BlockSpec((tm, tn), lambda i, j: (i, j)),  # h  (residual tile)
        ],
        out_specs=pl.BlockSpec((tm, tn), lambda i, j: (i, j)),
        out_shape=jax.ShapeDtypeStruct((M, D), jnp.float32),
        compiler_params=_PARAMS_2D,
    )(h2, e2, w_h, w_e, bias.reshape(1, D), h2)
    return out.reshape(B, S, D)


def lm_head(x, gamma, beta, wte, *, eps):
    B, S, K = x.shape
    V = wte.shape[0]
    x2 = x.reshape(-1, K)
    M = x2.shape[0]
    tm = _pick_tile(M, 128, 8)
    tn = _pick_tile(V, 512, 128)
    out = pl.pallas_call(
        functools.partial(_ln_matmul_t_kernel, eps=eps),
        grid=(M // tm, V // tn),
        in_specs=[
            pl.BlockSpec((tm, K), lambda i, j: (i, 0)),
            pl.BlockSpec((1, K), lambda i, j: (0, 0)),
            pl.BlockSpec((1, K), lambda i, j: (0, 0)),
            pl.BlockSpec((tn, K), lambda i, j: (j, 0)),
        ],
        out_specs=pl.BlockSpec((tm, tn), lambda i, j: (i, j)),
        out_shape=jax.ShapeDtypeStruct((M, V), jnp.float32),
        scratch_shapes=[pltpu.VMEM((tm, K), jnp.float32)],
        compiler_params=_PARAMS_ROWCACHE,
    )(x2, gamma.reshape(1, K), beta.reshape(1, K), wte)
    return out.reshape(B, S, V)


def gated_flash_attention(q, k, v, head_gate):
    """q, k, v: [B, H, S, Dh]; head_gate: [H] (neutral = 1.0)."""
    B, H, S, Dh = q.shape
    scale = 1.0 / math.sqrt(Dh)
    tq = _pick_tile(S, 128, 8)
    tk = _pick_tile(S, 128, 8)
    gate3 = head_gate.reshape(H, 1, 1)
    return pl.pallas_call(
        functools.partial(_flash_attn_kernel, scale=scale, tq=tq, tk=tk),
        grid=(B, S // tq, S // tk),
        in_specs=[
            pl.BlockSpec((1, H, tq, Dh), lambda b, qi, ki: (b, 0, qi, 0)),
            pl.BlockSpec((1, H, tk, Dh), lambda b, qi, ki: (b, 0, ki, 0)),
            pl.BlockSpec((1, H, tk, Dh), lambda b, qi, ki: (b, 0, ki, 0)),
            pl.BlockSpec((H, 1, 1), lambda b, qi, ki: (0, 0, 0)),
        ],
        out_specs=pl.BlockSpec((1, H, tq, Dh), lambda b, qi, ki: (b, 0, qi, 0)),
        out_shape=jax.ShapeDtypeStruct((B, H, S, Dh), jnp.float32),
        scratch_shapes=[
            pltpu.VMEM((H, tq, 1), jnp.float32),
            pltpu.VMEM((H, tq, 1), jnp.float32),
            pltpu.VMEM((H, tq, Dh), jnp.float32),
        ],
        compiler_params=pltpu.CompilerParams(
            dimension_semantics=("parallel", "parallel", "arbitrary")),
    )(q, k, v, gate3)


# ---------------------------------------------------------------------------
# Model components (thin JAX glue composing the Pallas kernels)
# ---------------------------------------------------------------------------

def attention_sublayer(h, blk, head_gate, num_heads, eps):
    """residual + out_proj(gated_attention(ln1(h)))  -- ln1+QKV and out-proj+residual fused."""
    B, S, D = h.shape
    Dh = D // num_heads
    qkv = ln_matmul(h, blk["ln1_g"], blk["ln1_b"], blk["wqkv"], blk["bqkv"], eps=eps)
    q, k, v = jnp.split(qkv, 3, axis=-1)
    # TODO(synk): head split/merge transposes stay in XLA glue; moving them in-kernel
    # needs lane-aligned head tiling (Dh multiple of 128), not met at these toy sizes.
    def heads(t):
        return t.reshape(B, S, num_heads, Dh).transpose(0, 2, 1, 3)
    ctx = gated_flash_attention(heads(q), heads(k), heads(v), head_gate)
    ctx = ctx.transpose(0, 2, 1, 3).reshape(B, S, D)
    return matmul_residual(ctx, blk["wo"], blk["bo"], h)


def agency_block(h, blk, baseline_states, encoder_states, skip_scale, num_heads,
                 eps=1e-12):
    # layer_norm_eps=1e-12 is the BaselineIntegratedBlock default in the reference.
    h = attention_sublayer(h, blk, blk["head_gate"], num_heads, eps)

    # baseline integration (layers >= midpoint):  h*(1-g) + adapter(ln(baseline))*g
    if "adapter_w" in blk and baseline_states is not None:
        gate_sig = jax.nn.sigmoid(blk["baseline_gate"]).reshape(1)
        h = ln_matmul_gate_blend(baseline_states, blk["lnb_g"], blk["lnb_b"],
                                 blk["adapter_w"], blk["adapter_b"], h, gate_sig,
                                 eps=eps)

    # UNet skip connection (layers >= midpoint):  h += scale * fuse([h, enc])
    if "skip_w_h" in blk and encoder_states is not None:
        h = skip_fuse(h, encoder_states, blk["skip_w_h"], blk["skip_w_e"],
                      blk["skip_b"], skip_scale)

    # FFN:  ln2 + W1 + exact-GELU fused, then W2 + residual fused
    y = ln_matmul(h, blk["ln2_g"], blk["ln2_b"], blk["ffn_w1"], blk["ffn_b1"],
                  eps=eps, activation="gelu_exact")
    h = matmul_residual(y, blk["ffn_w2"], blk["ffn_b2"], h)
    return h


def baseline_block(h, blk, num_heads, ones_gate, eps=1e-5):
    # GPT-2-style pre-LN block (frozen baseline model, tanh-approx GELU).
    h = attention_sublayer(h, blk, ones_gate, num_heads, eps)
    y = ln_matmul(h, blk["ln2_g"], blk["ln2_b"], blk["ffn_w1"], blk["ffn_b1"],
                  eps=eps, activation="gelu_tanh")
    h = matmul_residual(y, blk["ffn_w2"], blk["ffn_b2"], h)
    return h


def unet_forward(params, input_ids, cfg):
    B, S = input_ids.shape
    D, H, L = cfg["d"], cfg["h"], cfg["layers"]
    midpoint = L // 2
    pos = jnp.arange(S)

    # embeddings (gathers stay in XLA glue)
    h = params["wte"][input_ids] + params["wpe"][pos][None, :, :]

    # frozen baseline model pass, collecting per-layer hidden states
    bh = params["b_wte"][input_ids] + params["b_wpe"][pos][None, :, :]
    ones_gate = jnp.ones((H,), jnp.float32)
    baseline_outputs = []
    for i in range(L):
        bh = baseline_block(bh, params["baseline_blocks"][i], H, ones_gate)
        baseline_outputs.append(bh)
    # TODO(synk): baseline ln_f / lm_head logits are only consumed when
    # return_baseline=True in the reference; skipped (return_baseline=False).

    encoder_outputs = {}
    for i in range(L):
        if i < midpoint:
            encoder_outputs[i] = h
        blk = params["blocks"][i]
        if i >= midpoint:
            skip_source = L - i - 1
            skip_scale = 0.1 * (1 + (i - midpoint) / (L - midpoint))
            enc = encoder_outputs.get(skip_source)
        else:
            skip_scale, enc = 0.0, None
        h = agency_block(h, blk, baseline_outputs[i], enc, skip_scale, H)

    # final LayerNorm + tied lm_head fused:  logits = ln_f(h) @ wte.T  (no bias)
    logits = lm_head(h, params["lnf_g"], params["lnf_b"], params["wte"], eps=1e-5)

    # NOTE: the wrapper's generation branch divides the last-position logits by
    # temperature=1.0 and re-concatenates -- a mathematical identity, omitted.
    return logits


# ---------------------------------------------------------------------------
# Deterministic synthetic parameter initialization
# ---------------------------------------------------------------------------

def init_params(key, cfg):
    D, H, L, F = cfg["d"], cfg["h"], cfg["layers"], cfg["ffn"]
    V, P = cfg["vocab"], cfg["max_pos"]
    keys = iter(jax.random.split(key, 512))

    def w(shape, scale=0.02):
        return (scale * jax.random.normal(next(keys), shape)).astype(jnp.float32)

    params = {
        "wte": w((V, D)), "wpe": w((P, D)),
        "b_wte": w((V, D)), "b_wpe": w((P, D)),
        "lnf_g": jnp.ones((D,), jnp.float32),
        "lnf_b": jnp.zeros((D,), jnp.float32),
    }

    midpoint = L // 2
    blocks = []
    for i in range(L):
        blk = {
            "ln1_g": jnp.ones((D,), jnp.float32), "ln1_b": jnp.zeros((D,), jnp.float32),
            "ln2_g": jnp.ones((D,), jnp.float32), "ln2_b": jnp.zeros((D,), jnp.float32),
            "wqkv": w((D, 3 * D)), "bqkv": jnp.zeros((3 * D,), jnp.float32),
            "wo": w((D, D)), "bo": jnp.zeros((D,), jnp.float32),
            "head_gate": jnp.ones((H,), jnp.float32),
            "ffn_w1": w((D, F)), "ffn_b1": jnp.zeros((F,), jnp.float32),
            "ffn_w2": w((F, D)), "ffn_b2": jnp.zeros((D,), jnp.float32),
        }
        if i >= midpoint:  # baseline integration + UNet skip connection
            blk.update({
                "lnb_g": jnp.ones((D,), jnp.float32),
                "lnb_b": jnp.zeros((D,), jnp.float32),
                "adapter_w": w((D, D)), "adapter_b": jnp.zeros((D,), jnp.float32),
                "baseline_gate": jnp.full((1,), 0.3, jnp.float32),  # ones(1)*0.3
                # skip_fuse Linear(2D, D) stored as two [D, D] halves so the
                # kernel sums two matmuls instead of materializing a concat.
                "skip_w_h": w((D, D)),
                "skip_w_e": w((D, D)),
                "skip_b": jnp.zeros((D,), jnp.float32),
            })
        blocks.append(blk)
    params["blocks"] = blocks

    bblocks = []
    for _ in range(L):
        bblocks.append({
            "ln1_g": jnp.ones((D,), jnp.float32), "ln1_b": jnp.zeros((D,), jnp.float32),
            "ln2_g": jnp.ones((D,), jnp.float32), "ln2_b": jnp.zeros((D,), jnp.float32),
            "wqkv": w((D, 3 * D)), "bqkv": jnp.zeros((3 * D,), jnp.float32),
            "wo": w((D, D)), "bo": jnp.zeros((D,), jnp.float32),
            "ffn_w1": w((D, F)), "ffn_b1": jnp.zeros((F,), jnp.float32),
            "ffn_w2": w((F, D)), "ffn_b2": jnp.zeros((D,), jnp.float32),
        })
    params["baseline_blocks"] = bblocks
    return params


# ---------------------------------------------------------------------------

if __name__ == "__main__":
    cfg = dict(d=32, h=4, layers=4, ffn=128, vocab=128, max_pos=16, seq=8, batch=2)
    key = jax.random.PRNGKey(0)
    pkey, dkey = jax.random.split(key)
    params = init_params(pkey, cfg)
    input_ids = jax.random.randint(dkey, (cfg["batch"], cfg["seq"]), 0, cfg["vocab"],
                                   dtype=jnp.int32)

    forward = jax.jit(functools.partial(unet_forward, cfg=cfg))
    logits = forward(params, input_ids)
    logits = jax.block_until_ready(logits)

    assert logits.shape == (cfg["batch"], cfg["seq"], cfg["vocab"]), logits.shape
    assert bool(jnp.all(jnp.isfinite(logits)))
    print("KERNEL_OK")
</pallas_src>

<mosaic_0001>
module attributes {stable_mosaic.version = 11 : i64} {
  func.func @_flash_attn_kernel(%arg0: i32, %arg1: i32, %arg2: i32, %arg3: memref<1x4x8x8xf32, #tpu.memory_space<vmem>>, %arg4: memref<1x4x8x8xf32, #tpu.memory_space<vmem>>, %arg5: memref<1x4x8x8xf32, #tpu.memory_space<vmem>>, %arg6: memref<4x1x1xf32, #tpu.memory_space<vmem>>, %arg7: memref<1x4x8x8xf32, #tpu.memory_space<vmem>>, %arg8: memref<4x8x1xf32, #tpu.memory_space<vmem>>, %arg9: memref<4x8x1xf32, #tpu.memory_space<vmem>>, %arg10: memref<4x8x8xf32, #tpu.memory_space<vmem>>) attributes {dimension_semantics = [#tpu.dimension_semantics<parallel>, #tpu.dimension_semantics<parallel>, #tpu.dimension_semantics<arbitrary>], iteration_bounds = array<i64: 2, 1, 1>, scalar_prefetch = 0 : i64, scratch_operands = 3 : i64, tpu.core_type = #tpu.core_type<tc>, window_params = [{transform_indices = @transform_0, window_bounds = array<i64: 1, 4, 8, 8>}, {transform_indices = @transform_1, window_bounds = array<i64: 1, 4, 8, 8>}, {transform_indices = @transform_2, window_bounds = array<i64: 1, 4, 8, 8>}, {pipeline_mode = #tpu.pipeline_mode<synchronous>, transform_indices = @transform_3, window_bounds = array<i64: 4, 1, 1>}, {transform_indices = @transform_4, window_bounds = array<i64: 1, 4, 8, 8>}]} {
    %c0_i32 = arith.constant 0 : i32
    %0 = arith.cmpi eq, %arg2, %c0_i32 : i32
    %1 = arith.extui %0 : i1 to i32
    %c0_i32_0 = arith.constant 0 : i32
    %2 = arith.cmpi ne, %1, %c0_i32_0 : i32
    scf.if %2 {
      %cst = arith.constant 0xFF800000 : f32
      %12 = vector.broadcast %cst : f32 to vector<4x8x1xf32>
      %c0 = arith.constant 0 : index
      %c0_5 = arith.constant 0 : index
      %c0_6 = arith.constant 0 : index
      %13 = vector.load %arg8[%c0, %c0_5, %c0_6] : memref<4x8x1xf32, #tpu.memory_space<vmem>>, vector<4x8x1xf32>
      tpu.vector_store %arg8[%c0, %c0_5, %c0_6], %12 {strides = array<i32>} : memref<4x8x1xf32, #tpu.memory_space<vmem>>, vector<4x8x1xf32>,
      %cst_7 = arith.constant 0.000000e+00 : f32
      %14 = vector.broadcast %cst_7 : f32 to vector<4x8x1xf32>
      %c0_8 = arith.constant 0 : index
      %c0_9 = arith.constant 0 : index
      %c0_10 = arith.constant 0 : index
      %15 = vector.load %arg9[%c0_8, %c0_9, %c0_10] : memref<4x8x1xf32, #tpu.memory_space<vmem>>, vector<4x8x1xf32>
      tpu.vector_store %arg9[%c0_8, %c0_9, %c0_10], %14 {strides = array<i32>} : memref<4x8x1xf32, #tpu.memory_space<vmem>>, vector<4x8x1xf32>,
      %cst_11 = arith.constant 0.000000e+00 : f32
      %16 = vector.broadcast %cst_11 : f32 to vector<4x8x8xf32>
      %c0_12 = arith.constant 0 : index
      %c0_13 = arith.constant 0 : index
      %c0_14 = arith.constant 0 : index
      %17 = vector.load %arg10[%c0_12, %c0_13, %c0_14] : memref<4x8x8xf32, #tpu.memory_space<vmem>>, vector<4x8x8xf32>
      tpu.vector_store %arg10[%c0_12, %c0_13, %c0_14], %16 {strides = array<i32>} : memref<4x8x8xf32, #tpu.memory_space<vmem>>, vector<4x8x8xf32>,
    } else {
    }
    %c8_i32 = arith.constant 8 : i32
    %3 = arith.muli %arg2, %c8_i32 : i32
    %c1_i32 = arith.constant 1 : i32
    %4 = arith.addi %arg1, %c1_i32 : i32
    %c8_i32_1 = arith.constant 8 : i32
    %5 = arith.muli %4, %c8_i32_1 : i32
    %6 = arith.cmpi slt, %3, %5 : i32
    %7 = arith.extui %6 : i1 to i32
    %c0_i32_2 = arith.constant 0 : i32
    %8 = arith.cmpi ne, %7, %c0_i32_2 : i32
    scf.if %8 {
      %c0 = arith.constant 0 : index
      %c0_5 = arith.constant 0 : index
      %c0_6 = arith.constant 0 : index
      %c0_7 = arith.constant 0 : index
      %12 = vector.load %arg3[%c0, %c0_5, %c0_6, %c0_7] : memref<1x4x8x8xf32, #tpu.memory_space<vmem>>, vector<1x4x8x8xf32>
      %13 = vector.shape_cast %12 : vector<1x4x8x8xf32> to vector<4x8x8xf32>
      %cst = arith.constant 0.353553385 : f32
      %14 = vector.broadcast %cst : f32 to vector<4x8x8xf32>
      %15 = arith.mulf %13, %14 : vector<4x8x8xf32>
      %c0_8 = arith.constant 0 : index
      %c0_9 = arith.constant 0 : index
      %c0_10 = arith.constant 0 : index
      %c0_11 = arith.constant 0 : index
      %16 = vector.load %arg4[%c0_8, %c0_9, %c0_10, %c0_11] : memref<1x4x8x8xf32, #tpu.memory_space<vmem>>, vector<1x4x8x8xf32>
      %17 = vector.shape_cast %16 : vector<1x4x8x8xf32> to vector<4x8x8xf32>
      %c0_12 = arith.constant 0 : index
      %c0_13 = arith.constant 0 : index
      %c0_14 = arith.constant 0 : index
      %c0_15 = arith.constant 0 : index
      %18 = vector.load %arg5[%c0_12, %c0_13, %c0_14, %c0_15] : memref<1x4x8x8xf32, #tpu.memory_space<vmem>>, vector<1x4x8x8xf32>
      %19 = vector.shape_cast %18 : vector<1x4x8x8xf32> to vector<4x8x8xf32>
      "tpu.trace_start"() <{level = 10 : i32, message = "hqd,hkd->hqk"}> : () -> ()
      %cst_16 = arith.constant dense<0.000000e+00> : vector<4x8x8xf32>
      %20 = tpu.matmul %15, %17, %cst_16 {dimension_numbers = #tpu.dot_dimension_numbers<[2], [2], [1], [1], [0, 0, 0, 1, 1, 1], [0], [0]>} : vector<4x8x8xf32>, vector<4x8x8xf32>, vector<4x8x8xf32> -> vector<4x8x8xf32>
      "tpu.trace_stop"() : () -> ()
      %c8_i32_17 = arith.constant 8 : i32
      %21 = arith.muli %arg1, %c8_i32_17 : i32
      %22 = tpu.iota {dimensions = array<i32: 1>} : vector<1x8x8xi32>
      %23 = vector.broadcast %21 : i32 to vector<1x8x8xi32>
      %24 = arith.addi %23, %22 : vector<1x8x8xi32>
      %c8_i32_18 = arith.constant 8 : i32
      %25 = arith.muli %arg2, %c8_i32_18 : i32
      %26 = tpu.iota {dimensions = array<i32: 2>} : vector<1x8x8xi32>
      %27 = vector.broadcast %25 : i32 to vector<1x8x8xi32>
      %28 = arith.addi %27, %26 : vector<1x8x8xi32>
      %29 = arith.cmpi sgt, %28, %24 : vector<1x8x8xi32>
      %cst_19 = arith.constant -1.000000e+04 : f32
      %cst_20 = arith.constant 0.000000e+00 : f32
      %30 = vector.broadcast %cst_19 : f32 to vector<1x8x8xf32>
      %31 = vector.broadcast %cst_20 : f32 to vector<1x8x8xf32>
      %32 = arith.select %29, %30, %31 : vector<1x8x8xi1>, vector<1x8x8xf32>
      %33 = vector.broadcast %32 : vector<1x8x8xf32> to vector<4x8x8xf32>
      %34 = arith.addf %20, %33 : vector<4x8x8xf32>
      %c0_21 = arith.constant 0 : index
      %c0_22 = arith.constant 0 : index
      %c0_23 = arith.constant 0 : index
      %35 = vector.load %arg8[%c0_21, %c0_22, %c0_23] : memref<4x8x1xf32, #tpu.memory_space<vmem>>, vector<4x8x1xf32>
      %cst_24 = arith.constant dense<0xFF800000> : vector<4x8xf32>
      %36 = vector.multi_reduction <maximumf>, %34, %cst_24 [2] : vector<4x8x8xf32> to vector<4x8xf32>
      %37 = vector.shape_cast %36 : vector<4x8xf32> to vector<4x8x1xf32>
      %38 = arith.maximumf %35, %37 : vector<4x8x1xf32>
      %39 = arith.subf %35, %38 : vector<4x8x1xf32>
      %40 = math.exp %39 : vector<4x8x1xf32>
      %41 = vector.broadcast %38 : vector<4x8x1xf32> to vector<4x8x8xf32>
      %42 = arith.subf %34, %41 : vector<4x8x8xf32>
      %43 = math.exp %42 : vector<4x8x8xf32>
      %c0_25 = arith.constant 0 : index
      %c0_26 = arith.constant 0 : index
      %c0_27 = arith.constant 0 : index
      %44 = vector.load %arg9[%c0_25, %c0_26, %c0_27] : memref<4x8x1xf32, #tpu.memory_space<vmem>>, vector<4x8x1xf32>
      %45 = arith.mulf %40, %44 : vector<4x8x1xf32>
      %cst_28 = arith.constant dense<0.000000e+00> : vector<4x8xf32>
      %46 = vector.multi_reduction <add>, %43, %cst_28 [2] : vector<4x8x8xf32> to vector<4x8xf32>
      %47 = vector.shape_cast %46 : vector<4x8xf32> to vector<4x8x1xf32>
      %48 = arith.addf %45, %47 : vector<4x8x1xf32>
      %c0_29 = arith.constant 0 : index
      %c0_30 = arith.constant 0 : index
      %c0_31 = arith.constant 0 : index
      %49 = vector.load %arg9[%c0_29, %c0_30, %c0_31] : memref<4x8x1xf32, #tpu.memory_space<vmem>>, vector<4x8x1xf32>
      tpu.vector_store %arg9[%c0_29, %c0_30, %c0_31], %48 {strides = array<i32>} : memref<4x8x1xf32, #tpu.memory_space<vmem>>, vector<4x8x1xf32>,
      %c0_32 = arith.constant 0 : index
      %c0_33 = arith.constant 0 : index
      %c0_34 = arith.constant 0 : index
      %50 = vector.load %arg10[%c0_32, %c0_33, %c0_34] : memref<4x8x8xf32, #tpu.memory_space<vmem>>, vector<4x8x8xf32>
      %51 = vector.broadcast %40 : vector<4x8x1xf32> to vector<4x8x8xf32>
      %52 = arith.mulf %51, %50 : vector<4x8x8xf32>
      "tpu.trace_start"() <{level = 10 : i32, message = "hqk,hkd->hqd"}> : () -> ()
      %cst_35 = arith.constant dense<0.000000e+00> : vector<4x8x8xf32>
      %53 = tpu.matmul %43, %19, %cst_35 {dimension_numbers = #tpu.dot_dimension_numbers<[2], [1], [1], [2], [0, 0, 0, 1, 1, 2], [0], [0]>} : vector<4x8x8xf32>, vector<4x8x8xf32>, vector<4x8x8xf32> -> vector<4x8x8xf32>
      "tpu.trace_stop"() : () -> ()
      %54 = arith.addf %52, %53 : vector<4x8x8xf32>
      %c0_36 = arith.constant 0 : index
      %c0_37 = arith.constant 0 : index
      %c0_38 = arith.constant 0 : index
      %55 = vector.load %arg10[%c0_36, %c0_37, %c0_38] : memref<4x8x8xf32, #tpu.memory_space<vmem>>, vector<4x8x8xf32>
      tpu.vector_store %arg10[%c0_36, %c0_37, %c0_38], %54 {strides = array<i32>} : memref<4x8x8xf32, #tpu.memory_space<vmem>>, vector<4x8x8xf32>,
      %c0_39 = arith.constant 0 : index
      %c0_40 = arith.constant 0 : index
      %c0_41 = arith.constant 0 : index
      %56 = vector.load %arg8[%c0_39, %c0_40, %c0_41] : memref<4x8x1xf32, #tpu.memory_space<vmem>>, vector<4x8x1xf32>
      tpu.vector_store %arg8[%c0_39, %c0_40, %c0_41], %38 {strides = array<i32>} : memref<4x8x1xf32, #tpu.memory_space<vmem>>, vector<4x8x1xf32>,
    } else {
    }
    %c0_i32_3 = arith.constant 0 : i32
    %9 = arith.cmpi eq, %arg2, %c0_i32_3 : i32
    %10 = arith.extui %9 : i1 to i32
    %c0_i32_4 = arith.constant 0 : i32
    %11 = arith.cmpi ne, %10, %c0_i32_4 : i32
    scf.if %11 {
      %c0 = arith.constant 0 : index
      %c0_5 = arith.constant 0 : index
      %c0_6 = arith.constant 0 : index
      %12 = vector.load %arg9[%c0, %c0_5, %c0_6] : memref<4x8x1xf32, #tpu.memory_space<vmem>>, vector<4x8x1xf32>
      %13 = tpu.reciprocal %12 {approx = true} : vector<4x8x1xf32> -> vector<4x8x1xf32>
      %c0_7 = arith.constant 0 : index
      %c0_8 = arith.constant 0 : index
      %c0_9 = arith.constant 0 : index
      %14 = vector.load %arg10[%c0_7, %c0_8, %c0_9] : memref<4x8x8xf32, #tpu.memory_space<vmem>>, vector<4x8x8xf32>
      %15 = vector.broadcast %13 : vector<4x8x1xf32> to vector<4x8x8xf32>
      %16 = arith.mulf %14, %15 : vector<4x8x8xf32>
      %c0_10 = arith.constant 0 : index
      %c0_11 = arith.constant 0 : index
      %c0_12 = arith.constant 0 : index
      %17 = vector.load %arg6[%c0_10, %c0_11, %c0_12] : memref<4x1x1xf32, #tpu.memory_space<vmem>>, vector<4x1x1xf32>
      %18 = vector.broadcast %17 : vector<4x1x1xf32> to vector<4x8x8xf32>
      %19 = arith.mulf %16, %18 : vector<4x8x8xf32>
      %c0_13 = arith.constant 0 : index
      %c0_14 = arith.constant 0 : index
      %c0_15 = arith.constant 0 : index
      %c0_16 = arith.constant 0 : index
      %20 = vector.load %arg7[%c0_13, %c0_14, %c0_15, %c0_16] : memref<1x4x8x8xf32, #tpu.memory_space<vmem>>, vector<1x4x8x8xf32>
      %21 = vector.shape_cast %20 : vector<1x4x8x8xf32> to vector<4x8x8xf32>
      %22 = vector.shape_cast %19 : vector<4x8x8xf32> to vector<1x4x8x8xf32>
      tpu.vector_store %arg7[%c0_13, %c0_14, %c0_15, %c0_16], %22 {strides = array<i32>} : memref<1x4x8x8xf32, #tpu.memory_space<vmem>>, vector<1x4x8x8xf32>,
    } else {
    }
    return
  }
  func.func @transform_0(%arg0: i32, %arg1: i32, %arg2: i32) -> (i32, i32, i32, i32) {
    %c0_i32 = arith.constant 0 : i32
    %c0_i32_0 = arith.constant 0 : i32
    %c0_i32_1 = arith.constant 0 : i32
    return %arg0, %c0_i32, %arg1, %c0_i32_0 : i32, i32, i32, i32
  }
  func.func @transform_1(%arg0: i32, %arg1: i32, %arg2: i32) -> (i32, i32, i32, i32) {
    %c0_i32 = arith.constant 0 : i32
    %c0_i32_0 = arith.constant 0 : i32
    %c0_i32_1 = arith.constant 0 : i32
    return %arg0, %c0_i32, %arg2, %c0_i32_0 : i32, i32, i32, i32
  }
  func.func @transform_2(%arg0: i32, %arg1: i32, %arg2: i32) -> (i32, i32, i32, i32) {
    %c0_i32 = arith.constant 0 : i32
    %c0_i32_0 = arith.constant 0 : i32
    %c0_i32_1 = arith.constant 0 : i32
    return %arg0, %c0_i32, %arg2, %c0_i32_0 : i32, i32, i32, i32
  }
  func.func @transform_3(%arg0: i32, %arg1: i32, %arg2: i32) -> (i32, i32, i32) {
    %c0_i32 = arith.constant 0 : i32
    %c0_i32_0 = arith.constant 0 : i32
    %c0_i32_1 = arith.constant 0 : i32
    %c0_i32_2 = arith.constant 0 : i32
    return %c0_i32, %c0_i32_0, %c0_i32_1 : i32, i32, i32
  }
  func.func @transform_4(%arg0: i32, %arg1: i32, %arg2: i32) -> (i32, i32, i32, i32) {
    %c0_i32 = arith.constant 0 : i32
    %c0_i32_0 = arith.constant 0 : i32
    %c0_i32_1 = arith.constant 0 : i32
    return %arg0, %c0_i32, %arg1, %c0_i32_0 : i32, i32, i32, i32
  }
}

module attributes {stable_mosaic.version = 11 : i64} {
  func.func @_ln_matmul_kernel(%arg0: i32, %arg1: i32, %arg2: memref<16x32xf32, #tpu.memory_space<vmem>>, %arg3: memref<1x32xf32, #tpu.memory_space<vmem>>, %arg4: memref<1x32xf32, #tpu.memory_space<vmem>>, %arg5: memref<32x96xf32, #tpu.memory_space<vmem>>, %arg6: memref<1x96xf32, #tpu.memory_space<vmem>>, %arg7: memref<16x96xf32, #tpu.memory_space<vmem>>, %arg8: memref<16x32xf32, #tpu.memory_space<vmem>>) attributes {dimension_semantics = [#tpu.dimension_semantics<parallel>, #tpu.dimension_semantics<arbitrary>], iteration_bounds = array<i64: 1, 1>, scalar_prefetch = 0 : i64, scratch_operands = 1 : i64, tpu.core_type = #tpu.core_type<tc>, window_params = [{transform_indices = @transform_0, window_bounds = array<i64: 16, 32>}, {pipeline_mode = #tpu.pipeline_mode<synchronous>, transform_indices = @transform_1, window_bounds = array<i64: 1, 32>}, {pipeline_mode = #tpu.pipeline_mode<synchronous>, transform_indices = @transform_2, window_bounds = array<i64: 1, 32>}, {transform_indices = @transform_3, window_bounds = array<i64: 32, 96>}, {transform_indices = @transform_4, window_bounds = array<i64: 1, 96>}, {transform_indices = @transform_5, window_bounds = array<i64: 16, 96>}]} {
    %c0_i32 = arith.constant 0 : i32
    %0 = arith.cmpi eq, %arg1, %c0_i32 : i32
    %1 = arith.extui %0 : i1 to i32
    %c0_i32_0 = arith.constant 0 : i32
    %2 = arith.cmpi ne, %1, %c0_i32_0 : i32
    scf.if %2 {
      %c0_8 = arith.constant 0 : index
      %c0_9 = arith.constant 0 : index
      %10 = vector.load %arg2[%c0_8, %c0_9] : memref<16x32xf32, #tpu.memory_space<vmem>>, vector<16x32xf32>
      %c0_10 = arith.constant 0 : index
      %c0_11 = arith.constant 0 : index
      %11 = vector.load %arg3[%c0_10, %c0_11] : memref<1x32xf32, #tpu.memory_space<vmem>>, vector<1x32xf32>
      %c0_12 = arith.constant 0 : index
      %c0_13 = arith.constant 0 : index
      %12 = vector.load %arg4[%c0_12, %c0_13] : memref<1x32xf32, #tpu.memory_space<vmem>>, vector<1x32xf32>
      %cst_14 = arith.constant dense<0.000000e+00> : vector<16xf32>
      %13 = vector.multi_reduction <add>, %10, %cst_14 [1] : vector<16x32xf32> to vector<16xf32>
      %14 = vector.shape_cast %13 : vector<16xf32> to vector<16x1xf32>
      %cst_15 = arith.constant 3.200000e+01 : f32
      %15 = vector.broadcast %cst_15 : f32 to vector<16x1xf32>
      %16 = arith.divf %14, %15 : vector<16x1xf32>
      %17 = vector.broadcast %16 : vector<16x1xf32> to vector<16x32xf32>
      %18 = arith.subf %10, %17 : vector<16x32xf32>
      %19 = arith.mulf %18, %18 : vector<16x32xf32>
      %cst_16 = arith.constant dense<0.000000e+00> : vector<16xf32>
      %20 = vector.multi_reduction <add>, %19, %cst_16 [1] : vector<16x32xf32> to vector<16xf32>
      %21 = vector.shape_cast %20 : vector<16xf32> to vector<16x1xf32>
      %cst_17 = arith.constant 3.200000e+01 : f32
      %22 = vector.broadcast %cst_17 : f32 to vector<16x1xf32>
      %23 = arith.divf %21, %22 : vector<16x1xf32>
      %cst_18 = arith.constant 9.99999996E-13 : f32
      %24 = vector.broadcast %cst_18 : f32 to vector<16x1xf32>
      %25 = arith.addf %23, %24 : vector<16x1xf32>
      %26 = math.rsqrt %25 : vector<16x1xf32>
      %27 = vector.broadcast %26 : vector<16x1xf32> to vector<16x32xf32>
      %28 = arith.mulf %18, %27 : vector<16x32xf32>
      %29 = vector.broadcast %11 : vector<1x32xf32> to vector<16x32xf32>
      %30 = arith.mulf %28, %29 : vector<16x32xf32>
      %31 = vector.broadcast %12 : vector<1x32xf32> to vector<16x32xf32>
      %32 = arith.addf %30, %31 : vector<16x32xf32>
      %c0_19 = arith.constant 0 : index
      %c0_20 = arith.constant 0 : index
      %33 = vector.load %arg8[%c0_19, %c0_20] : memref<16x32xf32, #tpu.memory_space<vmem>>, vector<16x32xf32>
      tpu.vector_store %arg8[%c0_19, %c0_20], %32 {strides = array<i32>} : memref<16x32xf32, #tpu.memory_space<vmem>>, vector<16x32xf32>,
    } else {
    }
    %c0 = arith.constant 0 : index
    %c0_1 = arith.constant 0 : index
    %3 = vector.load %arg8[%c0, %c0_1] : memref<16x32xf32, #tpu.memory_space<vmem>>, vector<16x32xf32>
    %c0_2 = arith.constant 0 : index
    %c0_3 = arith.constant 0 : index
    %4 = vector.load %arg5[%c0_2, %c0_3] : memref<32x96xf32, #tpu.memory_space<vmem>>, vector<32x96xf32>
    %cst = arith.constant dense<0.000000e+00> : vector<16x96xf32>
    %5 = tpu.matmul %3, %4, %cst {dimension_numbers = #tpu.dot_dimension_numbers<[1], [0], [0], [1], [0, 0, 1, 1], [], []>} : vector<16x32xf32>, vector<32x96xf32>, vector<16x96xf32> -> vector<16x96xf32>
    %c0_4 = arith.constant 0 : index
    %c0_5 = arith.constant 0 : index
    %6 = vector.load %arg6[%c0_4, %c0_5] : memref<1x96xf32, #tpu.memory_space<vmem>>, vector<1x96xf32>
    %7 = vector.broadcast %6 : vector<1x96xf32> to vector<16x96xf32>
    %8 = arith.addf %5, %7 : vector<16x96xf32>
    %c0_6 = arith.constant 0 : index
    %c0_7 = arith.constant 0 : index
    %9 = vector.load %arg7[%c0_6, %c0_7] : memref<16x96xf32, #tpu.memory_space<vmem>>, vector<16x96xf32>
    tpu.vector_store %arg7[%c0_6, %c0_7], %8 {strides = array<i32>} : memref<16x96xf32, #tpu.memory_space<vmem>>, vector<16x96xf32>,
    return
  }
  func.func @transform_0(%arg0: i32, %arg1: i32) -> (i32, i32) {
    %c0_i32 = arith.constant 0 : i32
    %c0_i32_0 = arith.constant 0 : i32
    return %arg0, %c0_i32 : i32, i32
  }
  func.func @transform_1(%arg0: i32, %arg1: i32) -> (i32, i32) {
    %c0_i32 = arith.constant 0 : i32
    %c0_i32_0 = arith.constant 0 : i32
    %c0_i32_1 = arith.constant 0 : i32
    return %c0_i32, %c0_i32_0 : i32, i32
  }
  func.func @transform_2(%arg0: i32, %arg1: i32) -> (i32, i32) {
    %c0_i32 = arith.constant 0 : i32
    %c0_i32_0 = arith.constant 0 : i32
    %c0_i32_1 = arith.constant 0 : i32
    return %c0_i32, %c0_i32_0 : i32, i32
  }
  func.func @transform_3(%arg0: i32, %arg1: i32) -> (i32, i32) {
    %c0_i32 = arith.constant 0 : i32
    %c0_i32_0 = arith.constant 0 : i32
    return %c0_i32, %arg1 : i32, i32
  }
  func.func @transform_4(%arg0: i32, %arg1: i32) -> (i32, i32) {
    %c0_i32 = arith.constant 0 : i32
    %c0_i32_0 = arith.constant 0 : i32
    return %c0_i32, %arg1 : i32, i32
  }
  func.func @transform_5(%arg0: i32, %arg1: i32) -> (i32, i32) {
    %c0_i32 = arith.constant 0 : i32
    return %arg0, %arg1 : i32, i32
  }
}

module attributes {stable_mosaic.version = 11 : i64} {
  func.func @_matmul_residual_kernel(%arg0: i32, %arg1: i32, %arg2: i32, %arg3: memref<16x32xf32, #tpu.memory_space<vmem>>, %arg4: memref<32x32xf32, #tpu.memory_space<vmem>>, %arg5: memref<1x32xf32, #tpu.memory_space<vmem>>, %arg6: memref<16x32xf32, #tpu.memory_space<vmem>>, %arg7: memref<16x32xf32, #tpu.memory_space<vmem>>, %arg8: memref<16x32xf32, #tpu.memory_space<vmem>>) attributes {dimension_semantics = [#tpu.dimension_semantics<parallel>, #tpu.dimension_semantics<parallel>, #tpu.dimension_semantics<arbitrary>], iteration_bounds = array<i64: 1, 1, 1>, scalar_prefetch = 0 : i64, scratch_operands = 1 : i64, tpu.core_type = #tpu.core_type<tc>, window_params = [{transform_indices = @transform_0, window_bounds = array<i64: 16, 32>}, {transform_indices = @transform_1, window_bounds = array<i64: 32, 32>}, {transform_indices = @transform_2, window_bounds = array<i64: 1, 32>}, {transform_indices = @transform_3, window_bounds = array<i64: 16, 32>}, {transform_indices = @transform_4, window_bounds = array<i64: 16, 32>}]} {
    %c0_i32 = arith.constant 0 : i32
    %0 = arith.cmpi eq, %arg2, %c0_i32 : i32
    %1 = arith.extui %0 : i1 to i32
    %c0_i32_0 = arith.constant 0 : i32
    %2 = arith.cmpi ne, %1, %c0_i32_0 : i32
    scf.if %2 {
      %cst_10 = arith.constant 0.000000e+00 : f32
      %12 = vector.broadcast %cst_10 : f32 to vector<16x32xf32>
      %c0_11 = arith.constant 0 : index
      %c0_12 = arith.constant 0 : index
      %13 = vector.load %arg8[%c0_11, %c0_12] : memref<16x32xf32, #tpu.memory_space<vmem>>, vector<16x32xf32>
      tpu.vector_store %arg8[%c0_11, %c0_12], %12 {strides = array<i32>} : memref<16x32xf32, #tpu.memory_space<vmem>>, vector<16x32xf32>,
    } else {
    }
    %c0 = arith.constant 0 : index
    %c0_1 = arith.constant 0 : index
    %3 = vector.load %arg8[%c0, %c0_1] : memref<16x32xf32, #tpu.memory_space<vmem>>, vector<16x32xf32>
    %c0_2 = arith.constant 0 : index
    %c0_3 = arith.constant 0 : index
    %4 = vector.load %arg3[%c0_2, %c0_3] : memref<16x32xf32, #tpu.memory_space<vmem>>, vector<16x32xf32>
    %c0_4 = arith.constant 0 : index
    %c0_5 = arith.constant 0 : index
    %5 = vector.load %arg4[%c0_4, %c0_5] : memref<32x32xf32, #tpu.memory_space<vmem>>, vector<32x32xf32>
    %cst = arith.constant dense<0.000000e+00> : vector<16x32xf32>
    %6 = tpu.matmul %4, %5, %cst {dimension_numbers = #tpu.dot_dimension_numbers<[1], [0], [0], [1], [0, 0, 1, 1], [], []>} : vector<16x32xf32>, vector<32x32xf32>, vector<16x32xf32> -> vector<16x32xf32>
    %7 = arith.addf %3, %6 : vector<16x32xf32>
    %c0_6 = arith.constant 0 : index
    %c0_7 = arith.constant 0 : index
    %8 = vector.load %arg8[%c0_6, %c0_7] : memref<16x32xf32, #tpu.memory_space<vmem>>, vector<16x32xf32>
    tpu.vector_store %arg8[%c0_6, %c0_7], %7 {strides = array<i32>} : memref<16x32xf32, #tpu.memory_space<vmem>>, vector<16x32xf32>,
    %c0_i32_8 = arith.constant 0 : i32
    %9 = arith.cmpi eq, %arg2, %c0_i32_8 : i32
    %10 = arith.extui %9 : i1 to i32
    %c0_i32_9 = arith.constant 0 : i32
    %11 = arith.cmpi ne, %10, %c0_i32_9 : i32
    scf.if %11 {
      %c0_10 = arith.constant 0 : index
      %c0_11 = arith.constant 0 : index
      %12 = vector.load %arg8[%c0_10, %c0_11] : memref<16x32xf32, #tpu.memory_space<vmem>>, vector<16x32xf32>
      %c0_12 = arith.constant 0 : index
      %c0_13 = arith.constant 0 : index
      %13 = vector.load %arg5[%c0_12, %c0_13] : memref<1x32xf32, #tpu.memory_space<vmem>>, vector<1x32xf32>
      %14 = vector.broadcast %13 : vector<1x32xf32> to vector<16x32xf32>
      %15 = arith.addf %12, %14 : vector<16x32xf32>
      %c0_14 = arith.constant 0 : index
      %c0_15 = arith.constant 0 : index
      %16 = vector.load %arg6[%c0_14, %c0_15] : memref<16x32xf32, #tpu.memory_space<vmem>>, vector<16x32xf32>
      %17 = arith.addf %15, %16 : vector<16x32xf32>
      %c0_16 = arith.constant 0 : index
      %c0_17 = arith.constant 0 : index
      %18 = vector.load %arg7[%c0_16, %c0_17] : memref<16x32xf32, #tpu.memory_space<vmem>>, vector<16x32xf32>
      tpu.vector_store %arg7[%c0_16, %c0_17], %17 {strides = array<i32>} : memref<16x32xf32, #tpu.memory_space<vmem>>, vector<16x32xf32>,
    } else {
    }
    return
  }
  func.func @transform_0(%arg0: i32, %arg1: i32, %arg2: i32) -> (i32, i32) {
    %c0_i32 = arith.constant 0 : i32
    return %arg0, %arg2 : i32, i32
  }
  func.func @transform_1(%arg0: i32, %arg1: i32, %arg2: i32) -> (i32, i32) {
    %c0_i32 = arith.constant 0 : i32
    return %arg2, %arg1 : i32, i32
  }
  func.func @transform_2(%arg0: i32, %arg1: i32, %arg2: i32) -> (i32, i32) {
    %c0_i32 = arith.constant 0 : i32
    %c0_i32_0 = arith.constant 0 : i32
    return %c0_i32, %arg1 : i32, i32
  }
  func.func @transform_3(%arg0: i32, %arg1: i32, %arg2: i32) -> (i32, i32) {
    %c0_i32 = arith.constant 0 : i32
    return %arg0, %arg1 : i32, i32
  }
  func.func @transform_4(%arg0: i32, %arg1: i32, %arg2: i32) -> (i32, i32) {
    %c0_i32 = arith.constant 0 : i32
    return %arg0, %arg1 : i32, i32
  }
}

module attributes {stable_mosaic.version = 11 : i64} {
  func.func @_ln_matmul_kernel(%arg0: i32, %arg1: i32, %arg2: memref<16x32xf32, #tpu.memory_space<vmem>>, %arg3: memref<1x32xf32, #tpu.memory_space<vmem>>, %arg4: memref<1x32xf32, #tpu.memory_space<vmem>>, %arg5: memref<32x128xf32, #tpu.memory_space<vmem>>, %arg6: memref<1x128xf32, #tpu.memory_space<vmem>>, %arg7: memref<16x128xf32, #tpu.memory_space<vmem>>, %arg8: memref<16x32xf32, #tpu.memory_space<vmem>>) attributes {dimension_semantics = [#tpu.dimension_semantics<parallel>, #tpu.dimension_semantics<arbitrary>], iteration_bounds = array<i64: 1, 1>, scalar_prefetch = 0 : i64, scratch_operands = 1 : i64, tpu.core_type = #tpu.core_type<tc>, window_params = [{transform_indices = @transform_0, window_bounds = array<i64: 16, 32>}, {pipeline_mode = #tpu.pipeline_mode<synchronous>, transform_indices = @transform_1, window_bounds = array<i64: 1, 32>}, {pipeline_mode = #tpu.pipeline_mode<synchronous>, transform_indices = @transform_2, window_bounds = array<i64: 1, 32>}, {transform_indices = @transform_3, window_bounds = array<i64: 32, 128>}, {transform_indices = @transform_4, window_bounds = array<i64: 1, 128>}, {transform_indices = @transform_5, window_bounds = array<i64: 16, 128>}]} {
    %c0_i32 = arith.constant 0 : i32
    %0 = arith.cmpi eq, %arg1, %c0_i32 : i32
    %1 = arith.extui %0 : i1 to i32
    %c0_i32_0 = arith.constant 0 : i32
    %2 = arith.cmpi ne, %1, %c0_i32_0 : i32
    scf.if %2 {
      %c0_24 = arith.constant 0 : index
      %c0_25 = arith.constant 0 : index
      %51 = vector.load %arg2[%c0_24, %c0_25] : memref<16x32xf32, #tpu.memory_space<vmem>>, vector<16x32xf32>
      %c0_26 = arith.constant 0 : index
      %c0_27 = arith.constant 0 : index
      %52 = vector.load %arg3[%c0_26, %c0_27] : memref<1x32xf32, #tpu.memory_space<vmem>>, vector<1x32xf32>
      %c0_28 = arith.constant 0 : index
      %c0_29 = arith.constant 0 : index
      %53 = vector.load %arg4[%c0_28, %c0_29] : memref<1x32xf32, #tpu.memory_space<vmem>>, vector<1x32xf32>
      %cst_30 = arith.constant dense<0.000000e+00> : vector<16xf32>
      %54 = vector.multi_reduction <add>, %51, %cst_30 [1] : vector<16x32xf32> to vector<16xf32>
      %55 = vector.shape_cast %54 : vector<16xf32> to vector<16x1xf32>
      %cst_31 = arith.constant 3.200000e+01 : f32
      %56 = vector.broadcast %cst_31 : f32 to vector<16x1xf32>
      %57 = arith.divf %55, %56 : vector<16x1xf32>
      %58 = vector.broadcast %57 : vector<16x1xf32> to vector<16x32xf32>
      %59 = arith.subf %51, %58 : vector<16x32xf32>
      %60 = arith.mulf %59, %59 : vector<16x32xf32>
      %cst_32 = arith.constant dense<0.000000e+00> : vector<16xf32>
      %61 = vector.multi_reduction <add>, %60, %cst_32 [1] : vector<16x32xf32> to vector<16xf32>
      %62 = vector.shape_cast %61 : vector<16xf32> to vector<16x1xf32>
      %cst_33 = arith.constant 3.200000e+01 : f32
      %63 = vector.broadcast %cst_33 : f32 to vector<16x1xf32>
      %64 = arith.divf %62, %63 : vector<16x1xf32>
      %cst_34 = arith.constant 9.99999996E-13 : f32
      %65 = vector.broadcast %cst_34 : f32 to vector<16x1xf32>
      %66 = arith.addf %64, %65 : vector<16x1xf32>
      %67 = math.rsqrt %66 : vector<16x1xf32>
      %68 = vector.broadcast %67 : vector<16x1xf32> to vector<16x32xf32>
      %69 = arith.mulf %59, %68 : vector<16x32xf32>
      %70 = vector.broadcast %52 : vector<1x32xf32> to vector<16x32xf32>
      %71 = arith.mulf %69, %70 : vector<16x32xf32>
      %72 = vector.broadcast %53 : vector<1x32xf32> to vector<16x32xf32>
      %73 = arith.addf %71, %72 : vector<16x32xf32>
      %c0_35 = arith.constant 0 : index
      %c0_36 = arith.constant 0 : index
      %74 = vector.load %arg8[%c0_35, %c0_36] : memref<16x32xf32, #tpu.memory_space<vmem>>, vector<16x32xf32>
      tpu.vector_store %arg8[%c0_35, %c0_36], %73 {strides = array<i32>} : memref<16x32xf32, #tpu.memory_space<vmem>>, vector<16x32xf32>,
    } else {
    }
    %c0 = arith.constant 0 : index
    %c0_1 = arith.constant 0 : index
    %3 = vector.load %arg8[%c0, %c0_1] : memref<16x32xf32, #tpu.memory_space<vmem>>, vector<16x32xf32>
    %c0_2 = arith.constant 0 : index
    %c0_3 = arith.constant 0 : index
    %4 = vector.load %arg5[%c0_2, %c0_3] : memref<32x128xf32, #tpu.memory_space<vmem>>, vector<32x128xf32>
    %cst = arith.constant dense<0.000000e+00> : vector<16x128xf32>
    %5 = tpu.matmul %3, %4, %cst {dimension_numbers = #tpu.dot_dimension_numbers<[1], [0], [0], [1], [0, 0, 1, 1], [], []>} : vector<16x32xf32>, vector<32x128xf32>, vector<16x128xf32> -> vector<16x128xf32>
    %c0_4 = arith.constant 0 : index
    %c0_5 = arith.constant 0 : index
    %6 = vector.load %arg6[%c0_4, %c0_5] : memref<1x128xf32, #tpu.memory_space<vmem>>, vector<1x128xf32>
    %7 = vector.broadcast %6 : vector<1x128xf32> to vector<16x128xf32>
    %8 = arith.addf %5, %7 : vector<16x128xf32>
    %cst_6 = arith.constant 5.000000e-01 : f32
    %9 = vector.broadcast %cst_6 : f32 to vector<16x128xf32>
    %10 = arith.mulf %9, %8 : vector<16x128xf32>
    %cst_7 = arith.constant 0.707106769 : f32
    %11 = vector.broadcast %cst_7 : f32 to vector<16x128xf32>
    %12 = arith.mulf %8, %11 : vector<16x128xf32>
    %cst_8 = arith.constant 0.000000e+00 : f32
    %13 = vector.broadcast %cst_8 : f32 to vector<16x128xf32>
    %14 = arith.cmpf oge, %12, %13 : vector<16x128xf32>
    %cst_9 = arith.constant 1.000000e+00 : f32
    %cst_10 = arith.constant -1.000000e+00 : f32
    %15 = vector.broadcast %cst_9 : f32 to vector<16x128xf32>
    %16 = vector.broadcast %cst_10 : f32 to vector<16x128xf32>
    %17 = arith.select %14, %15, %16 : vector<16x128xi1>, vector<16x128xf32>
    %18 = math.absf %12 : vector<16x128xf32>
    %cst_11 = arith.constant 0.327591091 : f32
    %19 = vector.broadcast %cst_11 : f32 to vector<16x128xf32>
    %20 = arith.mulf %19, %18 : vector<16x128xf32>
    %cst_12 = arith.constant 1.000000e+00 : f32
    %21 = vector.broadcast %cst_12 : f32 to vector<16x128xf32>
    %22 = arith.addf %21, %20 : vector<16x128xf32>
    %cst_13 = arith.constant 1.000000e+00 : f32
    %23 = vector.broadcast %cst_13 : f32 to vector<16x128xf32>
    %24 = arith.divf %23, %22 : vector<16x128xf32>
    %cst_14 = arith.constant 1.06140542 : f32
    %25 = vector.broadcast %cst_14 : f32 to vector<16x128xf32>
    %26 = arith.mulf %25, %24 : vector<16x128xf32>
    %cst_15 = arith.constant -1.45315206 : f32
    %27 = vector.broadcast %cst_15 : f32 to vector<16x128xf32>
    %28 = arith.addf %26, %27 : vector<16x128xf32>
    %29 = arith.mulf %28, %24 : vector<16x128xf32>
    %cst_16 = arith.constant 1.42141378 : f32
    %30 = vector.broadcast %cst_16 : f32 to vector<16x128xf32>
    %31 = arith.addf %29, %30 : vector<16x128xf32>
    %32 = arith.mulf %31, %24 : vector<16x128xf32>
    %cst_17 = arith.constant -0.284496725 : f32
    %33 = vector.broadcast %cst_17 : f32 to vector<16x128xf32>
    %34 = arith.addf %32, %33 : vector<16x128xf32>
    %35 = arith.mulf %34, %24 : vector<16x128xf32>
    %cst_18 = arith.constant 0.254829586 : f32
    %36 = vector.broadcast %cst_18 : f32 to vector<16x128xf32>
    %37 = arith.addf %35, %36 : vector<16x128xf32>
    %38 = arith.mulf %37, %24 : vector<16x128xf32>
    %cst_19 = arith.constant 0.000000e+00 : f32
    %39 = vector.broadcast %cst_19 : f32 to vector<16x128xf32>
    %40 = arith.subf %39, %18 : vector<16x128xf32>
    %41 = arith.mulf %40, %18 : vector<16x128xf32>
    %42 = math.exp %41 : vector<16x128xf32>
    %43 = arith.mulf %38, %42 : vector<16x128xf32>
    %cst_20 = arith.constant 1.000000e+00 : f32
    %44 = vector.broadcast %cst_20 : f32 to vector<16x128xf32>
    %45 = arith.subf %44, %43 : vector<16x128xf32>
    %46 = arith.mulf %17, %45 : vector<16x128xf32>
    %cst_21 = arith.constant 1.000000e+00 : f32
    %47 = vector.broadcast %cst_21 : f32 to vector<16x128xf32>
    %48 = arith.addf %47, %46 : vector<16x128xf32>
    %49 = arith.mulf %10, %48 : vector<16x128xf32>
    %c0_22 = arith.constant 0 : index
    %c0_23 = arith.constant 0 : index
    %50 = vector.load %arg7[%c0_22, %c0_23] : memref<16x128xf32, #tpu.memory_space<vmem>>, vector<16x128xf32>
    tpu.vector_store %arg7[%c0_22, %c0_23], %49 {strides = array<i32>} : memref<16x128xf32, #tpu.memory_space<vmem>>, vector<16x128xf32>,
    return
  }
  func.func @transform_0(%arg0: i32, %arg1: i32) -> (i32, i32) {
    %c0_i32 = arith.constant 0 : i32
    %c0_i32_0 = arith.constant 0 : i32
    return %arg0, %c0_i32 : i32, i32
  }
  func.func @transform_1(%arg0: i32, %arg1: i32) -> (i32, i32) {
    %c0_i32 = arith.constant 0 : i32
    %c0_i32_0 = arith.constant 0 : i32
    %c0_i32_1 = arith.constant 0 : i32
    return %c0_i32, %c0_i32_0 : i32, i32
  }
  func.func @transform_2(%arg0: i32, %arg1: i32) -> (i32, i32) {
    %c0_i32 = arith.constant 0 : i32
    %c0_i32_0 = arith.constant 0 : i32
    %c0_i32_1 = arith.constant 0 : i32
    return %c0_i32, %c0_i32_0 : i32, i32
  }
  func.func @transform_3(%arg0: i32, %arg1: i32) -> (i32, i32) {
    %c0_i32 = arith.constant 0 : i32
    %c0_i32_0 = arith.constant 0 : i32
    return %c0_i32, %arg1 : i32, i32
  }
  func.func @transform_4(%arg0: i32, %arg1: i32) -> (i32, i32) {
    %c0_i32 = arith.constant 0 : i32
    %c0_i32_0 = arith.constant 0 : i32
    return %c0_i32, %arg1 : i32, i32
  }
  func.func @transform_5(%arg0: i32, %arg1: i32) -> (i32, i32) {
    %c0_i32 = arith.constant 0 : i32
    return %arg0, %arg1 : i32, i32
  }
}

module attributes {stable_mosaic.version = 11 : i64} {
  func.func @_ln_matmul_kernel(%arg0: i32, %arg1: i32, %arg2: memref<16x32xf32, #tpu.memory_space<vmem>>, %arg3: memref<1x32xf32, #tpu.memory_space<vmem>>, %arg4: memref<1x32xf32, #tpu.memory_space<vmem>>, %arg5: memref<32x128xf32, #tpu.memory_space<vmem>>, %arg6: memref<1x128xf32, #tpu.memory_space<vmem>>, %arg7: memref<16x128xf32, #tpu.memory_space<vmem>>, %arg8: memref<16x32xf32, #tpu.memory_space<vmem>>) attributes {dimension_semantics = [#tpu.dimension_semantics<parallel>, #tpu.dimension_semantics<arbitrary>], iteration_bounds = array<i64: 1, 1>, scalar_prefetch = 0 : i64, scratch_operands = 1 : i64, tpu.core_type = #tpu.core_type<tc>, window_params = [{transform_indices = @transform_0, window_bounds = array<i64: 16, 32>}, {pipeline_mode = #tpu.pipeline_mode<synchronous>, transform_indices = @transform_1, window_bounds = array<i64: 1, 32>}, {pipeline_mode = #tpu.pipeline_mode<synchronous>, transform_indices = @transform_2, window_bounds = array<i64: 1, 32>}, {transform_indices = @transform_3, window_bounds = array<i64: 32, 128>}, {transform_indices = @transform_4, window_bounds = array<i64: 1, 128>}, {transform_indices = @transform_5, window_bounds = array<i64: 16, 128>}]} {
    %c0_i32 = arith.constant 0 : i32
    %0 = arith.cmpi eq, %arg1, %c0_i32 : i32
    %1 = arith.extui %0 : i1 to i32
    %c0_i32_0 = arith.constant 0 : i32
    %2 = arith.cmpi ne, %1, %c0_i32_0 : i32
    scf.if %2 {
      %c0_12 = arith.constant 0 : index
      %c0_13 = arith.constant 0 : index
      %23 = vector.load %arg2[%c0_12, %c0_13] : memref<16x32xf32, #tpu.memory_space<vmem>>, vector<16x32xf32>
      %c0_14 = arith.constant 0 : index
      %c0_15 = arith.constant 0 : index
      %24 = vector.load %arg3[%c0_14, %c0_15] : memref<1x32xf32, #tpu.memory_space<vmem>>, vector<1x32xf32>
      %c0_16 = arith.constant 0 : index
      %c0_17 = arith.constant 0 : index
      %25 = vector.load %arg4[%c0_16, %c0_17] : memref<1x32xf32, #tpu.memory_space<vmem>>, vector<1x32xf32>
      %cst_18 = arith.constant dense<0.000000e+00> : vector<16xf32>
      %26 = vector.multi_reduction <add>, %23, %cst_18 [1] : vector<16x32xf32> to vector<16xf32>
      %27 = vector.shape_cast %26 : vector<16xf32> to vector<16x1xf32>
      %cst_19 = arith.constant 3.200000e+01 : f32
      %28 = vector.broadcast %cst_19 : f32 to vector<16x1xf32>
      %29 = arith.divf %27, %28 : vector<16x1xf32>
      %30 = vector.broadcast %29 : vector<16x1xf32> to vector<16x32xf32>
      %31 = arith.subf %23, %30 : vector<16x32xf32>
      %32 = arith.mulf %31, %31 : vector<16x32xf32>
      %cst_20 = arith.constant dense<0.000000e+00> : vector<16xf32>
      %33 = vector.multi_reduction <add>, %32, %cst_20 [1] : vector<16x32xf32> to vector<16xf32>
      %34 = vector.shape_cast %33 : vector<16xf32> to vector<16x1xf32>
      %cst_21 = arith.constant 3.200000e+01 : f32
      %35 = vector.broadcast %cst_21 : f32 to vector<16x1xf32>
      %36 = arith.divf %34, %35 : vector<16x1xf32>
      %cst_22 = arith.constant 9.99999974E-6 : f32
      %37 = vector.broadcast %cst_22 : f32 to vector<16x1xf32>
      %38 = arith.addf %36, %37 : vector<16x1xf32>
      %39 = math.rsqrt %38 : vector<16x1xf32>
      %40 = vector.broadcast %39 : vector<16x1xf32> to vector<16x32xf32>
      %41 = arith.mulf %31, %40 : vector<16x32xf32>
      %42 = vector.broadcast %24 : vector<1x32xf32> to vector<16x32xf32>
      %43 = arith.mulf %41, %42 : vector<16x32xf32>
      %44 = vector.broadcast %25 : vector<1x32xf32> to vector<16x32xf32>
      %45 = arith.addf %43, %44 : vector<16x32xf32>
      %c0_23 = arith.constant 0 : index
      %c0_24 = arith.constant 0 : index
      %46 = vector.load %arg8[%c0_23, %c0_24] : memref<16x32xf32, #tpu.memory_space<vmem>>, vector<16x32xf32>
      tpu.vector_store %arg8[%c0_23, %c0_24], %45 {strides = array<i32>} : memref<16x32xf32, #tpu.memory_space<vmem>>, vector<16x32xf32>,
    } else {
    }
    %c0 = arith.constant 0 : index
    %c0_1 = arith.constant 0 : index
    %3 = vector.load %arg8[%c0, %c0_1] : memref<16x32xf32, #tpu.memory_space<vmem>>, vector<16x32xf32>
    %c0_2 = arith.constant 0 : index
    %c0_3 = arith.constant 0 : index
    %4 = vector.load %arg5[%c0_2, %c0_3] : memref<32x128xf32, #tpu.memory_space<vmem>>, vector<32x128xf32>
    %cst = arith.constant dense<0.000000e+00> : vector<16x128xf32>
    %5 = tpu.matmul %3, %4, %cst {dimension_numbers = #tpu.dot_dimension_numbers<[1], [0], [0], [1], [0, 0, 1, 1], [], []>} : vector<16x32xf32>, vector<32x128xf32>, vector<16x128xf32> -> vector<16x128xf32>
    %c0_4 = arith.constant 0 : index
    %c0_5 = arith.constant 0 : index
    %6 = vector.load %arg6[%c0_4, %c0_5] : memref<1x128xf32, #tpu.memory_space<vmem>>, vector<1x128xf32>
    %7 = vector.broadcast %6 : vector<1x128xf32> to vector<16x128xf32>
    %8 = arith.addf %5, %7 : vector<16x128xf32>
    %9 = arith.mulf %8, %8 : vector<16x128xf32>
    %10 = arith.mulf %8, %9 : vector<16x128xf32>
    %cst_6 = arith.constant 4.471500e-02 : f32
    %11 = vector.broadcast %cst_6 : f32 to vector<16x128xf32>
    %12 = arith.mulf %11, %10 : vector<16x128xf32>
    %13 = arith.addf %8, %12 : vector<16x128xf32>
    %cst_7 = arith.constant 0.797884583 : f32
    %14 = vector.broadcast %cst_7 : f32 to vector<16x128xf32>
    %15 = arith.mulf %14, %13 : vector<16x128xf32>
    %16 = math.tanh %15 : vector<16x128xf32>
    %cst_8 = arith.constant 1.000000e+00 : f32
    %17 = vector.broadcast %cst_8 : f32 to vector<16x128xf32>
    %18 = arith.addf %17, %16 : vector<16x128xf32>
    %cst_9 = arith.constant 5.000000e-01 : f32
    %19 = vector.broadcast %cst_9 : f32 to vector<16x128xf32>
    %20 = arith.mulf %19, %18 : vector<16x128xf32>
    %21 = arith.mulf %8, %20 : vector<16x128xf32>
    %c0_10 = arith.constant 0 : index
    %c0_11 = arith.constant 0 : index
    %22 = vector.load %arg7[%c0_10, %c0_11] : memref<16x128xf32, #tpu.memory_space<vmem>>, vector<16x128xf32>
    tpu.vector_store %arg7[%c0_10, %c0_11], %21 {strides = array<i32>} : memref<16x128xf32, #tpu.memory_space<vmem>>, vector<16x128xf32>,
    return
  }
  func.func @transform_0(%arg0: i32, %arg1: i32) -> (i32, i32) {
    %c0_i32 = arith.constant 0 : i32
    %c0_i32_0 = arith.constant 0 : i32
    return %arg0, %c0_i32 : i32, i32
  }
  func.func @transform_1(%arg0: i32, %arg1: i32) -> (i32, i32) {
    %c0_i32 = arith.constant 0 : i32
    %c0_i32_0 = arith.constant 0 : i32
    %c0_i32_1 = arith.constant 0 : i32
    return %c0_i32, %c0_i32_0 : i32, i32
  }
  func.func @transform_2(%arg0: i32, %arg1: i32) -> (i32, i32) {
    %c0_i32 = arith.constant 0 : i32
    %c0_i32_0 = arith.constant 0 : i32
    %c0_i32_1 = arith.constant 0 : i32
    return %c0_i32, %c0_i32_0 : i32, i32
  }
  func.func @transform_3(%arg0: i32, %arg1: i32) -> (i32, i32) {
    %c0_i32 = arith.constant 0 : i32
    %c0_i32_0 = arith.constant 0 : i32
    return %c0_i32, %arg1 : i32, i32
  }
  func.func @transform_4(%arg0: i32, %arg1: i32) -> (i32, i32) {
    %c0_i32 = arith.constant 0 : i32
    %c0_i32_0 = arith.constant 0 : i32
    return %c0_i32, %arg1 : i32, i32
  }
  func.func @transform_5(%arg0: i32, %arg1: i32) -> (i32, i32) {
    %c0_i32 = arith.constant 0 : i32
    return %arg0, %arg1 : i32, i32
  }
}

module attributes {stable_mosaic.version = 11 : i64} {
  func.func @_ln_matmul_kernel(%arg0: i32, %arg1: i32, %arg2: memref<16x32xf32, #tpu.memory_space<vmem>>, %arg3: memref<1x32xf32, #tpu.memory_space<vmem>>, %arg4: memref<1x32xf32, #tpu.memory_space<vmem>>, %arg5: memref<32x96xf32, #tpu.memory_space<vmem>>, %arg6: memref<1x96xf32, #tpu.memory_space<vmem>>, %arg7: memref<16x96xf32, #tpu.memory_space<vmem>>, %arg8: memref<16x32xf32, #tpu.memory_space<vmem>>) attributes {dimension_semantics = [#tpu.dimension_semantics<parallel>, #tpu.dimension_semantics<arbitrary>], iteration_bounds = array<i64: 1, 1>, scalar_prefetch = 0 : i64, scratch_operands = 1 : i64, tpu.core_type = #tpu.core_type<tc>, window_params = [{transform_indices = @transform_0, window_bounds = array<i64: 16, 32>}, {pipeline_mode = #tpu.pipeline_mode<synchronous>, transform_indices = @transform_1, window_bounds = array<i64: 1, 32>}, {pipeline_mode = #tpu.pipeline_mode<synchronous>, transform_indices = @transform_2, window_bounds = array<i64: 1, 32>}, {transform_indices = @transform_3, window_bounds = array<i64: 32, 96>}, {transform_indices = @transform_4, window_bounds = array<i64: 1, 96>}, {transform_indices = @transform_5, window_bounds = array<i64: 16, 96>}]} {
    %c0_i32 = arith.constant 0 : i32
    %0 = arith.cmpi eq, %arg1, %c0_i32 : i32
    %1 = arith.extui %0 : i1 to i32
    %c0_i32_0 = arith.constant 0 : i32
    %2 = arith.cmpi ne, %1, %c0_i32_0 : i32
    scf.if %2 {
      %c0_8 = arith.constant 0 : index
      %c0_9 = arith.constant 0 : index
      %10 = vector.load %arg2[%c0_8, %c0_9] : memref<16x32xf32, #tpu.memory_space<vmem>>, vector<16x32xf32>
      %c0_10 = arith.constant 0 : index
      %c0_11 = arith.constant 0 : index
      %11 = vector.load %arg3[%c0_10, %c0_11] : memref<1x32xf32, #tpu.memory_space<vmem>>, vector<1x32xf32>
      %c0_12 = arith.constant 0 : index
      %c0_13 = arith.constant 0 : index
      %12 = vector.load %arg4[%c0_12, %c0_13] : memref<1x32xf32, #tpu.memory_space<vmem>>, vector<1x32xf32>
      %cst_14 = arith.constant dense<0.000000e+00> : vector<16xf32>
      %13 = vector.multi_reduction <add>, %10, %cst_14 [1] : vector<16x32xf32> to vector<16xf32>
      %14 = vector.shape_cast %13 : vector<16xf32> to vector<16x1xf32>
      %cst_15 = arith.constant 3.200000e+01 : f32
      %15 = vector.broadcast %cst_15 : f32 to vector<16x1xf32>
      %16 = arith.divf %14, %15 : vector<16x1xf32>
      %17 = vector.broadcast %16 : vector<16x1xf32> to vector<16x32xf32>
      %18 = arith.subf %10, %17 : vector<16x32xf32>
      %19 = arith.mulf %18, %18 : vector<16x32xf32>
      %cst_16 = arith.constant dense<0.000000e+00> : vector<16xf32>
      %20 = vector.multi_reduction <add>, %19, %cst_16 [1] : vector<16x32xf32> to vector<16xf32>
      %21 = vector.shape_cast %20 : vector<16xf32> to vector<16x1xf32>
      %cst_17 = arith.constant 3.200000e+01 : f32
      %22 = vector.broadcast %cst_17 : f32 to vector<16x1xf32>
      %23 = arith.divf %21, %22 : vector<16x1xf32>
      %cst_18 = arith.constant 9.99999974E-6 : f32
      %24 = vector.broadcast %cst_18 : f32 to vector<16x1xf32>
      %25 = arith.addf %23, %24 : vector<16x1xf32>
      %26 = math.rsqrt %25 : vector<16x1xf32>
      %27 = vector.broadcast %26 : vector<16x1xf32> to vector<16x32xf32>
      %28 = arith.mulf %18, %27 : vector<16x32xf32>
      %29 = vector.broadcast %11 : vector<1x32xf32> to vector<16x32xf32>
      %30 = arith.mulf %28, %29 : vector<16x32xf32>
      %31 = vector.broadcast %12 : vector<1x32xf32> to vector<16x32xf32>
      %32 = arith.addf %30, %31 : vector<16x32xf32>
      %c0_19 = arith.constant 0 : index
      %c0_20 = arith.constant 0 : index
      %33 = vector.load %arg8[%c0_19, %c0_20] : memref<16x32xf32, #tpu.memory_space<vmem>>, vector<16x32xf32>
      tpu.vector_store %arg8[%c0_19, %c0_20], %32 {strides = array<i32>} : memref<16x32xf32, #tpu.memory_space<vmem>>, vector<16x32xf32>,
    } else {
    }
    %c0 = arith.constant 0 : index
    %c0_1 = arith.constant 0 : index
    %3 = vector.load %arg8[%c0, %c0_1] : memref<16x32xf32, #tpu.memory_space<vmem>>, vector<16x32xf32>
    %c0_2 = arith.constant 0 : index
    %c0_3 = arith.constant 0 : index
    %4 = vector.load %arg5[%c0_2, %c0_3] : memref<32x96xf32, #tpu.memory_space<vmem>>, vector<32x96xf32>
    %cst = arith.constant dense<0.000000e+00> : vector<16x96xf32>
    %5 = tpu.matmul %3, %4, %cst {dimension_numbers = #tpu.dot_dimension_numbers<[1], [0], [0], [1], [0, 0, 1, 1], [], []>} : vector<16x32xf32>, vector<32x96xf32>, vector<16x96xf32> -> vector<16x96xf32>
    %c0_4 = arith.constant 0 : index
    %c0_5 = arith.constant 0 : index
    %6 = vector.load %arg6[%c0_4, %c0_5] : memref<1x96xf32, #tpu.memory_space<vmem>>, vector<1x96xf32>
    %7 = vector.broadcast %6 : vector<1x96xf32> to vector<16x96xf32>
    %8 = arith.addf %5, %7 : vector<16x96xf32>
    %c0_6 = arith.constant 0 : index
    %c0_7 = arith.constant 0 : index
    %9 = vector.load %arg7[%c0_6, %c0_7] : memref<16x96xf32, #tpu.memory_space<vmem>>, vector<16x96xf32>
    tpu.vector_store %arg7[%c0_6, %c0_7], %8 {strides = array<i32>} : memref<16x96xf32, #tpu.memory_space<vmem>>, vector<16x96xf32>,
    return
  }
  func.func @transform_0(%arg0: i32, %arg1: i32) -> (i32, i32) {
    %c0_i32 = arith.constant 0 : i32
    %c0_i32_0 = arith.constant 0 : i32
    return %arg0, %c0_i32 : i32, i32
  }
  func.func @transform_1(%arg0: i32, %arg1: i32) -> (i32, i32) {
    %c0_i32 = arith.constant 0 : i32
    %c0_i32_0 = arith.constant 0 : i32
    %c0_i32_1 = arith.constant 0 : i32
    return %c0_i32, %c0_i32_0 : i32, i32
  }
  func.func @transform_2(%arg0: i32, %arg1: i32) -> (i32, i32) {
    %c0_i32 = arith.constant 0 : i32
    %c0_i32_0 = arith.constant 0 : i32
    %c0_i32_1 = arith.constant 0 : i32
    return %c0_i32, %c0_i32_0 : i32, i32
  }
  func.func @transform_3(%arg0: i32, %arg1: i32) -> (i32, i32) {
    %c0_i32 = arith.constant 0 : i32
    %c0_i32_0 = arith.constant 0 : i32
    return %c0_i32, %arg1 : i32, i32
  }
  func.func @transform_4(%arg0: i32, %arg1: i32) -> (i32, i32) {
    %c0_i32 = arith.constant 0 : i32
    %c0_i32_0 = arith.constant 0 : i32
    return %c0_i32, %arg1 : i32, i32
  }
  func.func @transform_5(%arg0: i32, %arg1: i32) -> (i32, i32) {
    %c0_i32 = arith.constant 0 : i32
    return %arg0, %arg1 : i32, i32
  }
}

module attributes {stable_mosaic.version = 11 : i64} {
  func.func @_matmul_residual_kernel(%arg0: i32, %arg1: i32, %arg2: i32, %arg3: memref<16x128xf32, #tpu.memory_space<vmem>>, %arg4: memref<128x32xf32, #tpu.memory_space<vmem>>, %arg5: memref<1x32xf32, #tpu.memory_space<vmem>>, %arg6: memref<16x32xf32, #tpu.memory_space<vmem>>, %arg7: memref<16x32xf32, #tpu.memory_space<vmem>>, %arg8: memref<16x32xf32, #tpu.memory_space<vmem>>) attributes {dimension_semantics = [#tpu.dimension_semantics<parallel>, #tpu.dimension_semantics<parallel>, #tpu.dimension_semantics<arbitrary>], iteration_bounds = array<i64: 1, 1, 1>, scalar_prefetch = 0 : i64, scratch_operands = 1 : i64, tpu.core_type = #tpu.core_type<tc>, window_params = [{transform_indices = @transform_0, window_bounds = array<i64: 16, 128>}, {transform_indices = @transform_1, window_bounds = array<i64: 128, 32>}, {transform_indices = @transform_2, window_bounds = array<i64: 1, 32>}, {transform_indices = @transform_3, window_bounds = array<i64: 16, 32>}, {transform_indices = @transform_4, window_bounds = array<i64: 16, 32>}]} {
    %c0_i32 = arith.constant 0 : i32
    %0 = arith.cmpi eq, %arg2, %c0_i32 : i32
    %1 = arith.extui %0 : i1 to i32
    %c0_i32_0 = arith.constant 0 : i32
    %2 = arith.cmpi ne, %1, %c0_i32_0 : i32
    scf.if %2 {
      %cst_10 = arith.constant 0.000000e+00 : f32
      %12 = vector.broadcast %cst_10 : f32 to vector<16x32xf32>
      %c0_11 = arith.constant 0 : index
      %c0_12 = arith.constant 0 : index
      %13 = vector.load %arg8[%c0_11, %c0_12] : memref<16x32xf32, #tpu.memory_space<vmem>>, vector<16x32xf32>
      tpu.vector_store %arg8[%c0_11, %c0_12], %12 {strides = array<i32>} : memref<16x32xf32, #tpu.memory_space<vmem>>, vector<16x32xf32>,
    } else {
    }
    %c0 = arith.constant 0 : index
    %c0_1 = arith.constant 0 : index
    %3 = vector.load %arg8[%c0, %c0_1] : memref<16x32xf32, #tpu.memory_space<vmem>>, vector<16x32xf32>
    %c0_2 = arith.constant 0 : index
    %c0_3 = arith.constant 0 : index
    %4 = vector.load %arg3[%c0_2, %c0_3] : memref<16x128xf32, #tpu.memory_space<vmem>>, vector<16x128xf32>
    %c0_4 = arith.constant 0 : index
    %c0_5 = arith.constant 0 : index
    %5 = vector.load %arg4[%c0_4, %c0_5] : memref<128x32xf32, #tpu.memory_space<vmem>>, vector<128x32xf32>
    %cst = arith.constant dense<0.000000e+00> : vector<16x32xf32>
    %6 = tpu.matmul %4, %5, %cst {dimension_numbers = #tpu.dot_dimension_numbers<[1], [0], [0], [1], [0, 0, 1, 1], [], []>} : vector<16x128xf32>, vector<128x32xf32>, vector<16x32xf32> -> vector<16x32xf32>
    %7 = arith.addf %3, %6 : vector<16x32xf32>
    %c0_6 = arith.constant 0 : index
    %c0_7 = arith.constant 0 : index
    %8 = vector.load %arg8[%c0_6, %c0_7] : memref<16x32xf32, #tpu.memory_space<vmem>>, vector<16x32xf32>
    tpu.vector_store %arg8[%c0_6, %c0_7], %7 {strides = array<i32>} : memref<16x32xf32, #tpu.memory_space<vmem>>, vector<16x32xf32>,
    %c0_i32_8 = arith.constant 0 : i32
    %9 = arith.cmpi eq, %arg2, %c0_i32_8 : i32
    %10 = arith.extui %9 : i1 to i32
    %c0_i32_9 = arith.constant 0 : i32
    %11 = arith.cmpi ne, %10, %c0_i32_9 : i32
    scf.if %11 {
      %c0_10 = arith.constant 0 : index
      %c0_11 = arith.constant 0 : index
      %12 = vector.load %arg8[%c0_10, %c0_11] : memref<16x32xf32, #tpu.memory_space<vmem>>, vector<16x32xf32>
      %c0_12 = arith.constant 0 : index
      %c0_13 = arith.constant 0 : index
      %13 = vector.load %arg5[%c0_12, %c0_13] : memref<1x32xf32, #tpu.memory_space<vmem>>, vector<1x32xf32>
      %14 = vector.broadcast %13 : vector<1x32xf32> to vector<16x32xf32>
      %15 = arith.addf %12, %14 : vector<16x32xf32>
      %c0_14 = arith.constant 0 : index
      %c0_15 = arith.constant 0 : index
      %16 = vector.load %arg6[%c0_14, %c0_15] : memref<16x32xf32, #tpu.memory_space<vmem>>, vector<16x32xf32>
      %17 = arith.addf %15, %16 : vector<16x32xf32>
      %c0_16 = arith.constant 0 : index
      %c0_17 = arith.constant 0 : index
      %18 = vector.load %arg7[%c0_16, %c0_17] : memref<16x32xf32, #tpu.memory_space<vmem>>, vector<16x32xf32>
      tpu.vector_store %arg7[%c0_16, %c0_17], %17 {strides = array<i32>} : memref<16x32xf32, #tpu.memory_space<vmem>>, vector<16x32xf32>,
    } else {
    }
    return
  }
  func.func @transform_0(%arg0: i32, %arg1: i32, %arg2: i32) -> (i32, i32) {
    %c0_i32 = arith.constant 0 : i32
    return %arg0, %arg2 : i32, i32
  }
  func.func @transform_1(%arg0: i32, %arg1: i32, %arg2: i32) -> (i32, i32) {
    %c0_i32 = arith.constant 0 : i32
    return %arg2, %arg1 : i32, i32
  }
  func.func @transform_2(%arg0: i32, %arg1: i32, %arg2: i32) -> (i32, i32) {
    %c0_i32 = arith.constant 0 : i32
    %c0_i32_0 = arith.constant 0 : i32
    return %c0_i32, %arg1 : i32, i32
  }
  func.func @transform_3(%arg0: i32, %arg1: i32, %arg2: i32) -> (i32, i32) {
    %c0_i32 = arith.constant 0 : i32
    return %arg0, %arg1 : i32, i32
  }
  func.func @transform_4(%arg0: i32, %arg1: i32, %arg2: i32) -> (i32, i32) {
    %c0_i32 = arith.constant 0 : i32
    return %arg0, %arg1 : i32, i32
  }
}

module attributes {stable_mosaic.version = 11 : i64} {
  func.func @_ln_matmul_gate_kernel(%arg0: i32, %arg1: i32, %arg2: memref<16x32xf32, #tpu.memory_space<vmem>>, %arg3: memref<1x32xf32, #tpu.memory_space<vmem>>, %arg4: memref<1x32xf32, #tpu.memory_space<vmem>>, %arg5: memref<32x32xf32, #tpu.memory_space<vmem>>, %arg6: memref<1x32xf32, #tpu.memory_space<vmem>>, %arg7: memref<16x32xf32, #tpu.memory_space<vmem>>, %arg8: memref<1xf32, #tpu.memory_space<smem>>, %arg9: memref<16x32xf32, #tpu.memory_space<vmem>>) attributes {dimension_semantics = [#tpu.dimension_semantics<parallel>, #tpu.dimension_semantics<parallel>], iteration_bounds = array<i64: 1, 1>, scalar_prefetch = 0 : i64, scratch_operands = 0 : i64, tpu.core_type = #tpu.core_type<tc>, window_params = [{transform_indices = @transform_0, window_bounds = array<i64: 16, 32>}, {pipeline_mode = #tpu.pipeline_mode<synchronous>, transform_indices = @transform_1, window_bounds = array<i64: 1, 32>}, {pipeline_mode = #tpu.pipeline_mode<synchronous>, transform_indices = @transform_2, window_bounds = array<i64: 1, 32>}, {transform_indices = @transform_3, window_bounds = array<i64: 32, 32>}, {transform_indices = @transform_4, window_bounds = array<i64: 1, 32>}, {transform_indices = @transform_5, window_bounds = array<i64: 16, 32>}, {transform_indices = @transform_6, window_bounds = array<i64: 1>}, {transform_indices = @transform_7, window_bounds = array<i64: 16, 32>}]} {
    %c0 = arith.constant 0 : index
    %c0_0 = arith.constant 0 : index
    %0 = vector.load %arg2[%c0, %c0_0] : memref<16x32xf32, #tpu.memory_space<vmem>>, vector<16x32xf32>
    %c0_1 = arith.constant 0 : index
    %c0_2 = arith.constant 0 : index
    %1 = vector.load %arg3[%c0_1, %c0_2] : memref<1x32xf32, #tpu.memory_space<vmem>>, vector<1x32xf32>
    %c0_3 = arith.constant 0 : index
    %c0_4 = arith.constant 0 : index
    %2 = vector.load %arg4[%c0_3, %c0_4] : memref<1x32xf32, #tpu.memory_space<vmem>>, vector<1x32xf32>
    %cst = arith.constant dense<0.000000e+00> : vector<16xf32>
    %3 = vector.multi_reduction <add>, %0, %cst [1] : vector<16x32xf32> to vector<16xf32>
    %4 = vector.shape_cast %3 : vector<16xf32> to vector<16x1xf32>
    %cst_5 = arith.constant 3.200000e+01 : f32
    %5 = vector.broadcast %cst_5 : f32 to vector<16x1xf32>
    %6 = arith.divf %4, %5 : vector<16x1xf32>
    %7 = vector.broadcast %6 : vector<16x1xf32> to vector<16x32xf32>
    %8 = arith.subf %0, %7 : vector<16x32xf32>
    %9 = arith.mulf %8, %8 : vector<16x32xf32>
    %cst_6 = arith.constant dense<0.000000e+00> : vector<16xf32>
    %10 = vector.multi_reduction <add>, %9, %cst_6 [1] : vector<16x32xf32> to vector<16xf32>
    %11 = vector.shape_cast %10 : vector<16xf32> to vector<16x1xf32>
    %cst_7 = arith.constant 3.200000e+01 : f32
    %12 = vector.broadcast %cst_7 : f32 to vector<16x1xf32>
    %13 = arith.divf %11, %12 : vector<16x1xf32>
    %cst_8 = arith.constant 9.99999996E-13 : f32
    %14 = vector.broadcast %cst_8 : f32 to vector<16x1xf32>
    %15 = arith.addf %13, %14 : vector<16x1xf32>
    %16 = math.rsqrt %15 : vector<16x1xf32>
    %17 = vector.broadcast %16 : vector<16x1xf32> to vector<16x32xf32>
    %18 = arith.mulf %8, %17 : vector<16x32xf32>
    %19 = vector.broadcast %1 : vector<1x32xf32> to vector<16x32xf32>
    %20 = arith.mulf %18, %19 : vector<16x32xf32>
    %21 = vector.broadcast %2 : vector<1x32xf32> to vector<16x32xf32>
    %22 = arith.addf %20, %21 : vector<16x32xf32>
    %c0_9 = arith.constant 0 : index
    %c0_10 = arith.constant 0 : index
    %23 = vector.load %arg5[%c0_9, %c0_10] : memref<32x32xf32, #tpu.memory_space<vmem>>, vector<32x32xf32>
    %cst_11 = arith.constant dense<0.000000e+00> : vector<16x32xf32>
    %24 = tpu.matmul %22, %23, %cst_11 {dimension_numbers = #tpu.dot_dimension_numbers<[1], [0], [0], [1], [0, 0, 1, 1], [], []>} : vector<16x32xf32>, vector<32x32xf32>, vector<16x32xf32> -> vector<16x32xf32>
    %c0_12 = arith.constant 0 : index
    %c0_13 = arith.constant 0 : index
    %25 = vector.load %arg6[%c0_12, %c0_13] : memref<1x32xf32, #tpu.memory_space<vmem>>, vector<1x32xf32>
    %26 = vector.broadcast %25 : vector<1x32xf32> to vector<16x32xf32>
    %27 = arith.addf %24, %26 : vector<16x32xf32>
    %c0_14 = arith.constant 0 : index
    %28 = memref.load %arg8[%c0_14] : memref<1xf32, #tpu.memory_space<smem>>
    %c0_15 = arith.constant 0 : index
    %c0_16 = arith.constant 0 : index
    %29 = vector.load %arg7[%c0_15, %c0_16] : memref<16x32xf32, #tpu.memory_space<vmem>>, vector<16x32xf32>
    %cst_17 = arith.constant 1.000000e+00 : f32
    %30 = arith.subf %cst_17, %28 : f32
    %31 = vector.broadcast %30 : f32 to vector<16x32xf32>
    %32 = arith.mulf %29, %31 : vector<16x32xf32>
    %33 = vector.broadcast %28 : f32 to vector<16x32xf32>
    %34 = arith.mulf %27, %33 : vector<16x32xf32>
    %35 = arith.addf %32, %34 : vector<16x32xf32>
    %c0_18 = arith.constant 0 : index
    %c0_19 = arith.constant 0 : index
    %36 = vector.load %arg9[%c0_18, %c0_19] : memref<16x32xf32, #tpu.memory_space<vmem>>, vector<16x32xf32>
    tpu.vector_store %arg9[%c0_18, %c0_19], %35 {strides = array<i32>} : memref<16x32xf32, #tpu.memory_space<vmem>>, vector<16x32xf32>,
    return
  }
  func.func @transform_0(%arg0: i32, %arg1: i32) -> (i32, i32) {
    %c0_i32 = arith.constant 0 : i32
    %c0_i32_0 = arith.constant 0 : i32
    return %arg0, %c0_i32 : i32, i32
  }
  func.func @transform_1(%arg0: i32, %arg1: i32) -> (i32, i32) {
    %c0_i32 = arith.constant 0 : i32
    %c0_i32_0 = arith.constant 0 : i32
    %c0_i32_1 = arith.constant 0 : i32
    return %c0_i32, %c0_i32_0 : i32, i32
  }
  func.func @transform_2(%arg0: i32, %arg1: i32) -> (i32, i32) {
    %c0_i32 = arith.constant 0 : i32
    %c0_i32_0 = arith.constant 0 : i32
    %c0_i32_1 = arith.constant 0 : i32
    return %c0_i32, %c0_i32_0 : i32, i32
  }
  func.func @transform_3(%arg0: i32, %arg1: i32) -> (i32, i32) {
    %c0_i32 = arith.constant 0 : i32
    %c0_i32_0 = arith.constant 0 : i32
    return %c0_i32, %arg1 : i32, i32
  }
  func.func @transform_4(%arg0: i32, %arg1: i32) -> (i32, i32) {
    %c0_i32 = arith.constant 0 : i32
    %c0_i32_0 = arith.constant 0 : i32
    return %c0_i32, %arg1 : i32, i32
  }
  func.func @transform_5(%arg0: i32, %arg1: i32) -> (i32, i32) {
    %c0_i32 = arith.constant 0 : i32
    return %arg0, %arg1 : i32, i32
  }
  func.func @transform_6(%arg0: i32, %arg1: i32) -> i32 {
    %c0_i32 = arith.constant 0 : i32
    %c0_i32_0 = arith.constant 0 : i32
    return %c0_i32 : i32
  }
  func.func @transform_7(%arg0: i32, %arg1: i32) -> (i32, i32) {
    %c0_i32 = arith.constant 0 : i32
    return %arg0, %arg1 : i32, i32
  }
}

module attributes {stable_mosaic.version = 11 : i64} {
  func.func @_skip_fuse_kernel(%arg0: i32, %arg1: i32, %arg2: memref<16x32xf32, #tpu.memory_space<vmem>>, %arg3: memref<16x32xf32, #tpu.memory_space<vmem>>, %arg4: memref<32x32xf32, #tpu.memory_space<vmem>>, %arg5: memref<32x32xf32, #tpu.memory_space<vmem>>, %arg6: memref<1x32xf32, #tpu.memory_space<vmem>>, %arg7: memref<16x32xf32, #tpu.memory_space<vmem>>, %arg8: memref<16x32xf32, #tpu.memory_space<vmem>>) attributes {dimension_semantics = [#tpu.dimension_semantics<parallel>, #tpu.dimension_semantics<parallel>], iteration_bounds = array<i64: 1, 1>, scalar_prefetch = 0 : i64, scratch_operands = 0 : i64, tpu.core_type = #tpu.core_type<tc>, window_params = [{transform_indices = @transform_0, window_bounds = array<i64: 16, 32>}, {transform_indices = @transform_1, window_bounds = array<i64: 16, 32>}, {transform_indices = @transform_2, window_bounds = array<i64: 32, 32>}, {transform_indices = @transform_3, window_bounds = array<i64: 32, 32>}, {transform_indices = @transform_4, window_bounds = array<i64: 1, 32>}, {transform_indices = @transform_5, window_bounds = array<i64: 16, 32>}, {transform_indices = @transform_6, window_bounds = array<i64: 16, 32>}]} {
    %c0 = arith.constant 0 : index
    %c0_0 = arith.constant 0 : index
    %0 = vector.load %arg2[%c0, %c0_0] : memref<16x32xf32, #tpu.memory_space<vmem>>, vector<16x32xf32>
    %c0_1 = arith.constant 0 : index
    %c0_2 = arith.constant 0 : index
    %1 = vector.load %arg4[%c0_1, %c0_2] : memref<32x32xf32, #tpu.memory_space<vmem>>, vector<32x32xf32>
    %cst = arith.constant dense<0.000000e+00> : vector<16x32xf32>
    %2 = tpu.matmul %0, %1, %cst {dimension_numbers = #tpu.dot_dimension_numbers<[1], [0], [0], [1], [0, 0, 1, 1], [], []>} : vector<16x32xf32>, vector<32x32xf32>, vector<16x32xf32> -> vector<16x32xf32>
    %c0_3 = arith.constant 0 : index
    %c0_4 = arith.constant 0 : index
    %3 = vector.load %arg3[%c0_3, %c0_4] : memref<16x32xf32, #tpu.memory_space<vmem>>, vector<16x32xf32>
    %c0_5 = arith.constant 0 : index
    %c0_6 = arith.constant 0 : index
    %4 = vector.load %arg5[%c0_5, %c0_6] : memref<32x32xf32, #tpu.memory_space<vmem>>, vector<32x32xf32>
    %cst_7 = arith.constant dense<0.000000e+00> : vector<16x32xf32>
    %5 = tpu.matmul %3, %4, %cst_7 {dimension_numbers = #tpu.dot_dimension_numbers<[1], [0], [0], [1], [0, 0, 1, 1], [], []>} : vector<16x32xf32>, vector<32x32xf32>, vector<16x32xf32> -> vector<16x32xf32>
    %6 = arith.addf %2, %5 : vector<16x32xf32>
    %c0_8 = arith.constant 0 : index
    %c0_9 = arith.constant 0 : index
    %7 = vector.load %arg6[%c0_8, %c0_9] : memref<1x32xf32, #tpu.memory_space<vmem>>, vector<1x32xf32>
    %8 = vector.broadcast %7 : vector<1x32xf32> to vector<16x32xf32>
    %9 = arith.addf %6, %8 : vector<16x32xf32>
    %c0_10 = arith.constant 0 : index
    %c0_11 = arith.constant 0 : index
    %10 = vector.load %arg7[%c0_10, %c0_11] : memref<16x32xf32, #tpu.memory_space<vmem>>, vector<16x32xf32>
    %cst_12 = arith.constant 1.000000e-01 : f32
    %11 = vector.broadcast %cst_12 : f32 to vector<16x32xf32>
    %12 = arith.mulf %11, %9 : vector<16x32xf32>
    %13 = arith.addf %10, %12 : vector<16x32xf32>
    %c0_13 = arith.constant 0 : index
    %c0_14 = arith.constant 0 : index
    %14 = vector.load %arg8[%c0_13, %c0_14] : memref<16x32xf32, #tpu.memory_space<vmem>>, vector<16x32xf32>
    tpu.vector_store %arg8[%c0_13, %c0_14], %13 {strides = array<i32>} : memref<16x32xf32, #tpu.memory_space<vmem>>, vector<16x32xf32>,
    return
  }
  func.func @transform_0(%arg0: i32, %arg1: i32) -> (i32, i32) {
    %c0_i32 = arith.constant 0 : i32
    %c0_i32_0 = arith.constant 0 : i32
    return %arg0, %c0_i32 : i32, i32
  }
  func.func @transform_1(%arg0: i32, %arg1: i32) -> (i32, i32) {
    %c0_i32 = arith.constant 0 : i32
    %c0_i32_0 = arith.constant 0 : i32
    return %arg0, %c0_i32 : i32, i32
  }
  func.func @transform_2(%arg0: i32, %arg1: i32) -> (i32, i32) {
    %c0_i32 = arith.constant 0 : i32
    %c0_i32_0 = arith.constant 0 : i32
    return %c0_i32, %arg1 : i32, i32
  }
  func.func @transform_3(%arg0: i32, %arg1: i32) -> (i32, i32) {
    %c0_i32 = arith.constant 0 : i32
    %c0_i32_0 = arith.constant 0 : i32
    return %c0_i32, %arg1 : i32, i32
  }
  func.func @transform_4(%arg0: i32, %arg1: i32) -> (i32, i32) {
    %c0_i32 = arith.constant 0 : i32
    %c0_i32_0 = arith.constant 0 : i32
    return %c0_i32, %arg1 : i32, i32
  }
  func.func @transform_5(%arg0: i32, %arg1: i32) -> (i32, i32) {
    %c0_i32 = arith.constant 0 : i32
    return %arg0, %arg1 : i32, i32
  }
  func.func @transform_6(%arg0: i32, %arg1: i32) -> (i32, i32) {
    %c0_i32 = arith.constant 0 : i32
    return %arg0, %arg1 : i32, i32
  }
}

module attributes {stable_mosaic.version = 11 : i64} {
  func.func @_ln_matmul_t_kernel(%arg0: i32, %arg1: i32, %arg2: memref<16x32xf32, #tpu.memory_space<vmem>>, %arg3: memref<1x32xf32, #tpu.memory_space<vmem>>, %arg4: memref<1x32xf32, #tpu.memory_space<vmem>>, %arg5: memref<128x32xf32, #tpu.memory_space<vmem>>, %arg6: memref<16x128xf32, #tpu.memory_space<vmem>>, %arg7: memref<16x32xf32, #tpu.memory_space<vmem>>) attributes {dimension_semantics = [#tpu.dimension_semantics<parallel>, #tpu.dimension_semantics<arbitrary>], iteration_bounds = array<i64: 1, 1>, scalar_prefetch = 0 : i64, scratch_operands = 1 : i64, tpu.core_type = #tpu.core_type<tc>, window_params = [{transform_indices = @transform_0, window_bounds = array<i64: 16, 32>}, {pipeline_mode = #tpu.pipeline_mode<synchronous>, transform_indices = @transform_1, window_bounds = array<i64: 1, 32>}, {pipeline_mode = #tpu.pipeline_mode<synchronous>, transform_indices = @transform_2, window_bounds = array<i64: 1, 32>}, {transform_indices = @transform_3, window_bounds = array<i64: 128, 32>}, {transform_indices = @transform_4, window_bounds = array<i64: 16, 128>}]} {
    %c0_i32 = arith.constant 0 : i32
    %0 = arith.cmpi eq, %arg1, %c0_i32 : i32
    %1 = arith.extui %0 : i1 to i32
    %c0_i32_0 = arith.constant 0 : i32
    %2 = arith.cmpi ne, %1, %c0_i32_0 : i32
    scf.if %2 {
      %c0_6 = arith.constant 0 : index
      %c0_7 = arith.constant 0 : index
      %7 = vector.load %arg2[%c0_6, %c0_7] : memref<16x32xf32, #tpu.memory_space<vmem>>, vector<16x32xf32>
      %c0_8 = arith.constant 0 : index
      %c0_9 = arith.constant 0 : index
      %8 = vector.load %arg3[%c0_8, %c0_9] : memref<1x32xf32, #tpu.memory_space<vmem>>, vector<1x32xf32>
      %c0_10 = arith.constant 0 : index
      %c0_11 = arith.constant 0 : index
      %9 = vector.load %arg4[%c0_10, %c0_11] : memref<1x32xf32, #tpu.memory_space<vmem>>, vector<1x32xf32>
      %cst_12 = arith.constant dense<0.000000e+00> : vector<16xf32>
      %10 = vector.multi_reduction <add>, %7, %cst_12 [1] : vector<16x32xf32> to vector<16xf32>
      %11 = vector.shape_cast %10 : vector<16xf32> to vector<16x1xf32>
      %cst_13 = arith.constant 3.200000e+01 : f32
      %12 = vector.broadcast %cst_13 : f32 to vector<16x1xf32>
      %13 = arith.divf %11, %12 : vector<16x1xf32>
      %14 = vector.broadcast %13 : vector<16x1xf32> to vector<16x32xf32>
      %15 = arith.subf %7, %14 : vector<16x32xf32>
      %16 = arith.mulf %15, %15 : vector<16x32xf32>
      %cst_14 = arith.constant dense<0.000000e+00> : vector<16xf32>
      %17 = vector.multi_reduction <add>, %16, %cst_14 [1] : vector<16x32xf32> to vector<16xf32>
      %18 = vector.shape_cast %17 : vector<16xf32> to vector<16x1xf32>
      %cst_15 = arith.constant 3.200000e+01 : f32
      %19 = vector.broadcast %cst_15 : f32 to vector<16x1xf32>
      %20 = arith.divf %18, %19 : vector<16x1xf32>
      %cst_16 = arith.constant 9.99999974E-6 : f32
      %21 = vector.broadcast %cst_16 : f32 to vector<16x1xf32>
      %22 = arith.addf %20, %21 : vector<16x1xf32>
      %23 = math.rsqrt %22 : vector<16x1xf32>
      %24 = vector.broadcast %23 : vector<16x1xf32> to vector<16x32xf32>
      %25 = arith.mulf %15, %24 : vector<16x32xf32>
      %26 = vector.broadcast %8 : vector<1x32xf32> to vector<16x32xf32>
      %27 = arith.mulf %25, %26 : vector<16x32xf32>
      %28 = vector.broadcast %9 : vector<1x32xf32> to vector<16x32xf32>
      %29 = arith.addf %27, %28 : vector<16x32xf32>
      %c0_17 = arith.constant 0 : index
      %c0_18 = arith.constant 0 : index
      %30 = vector.load %arg7[%c0_17, %c0_18] : memref<16x32xf32, #tpu.memory_space<vmem>>, vector<16x32xf32>
      tpu.vector_store %arg7[%c0_17, %c0_18], %29 {strides = array<i32>} : memref<16x32xf32, #tpu.memory_space<vmem>>, vector<16x32xf32>,
    } else {
    }
    %c0 = arith.constant 0 : index
    %c0_1 = arith.constant 0 : index
    %3 = vector.load %arg7[%c0, %c0_1] : memref<16x32xf32, #tpu.memory_space<vmem>>, vector<16x32xf32>
    %c0_2 = arith.constant 0 : index
    %c0_3 = arith.constant 0 : index
    %4 = vector.load %arg5[%c0_2, %c0_3] : memref<128x32xf32, #tpu.memory_space<vmem>>, vector<128x32xf32>
    %cst = arith.constant dense<0.000000e+00> : vector<16x128xf32>
    %5 = tpu.matmul %3, %4, %cst {dimension_numbers = #tpu.dot_dimension_numbers<[1], [1], [0], [0], [0, 0, 1, 0], [], []>} : vector<16x32xf32>, vector<128x32xf32>, vector<16x128xf32> -> vector<16x128xf32>
    %c0_4 = arith.constant 0 : index
    %c0_5 = arith.constant 0 : index
    %6 = vector.load %arg6[%c0_4, %c0_5] : memref<16x128xf32, #tpu.memory_space<vmem>>, vector<16x128xf32>
    tpu.vector_store %arg6[%c0_4, %c0_5], %5 {strides = array<i32>} : memref<16x128xf32, #tpu.memory_space<vmem>>, vector<16x128xf32>,
    return
  }
  func.func @transform_0(%arg0: i32, %arg1: i32) -> (i32, i32) {
    %c0_i32 = arith.constant 0 : i32
    %c0_i32_0 = arith.constant 0 : i32
    return %arg0, %c0_i32 : i32, i32
  }
  func.func @transform_1(%arg0: i32, %arg1: i32) -> (i32, i32) {
    %c0_i32 = arith.constant 0 : i32
    %c0_i32_0 = arith.constant 0 : i32
    %c0_i32_1 = arith.constant 0 : i32
    return %c0_i32, %c0_i32_0 : i32, i32
  }
  func.func @transform_2(%arg0: i32, %arg1: i32) -> (i32, i32) {
    %c0_i32 = arith.constant 0 : i32
    %c0_i32_0 = arith.constant 0 : i32
    %c0_i32_1 = arith.constant 0 : i32
    return %c0_i32, %c0_i32_0 : i32, i32
  }
  func.func @transform_3(%arg0: i32, %arg1: i32) -> (i32, i32) {
    %c0_i32 = arith.constant 0 : i32
    %c0_i32_0 = arith.constant 0 : i32
    return %arg1, %c0_i32 : i32, i32
  }
  func.func @transform_4(%arg0: i32, %arg1: i32) -> (i32, i32) {
    %c0_i32 = arith.constant 0 : i32
    return %arg0, %arg1 : i32, i32
  }
}

module attributes {stable_mosaic.version = 11 : i64} {
  func.func @_skip_fuse_kernel(%arg0: i32, %arg1: i32, %arg2: memref<16x32xf32, #tpu.memory_space<vmem>>, %arg3: memref<16x32xf32, #tpu.memory_space<vmem>>, %arg4: memref<32x32xf32, #tpu.memory_space<vmem>>, %arg5: memref<32x32xf32, #tpu.memory_space<vmem>>, %arg6: memref<1x32xf32, #tpu.memory_space<vmem>>, %arg7: memref<16x32xf32, #tpu.memory_space<vmem>>, %arg8: memref<16x32xf32, #tpu.memory_space<vmem>>) attributes {dimension_semantics = [#tpu.dimension_semantics<parallel>, #tpu.dimension_semantics<parallel>], iteration_bounds = array<i64: 1, 1>, scalar_prefetch = 0 : i64, scratch_operands = 0 : i64, tpu.core_type = #tpu.core_type<tc>, window_params = [{transform_indices = @transform_0, window_bounds = array<i64: 16, 32>}, {transform_indices = @transform_1, window_bounds = array<i64: 16, 32>}, {transform_indices = @transform_2, window_bounds = array<i64: 32, 32>}, {transform_indices = @transform_3, window_bounds = array<i64: 32, 32>}, {transform_indices = @transform_4, window_bounds = array<i64: 1, 32>}, {transform_indices = @transform_5, window_bounds = array<i64: 16, 32>}, {transform_indices = @transform_6, window_bounds = array<i64: 16, 32>}]} {
    %c0 = arith.constant 0 : index
    %c0_0 = arith.constant 0 : index
    %0 = vector.load %arg2[%c0, %c0_0] : memref<16x32xf32, #tpu.memory_space<vmem>>, vector<16x32xf32>
    %c0_1 = arith.constant 0 : index
    %c0_2 = arith.constant 0 : index
    %1 = vector.load %arg4[%c0_1, %c0_2] : memref<32x32xf32, #tpu.memory_space<vmem>>, vector<32x32xf32>
    %cst = arith.constant dense<0.000000e+00> : vector<16x32xf32>
    %2 = tpu.matmul %0, %1, %cst {dimension_numbers = #tpu.dot_dimension_numbers<[1], [0], [0], [1], [0, 0, 1, 1], [], []>} : vector<16x32xf32>, vector<32x32xf32>, vector<16x32xf32> -> vector<16x32xf32>
    %c0_3 = arith.constant 0 : index
    %c0_4 = arith.constant 0 : index
    %3 = vector.load %arg3[%c0_3, %c0_4] : memref<16x32xf32, #tpu.memory_space<vmem>>, vector<16x32xf32>
    %c0_5 = arith.constant 0 : index
    %c0_6 = arith.constant 0 : index
    %4 = vector.load %arg5[%c0_5, %c0_6] : memref<32x32xf32, #tpu.memory_space<vmem>>, vector<32x32xf32>
    %cst_7 = arith.constant dense<0.000000e+00> : vector<16x32xf32>
    %5 = tpu.matmul %3, %4, %cst_7 {dimension_numbers = #tpu.dot_dimension_numbers<[1], [0], [0], [1], [0, 0, 1, 1], [], []>} : vector<16x32xf32>, vector<32x32xf32>, vector<16x32xf32> -> vector<16x32xf32>
    %6 = arith.addf %2, %5 : vector<16x32xf32>
    %c0_8 = arith.constant 0 : index
    %c0_9 = arith.constant 0 : index
    %7 = vector.load %arg6[%c0_8, %c0_9] : memref<1x32xf32, #tpu.memory_space<vmem>>, vector<1x32xf32>
    %8 = vector.broadcast %7 : vector<1x32xf32> to vector<16x32xf32>
    %9 = arith.addf %6, %8 : vector<16x32xf32>
    %c0_10 = arith.constant 0 : index
    %c0_11 = arith.constant 0 : index
    %10 = vector.load %arg7[%c0_10, %c0_11] : memref<16x32xf32, #tpu.memory_space<vmem>>, vector<16x32xf32>
    %cst_12 = arith.constant 1.500000e-01 : f32
    %11 = vector.broadcast %cst_12 : f32 to vector<16x32xf32>
    %12 = arith.mulf %11, %9 : vector<16x32xf32>
    %13 = arith.addf %10, %12 : vector<16x32xf32>
    %c0_13 = arith.constant 0 : index
    %c0_14 = arith.constant 0 : index
    %14 = vector.load %arg8[%c0_13, %c0_14] : memref<16x32xf32, #tpu.memory_space<vmem>>, vector<16x32xf32>
    tpu.vector_store %arg8[%c0_13, %c0_14], %13 {strides = array<i32>} : memref<16x32xf32, #tpu.memory_space<vmem>>, vector<16x32xf32>,
    return
  }
  func.func @transform_0(%arg0: i32, %arg1: i32) -> (i32, i32) {
    %c0_i32 = arith.constant 0 : i32
    %c0_i32_0 = arith.constant 0 : i32
    return %arg0, %c0_i32 : i32, i32
  }
  func.func @transform_1(%arg0: i32, %arg1: i32) -> (i32, i32) {
    %c0_i32 = arith.constant 0 : i32
    %c0_i32_0 = arith.constant 0 : i32
    return %arg0, %c0_i32 : i32, i32
  }
  func.func @transform_2(%arg0: i32, %arg1: i32) -> (i32, i32) {
    %c0_i32 = arith.constant 0 : i32
    %c0_i32_0 = arith.constant 0 : i32
    return %c0_i32, %arg1 : i32, i32
  }
  func.func @transform_3(%arg0: i32, %arg1: i32) -> (i32, i32) {
    %c0_i32 = arith.constant 0 : i32
    %c0_i32_0 = arith.constant 0 : i32
    return %c0_i32, %arg1 : i32, i32
  }
  func.func @transform_4(%arg0: i32, %arg1: i32) -> (i32, i32) {
    %c0_i32 = arith.constant 0 : i32
    %c0_i32_0 = arith.constant 0 : i32
    return %c0_i32, %arg1 : i32, i32
  }
  func.func @transform_5(%arg0: i32, %arg1: i32) -> (i32, i32) {
    %c0_i32 = arith.constant 0 : i32
    return %arg0, %arg1 : i32, i32
  }
  func.func @transform_6(%arg0: i32, %arg1: i32) -> (i32, i32) {
    %c0_i32 = arith.constant 0 : i32
    return %arg0, %arg1 : i32, i32
  }
}

</mosaic_0001>

<llo_original>
// kernel: unet_forward.68
$region0: #{unet_forward.68}
  #allocation0 [shape = 'u32[]', space=smem, size = 0x4, offset = 0x4, fixed_abs, tag = 'smem constant byte address 0x4 - core index']
  #allocation1 [shape = 'u32[144,128]{1,0:T(1,128)}', space=vmem, size = 0x12000, scoped, tag = 'internal scratch']
  #allocation2 [shape = 'f32[16,32]{1,0:T(8,128)}', space=vmem, size = 0x2000, scoped, tag = 'scratch operand']
  %s0 = inlined_call_operand.vmem [shape: f32[16,32], index: 0, kind: input, shape index: {}]
  %s1 = inlined_call_operand.vmem [shape: f32[1,32], index: 1, kind: input, shape index: {}]
  %s2 = inlined_call_operand.vmem [shape: f32[1,32], index: 2, kind: input, shape index: {}]
  %s3 = inlined_call_operand.vmem [shape: f32[32,128], index: 3, kind: input, shape index: {}]
  %s4 = inlined_call_operand.vmem [shape: f32[1,128], index: 4, kind: input, shape index: {}]
  %s5 = inlined_call_operand.vmem [shape: f32[16,128], index: 5, kind: output, shape index: {}]
  %s6 = sld [smem:[#allocation0]]
  $region34: #{unet_forward.68} parent=0
    _
  %s8 = ssub.s32 1, %s6
  %s9 = scalar_select 0, %s8, %s6
  // Predicated region
  $region2: #{unet_forward.68} parent=0 // pred_check
    _
  $region3: #{unet_forward.68} parent=0 // pred_check_branch
    %11 = sbr.rel (0) target = $region5
  $region4: #{unet_forward.68} parent=0 // pred_region
    _
  $region5: #{unet_forward.68} parent=0 // pred_fallthru
    _
  // Predicated region
  $region6: #{unet_forward.68} parent=0 // pred_check
    _
  $region7: #{unet_forward.68} parent=0 // pred_check_branch
    %13 = sbr.rel (0) target = $region9
  $region8: #{unet_forward.68} parent=0 // pred_region
    _
  $region9: #{unet_forward.68} parent=0 // pred_fallthru
    _
  // Predicated region
  $region10: #{unet_forward.68} parent=0 // pred_check
    _
  $region11: #{unet_forward.68} parent=0 // pred_check_branch
    %15 = sbr.rel (0) target = $region13
  $region12: #{unet_forward.68} parent=0 // pred_region
    _
  $region13: #{unet_forward.68} parent=0 // pred_fallthru
    _
  // Predicated region
  $region14: #{unet_forward.68} parent=0 // pred_check
    _
  $region15: #{unet_forward.68} parent=0 // pred_check_branch
    %17 = sbr.rel (0) target = $region17
  $region16: #{unet_forward.68} parent=0 // pred_region
    _
  $region17: #{unet_forward.68} parent=0 // pred_fallthru
    _
  // Predicated region
  $region18: #{unet_forward.68} parent=0 // pred_check
    _
  $region19: #{unet_forward.68} parent=0 // pred_check_branch
    %19 = sbr.rel (0) target = $region21
  $region20: #{unet_forward.68} parent=0 // pred_region
    _
  $region21: #{unet_forward.68} parent=0 // pred_fallthru
    _
  %p20 = scmp.eq.s32.totalorder 0, 0
  // Predicated region
  $region22: #{unet_forward.68} parent=0 // pred_check
    %p21 = pneg %p20
  $region23: #{unet_forward.68} parent=0 // pred_check_branch
    %23 = sbr.rel (%p21) target = $region25
  $region24: #{unet_forward.68} parent=0 // pred_region
    %v24 = vld [vmem:[%s0] sm:$0xff]
    %v25 = vld [vmem:[%s0 + $0x8] sm:$0xff]
    %v26 = vld [vmem:[%s1] sm:$0x1]
    %v27 = vld [vmem:[%s2] sm:$0x1]
    %vm28 = vcmask 261120
    %v29 = vsel %vm28, %v24, 0.0
    %30 = vadd.xlane.f32.xlu0 %v29
    %v31 = vpop.xlane.xlu0 %30
    %v32 = vsel %vm28, %v25, 0.0
    %33 = vadd.xlane.f32.xlu0 %v32
    %v34 = vpop.xlane.xlu0 %33
    %v35 = vrcp.pop 32.0
    %v36 = vmul.f32 %v31, %v35
    %v37 = vmul.f32 %v34, %v35
    %v38 = vsub.f32 %v24, %v36
    %v39 = vsub.f32 %v25, %v37
    %v40 = vmul.f32 %v38, %v38
    %v41 = vmul.f32 %v39, %v39
    %v42 = vsel %vm28, %v40, 0.0
    %43 = vadd.xlane.f32.xlu0 %v42
    %v44 = vpop.xlane.xlu0 %43
    %v45 = vsel %vm28, %v41, 0.0
    %46 = vadd.xlane.f32.xlu0 %v45
    %v47 = vpop.xlane.xlu0 %46
    %v48 = vmul.f32 %v44, %v35
    %v49 = vmul.f32 %v47, %v35
    %v50 = vadd.f32 %v48, 1e-12
    %v51 = vadd.f32 %v49, 1e-12
    %v52 = vrsqrt.pop %v50
    %v53 = vrsqrt.pop %v51
    %v54 = vmul.f32 %v38, %v52
    %v55 = vmul.f32 %v39, %v53
    %v57 = vlaneseq
    %v58 = vshrl.u32 %v57, 7
    %v59 = vsub.s32 0, %v58
    %v60 = vrot.slane %v26, %v59
    %v62 = vmul.f32 %v54, %v60
    %v63 = vmul.f32 %v55, %v60
    %v65 = vlaneseq
    %v66 = vshrl.u32 %v65, 7
    %v67 = vsub.s32 0, %v66
    %v68 = vrot.slane %v27, %v67
    %v70 = vadd.f32 %v62, %v68
    %v71 = vadd.f32 %v63, %v68
    %72 = vst.msk [vmem:[#allocation2] sm:$0xff] %vm28, %v70
    %73 = vst.msk [vmem:[#allocation2 + $0x8] sm:$0xff] %vm28, %v71
  $region25: #{unet_forward.68} parent=0 // pred_fallthru
    _
  %v74 = vld [vmem:[#allocation2] sm:$0xff]
  %v75 = vld [vmem:[#allocation2 + $0x8] sm:$0xff]
  %v76 = vld [vmem:[%s3] sm:$0xff]
  %v77 = vld [vmem:[%s3 + $0x8] sm:$0xff]
  %v78 = vld [vmem:[%s3 + $0x10] sm:$0xff]
  %v79 = vld [vmem:[%s3 + $0x18] sm:$0xff]
  %v80 = vld [vmem:[%s4] sm:$0x1]
  %v82 = vlaneseq
  %v83 = vshrl.u32 %v82, 7
  %v84 = vsub.s32 0, %v83
  %v85 = vrot.slane %v80, %v84
  %vm87 = vcmask 261120
  %v89 = vsel %vm87, %v74, 0
  %v92 = vsel %vm87, %v75, 0
  %94 = vmatprep.subr.mxu0 0.0
  %95 = vmatpush1.msra.mxu0 0.0
  %96 = vmatprep.subr.mxu0 0.0
  %97 = vmatpush1.msra.mxu0 0.0
  %98 = vmatprep.subr.mxu0 0.0
  %99 = vmatpush1.msra.mxu0 0.0
  %100 = vmatprep.subr.mxu0 0.0
  %101 = vmatpush1.msra.mxu0 0.0
  %102 = vmatprep.subr.mxu0 0.0
  %103 = vmatpush1.msra.mxu0 0.0
  %104 = vmatprep.subr.mxu0 0.0
  %105 = vmatpush1.msra.mxu0 0.0
  %106 = vmatprep.subr.mxu0 0.0
  %107 = vmatpush1.msra.mxu0 0.0
  %108 = vmatprep.subr.mxu0 0.0
  %109 = vmatpush1.msra.mxu0 0.0
  %110 = vmatprep.subr.mxu0 0.0
  %111 = vmatpush1.msra.mxu0 0.0
  %112 = vmatprep.subr.mxu0 0.0
  %113 = vmatpush1.msra.mxu0 0.0
  %114 = vmatprep.subr.mxu0 0.0
  %115 = vmatpush1.msra.mxu0 0.0
  %116 = vmatprep.subr.mxu0 0.0
  %117 = vmatpush1.msra.mxu0 0.0
  %118 = vmatprep.subr.mxu0 0.0
  %119 = vmatpush1.msra.mxu0 %v79
  %120 = vmatprep.subr.mxu0 0.0
  %121 = vmatpush1.msra.mxu0 %v78
  %122 = vmatprep.subr.mxu0 0.0
  %123 = vmatpush1.msra.mxu0 %v77
  %124 = vmatprep.subr.mxu0 0.0
  %125 = vmatpush1.msra.mxu0 %v76
  %126 = vmatprep.subr.mxu0 0.0
  %127 = vmatpush2.msra.mxu0 0.0
  %128 = vmatprep.subr.mxu0 0.0
  %129 = vmatpush2.msra.mxu0 0.0
  %130 = vmatprep.subr.mxu0 0.0
  %131 = vmatpush2.msra.mxu0 0.0
  %132 = vmatprep.subr.mxu0 0.0
  %133 = vmatpush2.msra.mxu0 0.0
  %134 = vmatprep.subr.mxu0 0.0
  %135 = vmatpush2.msra.mxu0 0.0
  %136 = vmatprep.subr.mxu0 0.0
  %137 = vmatpush2.msra.mxu0 0.0
  %138 = vmatprep.subr.mxu0 0.0
  %139 = vmatpush2.msra.mxu0 0.0
  %140 = vmatprep.subr.mxu0 0.0
  %141 = vmatpush2.msra.mxu0 0.0
  %142 = vmatprep.subr.mxu0 0.0
  %143 = vmatpush2.msra.mxu0 0.0
  %144 = vmatprep.subr.mxu0 0.0
  %145 = vmatpush2.msra.mxu0 0.0
  %146 = vmatprep.subr.mxu0 0.0
  %147 = vmatpush2.msra.mxu0 0.0
  %148 = vmatprep.subr.mxu0 0.0
  %149 = vmatpush2.msra.mxu0 0.0
  %150 = vmatprep.subr.mxu0 0.0
  %151 = vmatpush2.msra.mxu0 0.0
  %152 = vmatprep.subr.mxu0 0.0
  %153 = vmatpush2.msra.mxu0 0.0
  %154 = vmatprep.subr.mxu0 0.0
  %155 = vmatpush2.msra.mxu0 0.0
  %156 = vmatprep.subr.mxu0 0.0
  %157 = vmatpush2.msra.mxu0 0.0
  %158 = vmatprep.mubr.f32.mxu0 0.0
  %159 = vmatmul.mubr.f32.gmra.mxu0 %v89
  %v160 = vpop.f32.mrf.mxu0
  %v161 = vadd.f32 %v85, %v160
  %v162 = vpop.f32.mrf.mxu0
  %163 = vmatprep.mubr.f32.mxu0 0.0
  %164 = vmatmul.mubr.f32.gmra.mxu0 %v92
  %v165 = vpop.f32.mrf.mxu0
  %v166 = vadd.f32 %v85, %v165
  %v167 = vpop.f32.mrf.mxu0
  %168 = vdwg.mxu0
  %v169 = vmul.f32 %v161, 0.5
  %v170 = vmul.f32 %v166, 0.5
  %v171 = vmul.f32 %v161, 0.70710677
  %v172 = vmul.f32 %v166, 0.70710677
  %vm173 = vcmp.ge.f32.partialorder %v171, 0.0
  %vm174 = vcmp.ge.f32.partialorder %v172, 0.0
  %v175 = vsel %vm173, 1.0, -1.0
  %v176 = vsel %vm174, 1.0, -1.0
  %v177 = vand.u32 2147483647, %v171
  %v178 = vand.u32 2147483647, %v172
  %v179 = vmul.f32 %v177, 0.3275911
  %v180 = vmul.f32 %v178, 0.3275911
  %v181 = vadd.f32 %v179, 1.0
  %v182 = vadd.f32 %v180, 1.0
  %v183 = vrcp.pop %v181
  %v184 = vmul.f32 1.0, %v183
  %v185 = vrcp.pop %v182
  %v186 = vmul.f32 1.0, %v185
  %v187 = vmul.f32 %v184, 1.0614054
  %v188 = vmul.f32 %v186, 1.0614054
  %v189 = vadd.f32 %v187, -1.4531521
  %v190 = vadd.f32 %v188, -1.4531521
  %v191 = vmul.f32 %v189, %v184
  %v192 = vmul.f32 %v190, %v186
  %v193 = vadd.f32 %v191, 1.4214138
  %v194 = vadd.f32 %v192, 1.4214138
  %v195 = vmul.f32 %v193, %v184
  %v196 = vmul.f32 %v194, %v186
  %v197 = vadd.f32 %v195, -0.28449672
  %v198 = vadd.f32 %v196, -0.28449672
  %v199 = vmul.f32 %v197, %v184
  %v200 = vmul.f32 %v198, %v186
  %v201 = vadd.f32 %v199, 0.2548296
  %v202 = vadd.f32 %v200, 0.2548296
  %v203 = vmul.f32 %v201, %v184
  %v204 = vmul.f32 %v202, %v186
  %v205 = vsub.f32 0.0, %v177
  %v206 = vsub.f32 0.0, %v178
  %v207 = vmul.f32 %v205, %v177
  %v208 = vmul.f32 %v206, %v178
  %v209 = vmul.f32 %v207, 1.442695
  %v210 = vpow.pop %v209
  %v211 = vmul.f32 %v208, 1.442695
  %v212 = vpow.pop %v211
  %v213 = vmul.f32 %v203, %v210
  %v214 = vmul.f32 %v204, %v212
  %v215 = vsub.f32 1.0, %v213
  %v216 = vsub.f32 1.0, %v214
  %v217 = vmul.f32 %v175, %v215
  %v218 = vmul.f32 %v176, %v216
  %v219 = vadd.f32 %v217, 1.0
  %v220 = vadd.f32 %v218, 1.0
  %v221 = vmul.f32 %v169, %v219
  %v222 = vmul.f32 %v170, %v220
  %223 = vst [vmem:[%s5] sm:$0xff] %v221
  %224 = vst [vmem:[%s5 + $0x8] sm:$0xff] %v222
  // Predicated region
  $region26: #{unet_forward.68} parent=0 // pred_check
    _
  $region27: #{unet_forward.68} parent=0 // pred_check_branch
    %226 = sbr.rel (0) target = $region29
  $region28: #{unet_forward.68} parent=0 // pred_region
    _
  $region29: #{unet_forward.68} parent=0 // pred_fallthru
    _
  // Predicated region
  $region30: #{unet_forward.68} parent=0 // pred_check
    _
  $region31: #{unet_forward.68} parent=0 // pred_check_branch
    %228 = sbr.rel (0) target = $region33
  $region32: #{unet_forward.68} parent=0 // pred_region
    _
  $region33: #{unet_forward.68} parent=0 // pred_fallthru
    _

// kernel: unet_forward.67
$region0: #{unet_forward.67}
  #allocation0 [shape = 'u32[]', space=smem, size = 0x4, offset = 0x4, fixed_abs, tag = 'smem constant byte address 0x4 - core index']
  #allocation1 [shape = 'u32[144,128]{1,0:T(1,128)}', space=vmem, size = 0x12000, scoped, tag = 'internal scratch']
  #allocation2 [shape = 'f32[16,32]{1,0:T(8,128)}', space=vmem, size = 0x2000, scoped, tag = 'scratch operand']
  %s0 = inlined_call_operand.vmem [shape: f32[16,32], index: 0, kind: input, shape index: {}]
  %s1 = inlined_call_operand.vmem [shape: f32[32,32], index: 1, kind: input, shape index: {}]
  %s2 = inlined_call_operand.vmem [shape: f32[1,32], index: 2, kind: input, shape index: {}]
  %s3 = inlined_call_operand.vmem [shape: f32[16,32], index: 3, kind: input, shape index: {}]
  %s4 = inlined_call_operand.vmem [shape: f32[16,32], index: 4, kind: output, shape index: {}]
  %s5 = sld [smem:[#allocation0]]
  $region34: #{unet_forward.67} parent=0
    _
  %s7 = ssub.s32 1, %s5
  %s8 = scalar_select 0, %s7, %s5
  // Predicated region
  $region2: #{unet_forward.67} parent=0 // pred_check
    _
  $region3: #{unet_forward.67} parent=0 // pred_check_branch
    %10 = sbr.rel (0) target = $region5
  $region4: #{unet_forward.67} parent=0 // pred_region
    _
  $region5: #{unet_forward.67} parent=0 // pred_fallthru
    _
  // Predicated region
  $region6: #{unet_forward.67} parent=0 // pred_check
    _
  $region7: #{unet_forward.67} parent=0 // pred_check_branch
    %12 = sbr.rel (0) target = $region9
  $region8: #{unet_forward.67} parent=0 // pred_region
    _
  $region9: #{unet_forward.67} parent=0 // pred_fallthru
    _
  // Predicated region
  $region10: #{unet_forward.67} parent=0 // pred_check
    _
  $region11: #{unet_forward.67} parent=0 // pred_check_branch
    %14 = sbr.rel (0) target = $region13
  $region12: #{unet_forward.67} parent=0 // pred_region
    _
  $region13: #{unet_forward.67} parent=0 // pred_fallthru
    _
  // Predicated region
  $region14: #{unet_forward.67} parent=0 // pred_check
    _
  $region15: #{unet_forward.67} parent=0 // pred_check_branch
    %16 = sbr.rel (0) target = $region17
  $region16: #{unet_forward.67} parent=0 // pred_region
    _
  $region17: #{unet_forward.67} parent=0 // pred_fallthru
    _
  %p17 = scmp.eq.s32.totalorder 0, 0
  // Predicated region
  $region18: #{unet_forward.67} parent=0 // pred_check
    %p18 = pneg %p17
  $region19: #{unet_forward.67} parent=0 // pred_check_branch
    %20 = sbr.rel (%p18) target = $region21
  $region20: #{unet_forward.67} parent=0 // pred_region
    %vm21 = vcmask 261120
    %22 = vst.msk [vmem:[#allocation2] sm:$0xff] %vm21, 0.0
    %23 = vst.msk [vmem:[#allocation2 + $0x8] sm:$0xff] %vm21, 0.0
  $region21: #{unet_forward.67} parent=0 // pred_fallthru
    _
  %v24 = vld [vmem:[#allocation2] sm:$0xff]
  %v25 = vld [vmem:[#allocation2 + $0x8] sm:$0xff]
  %v26 = vld [vmem:[%s0] sm:$0xff]
  %v27 = vld [vmem:[%s0 + $0x8] sm:$0xff]
  %v28 = vld [vmem:[%s1] sm:$0xff]
  %v29 = vld [vmem:[%s1 + $0x8] sm:$0xff]
  %v30 = vld [vmem:[%s1 + $0x10] sm:$0xff]
  %v31 = vld [vmem:[%s1 + $0x18] sm:$0xff]
  %vm32 = vcmask 261120
  %v34 = vsel %vm32, %v26, 0
  %v37 = vsel %vm32, %v27, 0
  %39 = vmatprep.subr.mxu0 0.0
  %40 = vmatpush1.msra.mxu0 0.0
  %41 = vmatprep.subr.mxu0 0.0
  %42 = vmatpush1.msra.mxu0 0.0
  %43 = vmatprep.subr.mxu0 0.0
  %44 = vmatpush1.msra.mxu0 0.0
  %45 = vmatprep.subr.mxu0 0.0
  %46 = vmatpush1.msra.mxu0 0.0
  %47 = vmatprep.subr.mxu0 0.0
  %48 = vmatpush1.msra.mxu0 0.0
  %49 = vmatprep.subr.mxu0 0.0
  %50 = vmatpush1.msra.mxu0 0.0
  %51 = vmatprep.subr.mxu0 0.0
  %52 = vmatpush1.msra.mxu0 0.0
  %53 = vmatprep.subr.mxu0 0.0
  %54 = vmatpush1.msra.mxu0 0.0
  %55 = vmatprep.subr.mxu0 0.0
  %56 = vmatpush1.msra.mxu0 0.0
  %57 = vmatprep.subr.mxu0 0.0
  %58 = vmatpush1.msra.mxu0 0.0
  %59 = vmatprep.subr.mxu0 0.0
  %60 = vmatpush1.msra.mxu0 0.0
  %61 = vmatprep.subr.mxu0 0.0
  %62 = vmatpush1.msra.mxu0 0.0
  %63 = vmatprep.subr.mxu0 0.0
  %64 = vmatpush1.msra.mxu0 %v31
  %65 = vmatprep.subr.mxu0 0.0
  %66 = vmatpush1.msra.mxu0 %v30
  %67 = vmatprep.subr.mxu0 0.0
  %68 = vmatpush1.msra.mxu0 %v29
  %69 = vmatprep.subr.mxu0 0.0
  %70 = vmatpush1.msra.mxu0 %v28
  %71 = vmatprep.subr.mxu0 0.0
  %72 = vmatpush2.msra.mxu0 0.0
  %73 = vmatprep.subr.mxu0 0.0
  %74 = vmatpush2.msra.mxu0 0.0
  %75 = vmatprep.subr.mxu0 0.0
  %76 = vmatpush2.msra.mxu0 0.0
  %77 = vmatprep.subr.mxu0 0.0
  %78 = vmatpush2.msra.mxu0 0.0
  %79 = vmatprep.subr.mxu0 0.0
  %80 = vmatpush2.msra.mxu0 0.0
  %81 = vmatprep.subr.mxu0 0.0
  %82 = vmatpush2.msra.mxu0 0.0
  %83 = vmatprep.subr.mxu0 0.0
  %84 = vmatpush2.msra.mxu0 0.0
  %85 = vmatprep.subr.mxu0 0.0
  %86 = vmatpush2.msra.mxu0 0.0
  %87 = vmatprep.subr.mxu0 0.0
  %88 = vmatpush2.msra.mxu0 0.0
  %89 = vmatprep.subr.mxu0 0.0
  %90 = vmatpush2.msra.mxu0 0.0
  %91 = vmatprep.subr.mxu0 0.0
  %92 = vmatpush2.msra.mxu0 0.0
  %93 = vmatprep.subr.mxu0 0.0
  %94 = vmatpush2.msra.mxu0 0.0
  %95 = vmatprep.subr.mxu0 0.0
  %96 = vmatpush2.msra.mxu0 0.0
  %97 = vmatprep.subr.mxu0 0.0
  %98 = vmatpush2.msra.mxu0 0.0
  %99 = vmatprep.subr.mxu0 0.0
  %100 = vmatpush2.msra.mxu0 0.0
  %101 = vmatprep.subr.mxu0 0.0
  %102 = vmatpush2.msra.mxu0 0.0
  %103 = vmatprep.mubr.f32.mxu0 0.0
  %104 = vmatmul.mubr.f32.gmra.mxu0 %v34
  %v105 = vpop.f32.mrf.mxu0
  %v106 = vadd.f32 0.0, %v105
  %v107 = vpop.f32.mrf.mxu0
  %108 = vmatprep.mubr.f32.mxu0 0.0
  %109 = vmatmul.mubr.f32.gmra.mxu0 %v37
  %v110 = vpop.f32.mrf.mxu0
  %v111 = vadd.f32 0.0, %v110
  %v112 = vpop.f32.mrf.mxu0
  %113 = vdwg.mxu0
  %v114 = vadd.f32 %v24, %v106
  %v115 = vadd.f32 %v25, %v111
  %116 = vst.msk [vmem:[#allocation2] sm:$0xff] %vm32, %v114
  %117 = vst.msk [vmem:[#allocation2 + $0x8] sm:$0xff] %vm32, %v115
  // Predicated region
  $region22: #{unet_forward.67} parent=0 // pred_check
    %p118 = pneg %p17
  $region23: #{unet_forward.67} parent=0 // pred_check_branch
    %120 = sbr.rel (%p118) target = $region25
  $region24: #{unet_forward.67} parent=0 // pred_region
    %v121 = vld [vmem:[#allocation2] sm:$0xff]
    %v122 = vld [vmem:[#allocation2 + $0x8] sm:$0xff]
    %v123 = vld [vmem:[%s2] sm:$0x1]
    %v125 = vlaneseq
    %v126 = vshrl.u32 %v125, 7
    %v127 = vsub.s32 0, %v126
    %v128 = vrot.slane %v123, %v127
    %v130 = vadd.f32 %v121, %v128
    %v131 = vadd.f32 %v122, %v128
    %v132 = vld [vmem:[%s3] sm:$0xff]
    %v133 = vld [vmem:[%s3 + $0x8] sm:$0xff]
    %v134 = vadd.f32 %v130, %v132
    %v135 = vadd.f32 %v131, %v133
    %136 = vst.msk [vmem:[%s4] sm:$0xff] %vm32, %v134
    %137 = vst.msk [vmem:[%s4 + $0x8] sm:$0xff] %vm32, %v135
  $region25: #{unet_forward.67} parent=0 // pred_fallthru
    _
  // Predicated region
  $region26: #{unet_forward.67} parent=0 // pred_check
    _
  $region27: #{unet_forward.67} parent=0 // pred_check_branch
    %139 = sbr.rel (0) target = $region29
  $region28: #{unet_forward.67} parent=0 // pred_region
    _
  $region29: #{unet_forward.67} parent=0 // pred_fallthru
    _
  // Predicated region
  $region30: #{unet_forward.67} parent=0 // pred_check
    _
  $region31: #{unet_forward.67} parent=0 // pred_check_branch
    %141 = sbr.rel (0) target = $region33
  $region32: #{unet_forward.67} parent=0 // pred_region
    _
  $region33: #{unet_forward.67} parent=0 // pred_fallthru
    _

// kernel: unet_forward.65
$region0: #{unet_forward.65}
  #allocation0 [shape = 'u32[]', space=smem, size = 0x4, offset = 0x4, fixed_abs, tag = 'smem constant byte address 0x4 - core index']
  #allocation1 [shape = 'u32[144,128]{1,0:T(1,128)}', space=vmem, size = 0x12000, scoped, tag = 'internal scratch']
  #allocation2 [shape = 'f32[16,32]{1,0:T(8,128)}', space=vmem, size = 0x2000, scoped, tag = 'scratch operand']
  %s0 = inlined_call_operand.vmem [shape: f32[16,32], index: 0, kind: input, shape index: {}]
  %s1 = inlined_call_operand.vmem [shape: f32[1,32], index: 1, kind: input, shape index: {}]
  %s2 = inlined_call_operand.vmem [shape: f32[1,32], index: 2, kind: input, shape index: {}]
  %s3 = inlined_call_operand.vmem [shape: f32[32,96], index: 3, kind: input, shape index: {}]
  %s4 = inlined_call_operand.vmem [shape: f32[1,96], index: 4, kind: input, shape index: {}]
  %s5 = inlined_call_operand.vmem [shape: f32[16,96], index: 5, kind: output, shape index: {}]
  %s6 = sld [smem:[#allocation0]]
  $region34: #{unet_forward.65} parent=0
    _
  %s8 = ssub.s32 1, %s6
  %s9 = scalar_select 0, %s8, %s6
  // Predicated region
  $region2: #{unet_forward.65} parent=0 // pred_check
    _
  $region3: #{unet_forward.65} parent=0 // pred_check_branch
    %11 = sbr.rel (0) target = $region5
  $region4: #{unet_forward.65} parent=0 // pred_region
    _
  $region5: #{unet_forward.65} parent=0 // pred_fallthru
    _
  // Predicated region
  $region6: #{unet_forward.65} parent=0 // pred_check
    _
  $region7: #{unet_forward.65} parent=0 // pred_check_branch
    %13 = sbr.rel (0) target = $region9
  $region8: #{unet_forward.65} parent=0 // pred_region
    _
  $region9: #{unet_forward.65} parent=0 // pred_fallthru
    _
  // Predicated region
  $region10: #{unet_forward.65} parent=0 // pred_check
    _
  $region11: #{unet_forward.65} parent=0 // pred_check_branch
    %15 = sbr.rel (0) target = $region13
  $region12: #{unet_forward.65} parent=0 // pred_region
    _
  $region13: #{unet_forward.65} parent=0 // pred_fallthru
    _
  // Predicated region
  $region14: #{unet_forward.65} parent=0 // pred_check
    _
  $region15: #{unet_forward.65} parent=0 // pred_check_branch
    %17 = sbr.rel (0) target = $region17
  $region16: #{unet_forward.65} parent=0 // pred_region
    _
  $region17: #{unet_forward.65} parent=0 // pred_fallthru
    _
  // Predicated region
  $region18: #{unet_forward.65} parent=0 // pred_check
    _
  $region19: #{unet_forward.65} parent=0 // pred_check_branch
    %19 = sbr.rel (0) target = $region21
  $region20: #{unet_forward.65} parent=0 // pred_region
    _
  $region21: #{unet_forward.65} parent=0 // pred_fallthru
    _
  %p20 = scmp.eq.s32.totalorder 0, 0
  // Predicated region
  $region22: #{unet_forward.65} parent=0 // pred_check
    %p21 = pneg %p20
  $region23: #{unet_forward.65} parent=0 // pred_check_branch
    %23 = sbr.rel (%p21) target = $region25
  $region24: #{unet_forward.65} parent=0 // pred_region
    %v24 = vld [vmem:[%s0] sm:$0xff]
    %v25 = vld [vmem:[%s0 + $0x8] sm:$0xff]
    %v26 = vld [vmem:[%s1] sm:$0x1]
    %v27 = vld [vmem:[%s2] sm:$0x1]
    %vm28 = vcmask 261120
    %v29 = vsel %vm28, %v24, 0.0
    %30 = vadd.xlane.f32.xlu0 %v29
    %v31 = vpop.xlane.xlu0 %30
    %v32 = vsel %vm28, %v25, 0.0
    %33 = vadd.xlane.f32.xlu0 %v32
    %v34 = vpop.xlane.xlu0 %33
    %v35 = vrcp.pop 32.0
    %v36 = vmul.f32 %v31, %v35
    %v37 = vmul.f32 %v34, %v35
    %v38 = vsub.f32 %v24, %v36
    %v39 = vsub.f32 %v25, %v37
    %v40 = vmul.f32 %v38, %v38
    %v41 = vmul.f32 %v39, %v39
    %v42 = vsel %vm28, %v40, 0.0
    %43 = vadd.xlane.f32.xlu0 %v42
    %v44 = vpop.xlane.xlu0 %43
    %v45 = vsel %vm28, %v41, 0.0
    %46 = vadd.xlane.f32.xlu0 %v45
    %v47 = vpop.xlane.xlu0 %46
    %v48 = vmul.f32 %v44, %v35
    %v49 = vmul.f32 %v47, %v35
    %v50 = vadd.f32 %v48, 1e-12
    %v51 = vadd.f32 %v49, 1e-12
    %v52 = vrsqrt.pop %v50
    %v53 = vrsqrt.pop %v51
    %v54 = vmul.f32 %v38, %v52
    %v55 = vmul.f32 %v39, %v53
    %v57 = vlaneseq
    %v58 = vshrl.u32 %v57, 7
    %v59 = vsub.s32 0, %v58
    %v60 = vrot.slane %v26, %v59
    %v62 = vmul.f32 %v54, %v60
    %v63 = vmul.f32 %v55, %v60
    %v65 = vlaneseq
    %v66 = vshrl.u32 %v65, 7
    %v67 = vsub.s32 0, %v66
    %v68 = vrot.slane %v27, %v67
    %v70 = vadd.f32 %v62, %v68
    %v71 = vadd.f32 %v63, %v68
    %72 = vst.msk [vmem:[#allocation2] sm:$0xff] %vm28, %v70
    %73 = vst.msk [vmem:[#allocation2 + $0x8] sm:$0xff] %vm28, %v71
  $region25: #{unet_forward.65} parent=0 // pred_fallthru
    _
  %v74 = vld [vmem:[#allocation2] sm:$0xff]
  %v75 = vld [vmem:[#allocation2 + $0x8] sm:$0xff]
  %v76 = vld [vmem:[%s3] sm:$0xff]
  %v77 = vld [vmem:[%s3 + $0x8] sm:$0xff]
  %v78 = vld [vmem:[%s3 + $0x10] sm:$0xff]
  %v79 = vld [vmem:[%s3 + $0x18] sm:$0xff]
  %v80 = vld [vmem:[%s4] sm:$0x1]
  %v82 = vlaneseq
  %v83 = vshrl.u32 %v82, 7
  %v84 = vsub.s32 0, %v83
  %v85 = vrot.slane %v80, %v84
  %vm87 = vcmask 261120
  %v89 = vsel %vm87, %v74, 0
  %v92 = vsel %vm87, %v75, 0
  %94 = vmatprep.subr.mxu0 0.0
  %95 = vmatpush1.msra.mxu0 0.0
  %96 = vmatprep.subr.mxu0 0.0
  %97 = vmatpush1.msra.mxu0 0.0
  %98 = vmatprep.subr.mxu0 0.0
  %99 = vmatpush1.msra.mxu0 0.0
  %100 = vmatprep.subr.mxu0 0.0
  %101 = vmatpush1.msra.mxu0 0.0
  %102 = vmatprep.subr.mxu0 0.0
  %103 = vmatpush1.msra.mxu0 0.0
  %104 = vmatprep.subr.mxu0 0.0
  %105 = vmatpush1.msra.mxu0 0.0
  %106 = vmatprep.subr.mxu0 0.0
  %107 = vmatpush1.msra.mxu0 0.0
  %108 = vmatprep.subr.mxu0 0.0
  %109 = vmatpush1.msra.mxu0 0.0
  %110 = vmatprep.subr.mxu0 0.0
  %111 = vmatpush1.msra.mxu0 0.0
  %112 = vmatprep.subr.mxu0 0.0
  %113 = vmatpush1.msra.mxu0 0.0
  %114 = vmatprep.subr.mxu0 0.0
  %115 = vmatpush1.msra.mxu0 0.0
  %116 = vmatprep.subr.mxu0 0.0
  %117 = vmatpush1.msra.mxu0 0.0
  %118 = vmatprep.subr.mxu0 0.0
  %119 = vmatpush1.msra.mxu0 %v79
  %120 = vmatprep.subr.mxu0 0.0
  %121 = vmatpush1.msra.mxu0 %v78
  %122 = vmatprep.subr.mxu0 0.0
  %123 = vmatpush1.msra.mxu0 %v77
  %124 = vmatprep.subr.mxu0 0.0
  %125 = vmatpush1.msra.mxu0 %v76
  %126 = vmatprep.subr.mxu0 0.0
  %127 = vmatpush2.msra.mxu0 0.0
  %128 = vmatprep.subr.mxu0 0.0
  %129 = vmatpush2.msra.mxu0 0.0
  %130 = vmatprep.subr.mxu0 0.0
  %131 = vmatpush2.msra.mxu0 0.0
  %132 = vmatprep.subr.mxu0 0.0
  %133 = vmatpush2.msra.mxu0 0.0
  %134 = vmatprep.subr.mxu0 0.0
  %135 = vmatpush2.msra.mxu0 0.0
  %136 = vmatprep.subr.mxu0 0.0
  %137 = vmatpush2.msra.mxu0 0.0
  %138 = vmatprep.subr.mxu0 0.0
  %139 = vmatpush2.msra.mxu0 0.0
  %140 = vmatprep.subr.mxu0 0.0
  %141 = vmatpush2.msra.mxu0 0.0
  %142 = vmatprep.subr.mxu0 0.0
  %143 = vmatpush2.msra.mxu0 0.0
  %144 = vmatprep.subr.mxu0 0.0
  %145 = vmatpush2.msra.mxu0 0.0
  %146 = vmatprep.subr.mxu0 0.0
  %147 = vmatpush2.msra.mxu0 0.0
  %148 = vmatprep.subr.mxu0 0.0
  %149 = vmatpush2.msra.mxu0 0.0
  %150 = vmatprep.subr.mxu0 0.0
  %151 = vmatpush2.msra.mxu0 0.0
  %152 = vmatprep.subr.mxu0 0.0
  %153 = vmatpush2.msra.mxu0 0.0
  %154 = vmatprep.subr.mxu0 0.0
  %155 = vmatpush2.msra.mxu0 0.0
  %156 = vmatprep.subr.mxu0 0.0
  %157 = vmatpush2.msra.mxu0 0.0
  %158 = vmatprep.mubr.f32.mxu0 0.0
  %159 = vmatmul.mubr.f32.gmra.mxu0 %v89
  %v160 = vpop.f32.mrf.mxu0
  %v161 = vadd.f32 %v85, %v160
  %v162 = vpop.f32.mrf.mxu0
  %163 = vmatprep.mubr.f32.mxu0 0.0
  %164 = vmatmul.mubr.f32.gmra.mxu0 %v92
  %v165 = vpop.f32.mrf.mxu0
  %v166 = vadd.f32 %v85, %v165
  %v167 = vpop.f32.mrf.mxu0
  %168 = vdwg.mxu0
  %vm169 = vcmask 785408
  %170 = vst.msk [vmem:[%s5] sm:$0xff] %vm169, %v161
  %171 = vst.msk [vmem:[%s5 + $0x8] sm:$0xff] %vm169, %v166
  // Predicated region
  $region26: #{unet_forward.65} parent=0 // pred_check
    _
  $region27: #{unet_forward.65} parent=0 // pred_check_branch
    %173 = sbr.rel (0) target = $region29
  $region28: #{unet_forward.65} parent=0 // pred_region
    _
  $region29: #{unet_forward.65} parent=0 // pred_fallthru
    _
  // Predicated region
  $region30: #{unet_forward.65} parent=0 // pred_check
    _
  $region31: #{unet_forward.65} parent=0 // pred_check_branch
    %175 = sbr.rel (0) target = $region33
  $region32: #{unet_forward.65} parent=0 // pred_region
    _
  $region33: #{unet_forward.65} parent=0 // pred_fallthru
    _

// kernel: unet_forward.66
$region0: #{unet_forward.66}
  #allocation0 [shape = 'u32[]', space=smem, size = 0x4, offset = 0x4, fixed_abs, tag = 'smem constant byte address 0x4 - core index']
  #allocation1 [shape = 'u32[144,128]{1,0:T(1,128)}', space=vmem, size = 0x12000, scoped, tag = 'internal scratch']
  #allocation2 [shape = 'f32[4,8,1]{2,1,0:T(8,128)}', space=vmem, size = 0x4000, scoped, tag = 'scratch operand']
  #allocation3 [shape = 'f32[4,8,1]{2,1,0:T(8,128)}', space=vmem, size = 0x4000, scoped, tag = 'scratch operand']
  #allocation4 [shape = 'f32[4,8,8]{2,1,0:T(8,128)}', space=vmem, size = 0x4000, scoped, tag = 'scratch operand']
  %s0 = inlined_call_operand.vmem [shape: f32[2,4,8,8], index: 0, kind: input, shape index: {}]
  %s1 = inlined_call_operand.vmem [shape: f32[2,4,8,8], index: 1, kind: input, shape index: {}]
  %s2 = inlined_call_operand.vmem [shape: f32[2,4,8,8], index: 2, kind: input, shape index: {}]
  %s3 = inlined_call_operand.vmem [shape: f32[4,1,1], index: 3, kind: input, shape index: {}]
  %s4 = inlined_call_operand.vmem [shape: f32[2,4,8,8], index: 4, kind: output, shape index: {}]
  %s5 = sld [smem:[#allocation0]]
  $region61: #{unet_forward.66} parent=0
    _
  %s7 = ssub.s32 1, %s5
  %s8 = scalar_select 0, %s7, %s5
  loop: start=0, step=1, limit=4
  $region2: #{unet_forward.66} parent=0 // loop_pre_header
    _
  $region3: #{unet_forward.66} parent=0 // loop_header
    %s10 = sphi 0, %s14
    %p11 = scmp.ge.s32.totalorder %s10, 4
    %s17 = sphi 0, %s36
    %s18 = sphi 0, %s32
    %s19 = sphi 0, %s28
    %s20 = sphi 0, %s17
    %s21 = sphi 0, %s18
    %s22 = sphi 0, %s19
    %s23 = sphi 0, %s20
    %s24 = sphi 0, %s21
    %s25 = sphi 0, %s22
    %s41 = sphi 0, %s43
    %s44 = sphi 0, %s41
    %s45 = sphi 0, %s44
    %s61 = sphi 0, %s45
    %s69 = sphi 0, %s71
    %s72 = sphi 0, %s69
    %s73 = sphi 0, %s72
    %s89 = sphi 0, %s73
    %s97 = sphi 0, %s99
    %s100 = sphi 0, %s97
    %s101 = sphi 0, %s100
    %s117 = sphi 0, %s101
    %s121 = sphi 0, %s121
    %s123 = sphi 0, %s121
    %s124 = sphi 0, %s123
    %s138 = sphi 0, %s124
    %s146 = sphi 0, %s148
    %s149 = sphi 0, %s146
    %s150 = sphi 0, %s149
    %s166 = sphi 0, %s150
  $region4: #{unet_forward.66} parent=0 // loop_header_branch
    %13 = sbr.rel (%p11) target = $region8
  $region5: #{unet_forward.66} parent=0 // loop_body
    %s15 = ssub.s32 %s10, 1
    %s16 = ssub.s32 %s10, 2
    %s26 = sadd.s32 1, %s19
    %p27 = scmp.ge.s32.totalorder %s26, 1
    %s28 = scalar_select %p27, 0, %s26
    %s29 = sadd.s32 1, %s18
    %s30 = scalar_select %p27, %s29, %s18
    %p31 = scmp.ge.s32.totalorder %s30, 1
    %s32 = scalar_select %p31, 0, %s30
    %s33 = sadd.s32 1, %s17
    %s34 = scalar_select %p31, %s33, %s17
    %p35 = scmp.ge.s32.totalorder %s34, 2
    %s36 = scalar_select %p35, 0, %s34
    %s37 = ssub.s32 %s17, %s36
    %s38 = ssub.s32 %s18, %s32
    %s39 = sor.u32 %s37, %s38
    %p40 = scmp.eq.s32.totalorder %s39, 0
    %s42 = sadd.s32 %s41, 1
    %s43 = scalar_select %p40, %s41, %s42
    %p46 = pneg %p40
    %p47 = scmp.eq.s32.totalorder %s10, 1
    %p48 = por %p46, %p47
    %p49 = scmp.ne.s32.totalorder %s41, %s44
    %p50 = scmp.eq.s32.totalorder %s10, 0
    %p51 = por %p49, %p50
    %p52 = scmp.ne.s32.totalorder %s41, %s44
    %p53 = scmp.eq.s32.totalorder %s15, 1
    %p54 = por %p52, %p53
    %p55 = scmp.ne.s32.totalorder %s44, %s45
    %p56 = scmp.eq.s32.totalorder %s15, 0
    %p57 = por %p55, %p56
    %p58 = scmp.ne.s32.totalorder %s44, %s45
    %p59 = scmp.eq.s32.totalorder %s16, 1
    %p60 = por %p58, %p59
    %p62 = scmp.ne.s32.totalorder %s45, %s61
    %p63 = scmp.eq.s32.totalorder %s16, 0
    %p64 = por %p62, %p63
    %s65 = ssub.s32 %s17, %s36
    %s66 = ssub.s32 %s19, %s28
    %s67 = sor.u32 %s65, %s66
    %p68 = scmp.eq.s32.totalorder %s67, 0
    %s70 = sadd.s32 %s69, 1
    %s71 = scalar_select %p68, %s69, %s70
    %p74 = pneg %p68
    %p75 = scmp.eq.s32.totalorder %s10, 1
    %p76 = por %p74, %p75
    %p77 = scmp.ne.s32.totalorder %s69, %s72
    %p78 = scmp.eq.s32.totalorder %s10, 0
    %p79 = por %p77, %p78
    %p80 = scmp.ne.s32.totalorder %s69, %s72
    %p81 = scmp.eq.s32.totalorder %s15, 1
    %p82 = por %p80, %p81
    %p83 = scmp.ne.s32.totalorder %s72, %s73
    %p84 = scmp.eq.s32.totalorder %s15, 0
    %p85 = por %p83, %p84
    %p86 = scmp.ne.s32.totalorder %s72, %s73
    %p87 = scmp.eq.s32.totalorder %s16, 1
    %p88 = por %p86, %p87
    %p90 = scmp.ne.s32.totalorder %s73, %s89
    %p91 = scmp.eq.s32.totalorder %s16, 0
    %p92 = por %p90, %p91
    %s93 = ssub.s32 %s17, %s36
    %s94 = ssub.s32 %s19, %s28
    %s95 = sor.u32 %s93, %s94
    %p96 = scmp.eq.s32.totalorder %s95, 0
    %s98 = sadd.s32 %s97, 1
    %s99 = scalar_select %p96, %s97, %s98
    %p102 = pneg %p96
    %p103 = scmp.eq.s32.totalorder %s10, 1
    %p104 = por %p102, %p103
    %p105 = scmp.ne.s32.totalorder %s97, %s100
    %p106 = scmp.eq.s32.totalorder %s10, 0
    %p107 = por %p105, %p106
    %p108 = scmp.ne.s32.totalorder %s97, %s100
    %p109 = scmp.eq.s32.totalorder %s15, 1
    %p110 = por %p108, %p109
    %p111 = scmp.ne.s32.totalorder %s100, %s101
    %p112 = scmp.eq.s32.totalorder %s15, 0
    %p113 = por %p111, %p112
    %p114 = scmp.ne.s32.totalorder %s100, %s101
    %p115 = scmp.eq.s32.totalorder %s16, 1
    %p116 = por %p114, %p115
    %p118 = scmp.ne.s32.totalorder %s101, %s117
    %p119 = scmp.eq.s32.totalorder %s16, 0
    %p120 = por %p118, %p119
    %s122 = sadd.s32 %s121, 1
    %p125 = scmp.eq.s32.totalorder %s10, 1
    %p126 = scmp.ne.s32.totalorder %s121, %s123
    %p127 = scmp.eq.s32.totalorder %s10, 0
    %p128 = por %p126, %p127
    %p129 = scmp.ne.s32.totalorder %s121, %s123
    %p130 = scmp.eq.s32.totalorder %s15, 1
    %p131 = por %p129, %p130
    %p132 = scmp.ne.s32.totalorder %s123, %s124
    %p133 = scmp.eq.s32.totalorder %s15, 0
    %p134 = por %p132, %p133
    %p135 = scmp.ne.s32.totalorder %s123, %s124
    %p136 = scmp.eq.s32.totalorder %s16, 1
    %p137 = por %p135, %p136
    %p139 = scmp.ne.s32.totalorder %s124, %s138
    %p140 = scmp.eq.s32.totalorder %s16, 0
    %p141 = por %p139, %p140
    %s142 = ssub.s32 %s17, %s36
    %s143 = ssub.s32 %s18, %s32
    %s144 = sor.u32 %s142, %s143
    %p145 = scmp.eq.s32.totalorder %s144, 0
    %s147 = sadd.s32 %s146, 1
    %s148 = scalar_select %p145, %s146, %s147
    %p151 = pneg %p145
    %p152 = scmp.eq.s32.totalorder %s10, 1
    %p153 = por %p151, %p152
    %p154 = scmp.ne.s32.totalorder %s146, %s149
    %p155 = scmp.eq.s32.totalorder %s10, 0
    %p156 = por %p154, %p155
    %p157 = scmp.ne.s32.totalorder %s146, %s149
    %p158 = scmp.eq.s32.totalorder %s15, 1
    %p159 = por %p157, %p158
    %p160 = scmp.ne.s32.totalorder %s149, %s150
    %p161 = scmp.eq.s32.totalorder %s15, 0
    %p162 = por %p160, %p161
    %p163 = scmp.ne.s32.totalorder %s149, %s150
    %p164 = scmp.eq.s32.totalorder %s16, 1
    %p165 = por %p163, %p164
    %p167 = scmp.ne.s32.totalorder %s150, %s166
    %p168 = scmp.eq.s32.totalorder %s16, 0
    %p169 = por %p167, %p168
    %p170 = scmp.le.s32.totalorder 1, %s10
    %p171 = scmp.lt.s32.totalorder %s10, 3
    %p172 = pnand %p170, %p171
    %p173 = pneg %p172
    // Predicated region
    $region9: #{unet_forward.66} parent=5 // pred_check
      _
    $region10: #{unet_forward.66} parent=5 // pred_check_branch
      %175 = sbr.rel (%p172) target = $region12
    $region11: #{unet_forward.66} parent=5 // pred_region
      %s176 = ssub.s32 %s10, 1
      // Predicated region
      $region13: #{unet_forward.66} parent=11 // pred_check
        %p177 = pneg %p134
      $region14: #{unet_forward.66} parent=11 // pred_check_branch
        %179 = sbr.rel (%p177) target = $region16
      $region15: #{unet_forward.66} parent=11 // pred_region
        _
      $region16: #{unet_forward.66} parent=11 // pred_fallthru
        _
    $region12: #{unet_forward.66} parent=5 // pred_fallthru
      _
    %p180 = scmp.lt.s32.totalorder %s10, 2
    // Predicated region
    $region17: #{unet_forward.66} parent=5 // pred_check
      %p181 = pneg %p180
    $region18: #{unet_forward.66} parent=5 // pred_check_branch
      %183 = sbr.rel (%p181) target = $region20
    $region19: #{unet_forward.66} parent=5 // pred_region
      // Predicated region
      $region21: #{unet_forward.66} parent=19 // pred_check
        %p184 = pneg %p51
      $region22: #{unet_forward.66} parent=19 // pred_check_branch
        %186 = sbr.rel (%p184) target = $region24
      $region23: #{unet_forward.66} parent=19 // pred_region
        %p187 = scmp.lt.s32.totalorder %s17, 1
        %s188 = scalar_select %p187, %s17, 1
        %p189 = scmp.lt.s32.totalorder %s18, 0
        %s190 = scalar_select %p189, %s18, 0
        %s191 = smul.addr %s188, 4
        %s192 = sadd.s32 %s190, %s191
        %s193 = smul.addr %s192, 8
        %s194 = scalar_lea.vmem %s0, %s193
      $region24: #{unet_forward.66} parent=19 // pred_fallthru
        _
      // Predicated region
      $region25: #{unet_forward.66} parent=19 // pred_check
        %p195 = pneg %p79
      $region26: #{unet_forward.66} parent=19 // pred_check_branch
        %197 = sbr.rel (%p195) target = $region28
      $region27: #{unet_forward.66} parent=19 // pred_region
        %p198 = scmp.lt.s32.totalorder %s17, 1
        %s199 = scalar_select %p198, %s17, 1
        %p200 = scmp.lt.s32.totalorder %s19, 0
        %s201 = scalar_select %p200, %s19, 0
        %s202 = smul.addr %s199, 4
        %s203 = sadd.s32 %s201, %s202
        %s204 = smul.addr %s203, 8
        %s205 = scalar_lea.vmem %s1, %s204
      $region28: #{unet_forward.66} parent=19 // pred_fallthru
        _
      // Predicated region
      $region29: #{unet_forward.66} parent=19 // pred_check
        %p206 = pneg %p107
      $region30: #{unet_forward.66} parent=19 // pred_check_branch
        %208 = sbr.rel (%p206) target = $region32
      $region31: #{unet_forward.66} parent=19 // pred_region
        %p209 = scmp.lt.s32.totalorder %s17, 1
        %s210 = scalar_select %p209, %s17, 1
        %p211 = scmp.lt.s32.totalorder %s19, 0
        %s212 = scalar_select %p211, %s19, 0
        %s213 = smul.addr %s210, 4
        %s214 = sadd.s32 %s212, %s213
        %s215 = smul.addr %s214, 8
        %s216 = scalar_lea.vmem %s2, %s215
      $region32: #{unet_forward.66} parent=19 // pred_fallthru
        _
    $region20: #{unet_forward.66} parent=5 // pred_fallthru
      _
    %p217 = scmp.le.s32.totalorder 1, %s10
    %p218 = scmp.lt.s32.totalorder %s10, 3
    %p219 = pnand %p217, %p218
    %p220 = pneg %p219
    // Predicated region
    $region33: #{unet_forward.66} parent=5 // pred_check
      _
    $region34: #{unet_forward.66} parent=5 // pred_check_branch
      %222 = sbr.rel (%p219) target = $region36
    $region35: #{unet_forward.66} parent=5 // pred_region
      %s223 = ssub.s32 %s10, 1
      %p224 = scmp.lt.s32.totalorder %s20, 1
      %s225 = scalar_select %p224, %s20, 1
      %p226 = scmp.lt.s32.totalorder %s21, 0
      %s227 = scalar_select %p226, %s21, 0
      %s228 = smul.addr %s225, 4
      %s229 = sadd.s32 %s227, %s228
      %s230 = smul.addr %s229, 8
      %s231 = scalar_lea.vmem %s0, %s230
      %p232 = pneg %p57
      %p233 = pneg %p54
      %p234 = scmp.lt.s32.totalorder %s20, 1
      %s235 = scalar_select %p234, %s20, 1
      %p236 = scmp.lt.s32.totalorder %s22, 0
      %s237 = scalar_select %p236, %s22, 0
      %s238 = smul.addr %s235, 4
      %s239 = sadd.s32 %s237, %s238
      %s240 = smul.addr %s239, 8
      %s241 = scalar_lea.vmem %s1, %s240
      %p242 = pneg %p85
      %p243 = pneg %p82
      %p244 = scmp.lt.s32.totalorder %s20, 1
      %s245 = scalar_select %p244, %s20, 1
      %p246 = scmp.lt.s32.totalorder %s22, 0
      %s247 = scalar_select %p246, %s22, 0
      %s248 = smul.addr %s245, 4
      %s249 = sadd.s32 %s247, %s248
      %s250 = smul.addr %s249, 8
      %s251 = scalar_lea.vmem %s2, %s250
      %p252 = pneg %p113
      %p253 = pneg %p110
      %p254 = pneg %p134
      %p255 = pneg %p131
      %p256 = pneg %p162
      %p257 = pneg %p159
      %p258 = scmp.lt.s32.totalorder %s20, 1
      %s259 = scalar_select %p258, %s20, 1
      %p260 = scmp.lt.s32.totalorder %s21, 0
      %s261 = scalar_select %p260, %s21, 0
      %s262 = smul.addr %s259, 4
      %s263 = sadd.s32 %s261, %s262
      %s264 = smul.addr %s263, 8
      %s265 = scalar_lea.vmem %s4, %s264
      %p266 = scmp.lt.s32.totalorder %s20, 1
      %s267 = scalar_select %p266, %s20, 1
      %p268 = scmp.lt.s32.totalorder %s21, 0
      %s269 = scalar_select %p268, %s21, 0
      %s270 = smul.addr %s267, 4
      %s271 = sadd.s32 %s269, %s270
      %s272 = smul.addr %s271, 8
      %s273 = scalar_lea.vmem %s0, %s272
      %p274 = scmp.lt.s32.totalorder %s20, 1
      %s275 = scalar_select %p274, %s20, 1
      %p276 = scmp.lt.s32.totalorder %s22, 0
      %s277 = scalar_select %p276, %s22, 0
      %s278 = smul.addr %s275, 4
      %s279 = sadd.s32 %s277, %s278
      %s280 = smul.addr %s279, 8
      %s281 = scalar_lea.vmem %s1, %s280
      %p282 = scmp.lt.s32.totalorder %s20, 1
      %s283 = scalar_select %p282, %s20, 1
      %p284 = scmp.lt.s32.totalorder %s22, 0
      %s285 = scalar_select %p284, %s22, 0
      %s286 = smul.addr %s283, 4
      %s287 = sadd.s32 %s285, %s286
      %s288 = smul.addr %s287, 8
      %s289 = scalar_lea.vmem %s2, %s288
      %p290 = scmp.lt.s32.totalorder %s20, 1
      %s291 = scalar_select %p290, %s20, 1
      %p292 = scmp.lt.s32.totalorder %s21, 0
      %s293 = scalar_select %p292, %s21, 0
      %s294 = smul.addr %s291, 4
      %s295 = sadd.s32 %s293, %s294
      %s296 = smul.addr %s295, 8
      %s297 = scalar_lea.vmem %s4, %s296
      %p298 = scmp.eq.s32.totalorder %s22, 0
      // Predicated region
      $region37: #{unet_forward.66} parent=35 // pred_check
        %p299 = pneg %p298
      $region38: #{unet_forward.66} parent=35 // pred_check_branch
        %301 = sbr.rel (%p299) target = $region40
      $region39: #{unet_forward.66} parent=35 // pred_region
        %vm302 = vcmask 7168
        %303 = vst.msk [vmem:[#allocation2] sm:$0xff] %vm302, -inf
        %304 = vst.msk [vmem:[#allocation2 + $0x8] sm:$0xff] %vm302, -inf
        %305 = vst.msk [vmem:[#allocation2 + $0x10] sm:$0xff] %vm302, -inf
        %306 = vst.msk [vmem:[#allocation2 + $0x18] sm:$0xff] %vm302, -inf
        %307 = vst.msk [vmem:[#allocation3] sm:$0xff] %vm302, 0.0
        %308 = vst.msk [vmem:[#allocation3 + $0x8] sm:$0xff] %vm302, 0.0
        %309 = vst.msk [vmem:[#allocation3 + $0x10] sm:$0xff] %vm302, 0.0
        %310 = vst.msk [vmem:[#allocation3 + $0x18] sm:$0xff] %vm302, 0.0
        %vm311 = vcmask 64512
        %312 = vst.msk [vmem:[#allocation4] sm:$0xff] %vm311, 0.0
        %313 = vst.msk [vmem:[#allocation4 + $0x8] sm:$0xff] %vm311, 0.0
        %314 = vst.msk [vmem:[#allocation4 + $0x10] sm:$0xff] %vm311, 0.0
        %315 = vst.msk [vmem:[#allocation4 + $0x18] sm:$0xff] %vm311, 0.0
      $region40: #{unet_forward.66} parent=35 // pred_fallthru
        _
      %s316 = smul.u32 %s22, 8
      %s317 = sadd.s32 %s21, 1
      %s318 = smul.u32 %s317, 8
      %p319 = scmp.lt.s32.totalorder %s316, %s318
      // Predicated region
      $region41: #{unet_forward.66} parent=35 // pred_check
        %p320 = pneg %p319
      $region42: #{unet_forward.66} parent=35 // pred_check_branch
        %322 = sbr.rel (%p320) target = $region44
      $region43: #{unet_forward.66} parent=35 // pred_region
        %v323 = vld [vmem:[%s273] sm:$0xff]
        %v324 = vld [vmem:[%s273 + $0x8] sm:$0xff]
        %v325 = vld [vmem:[%s273 + $0x10] sm:$0xff]
        %v326 = vld [vmem:[%s273 + $0x18] sm:$0xff]
        %v327 = vmul.f32 %v323, 0.35355338
        %v328 = vmul.f32 %v324, 0.35355338
        %v329 = vmul.f32 %v325, 0.35355338
        %v330 = vmul.f32 %v326, 0.35355338
        %v331 = vld [vmem:[%s281] sm:$0xff]
        %v332 = vld [vmem:[%s281 + $0x8] sm:$0xff]
        %v333 = vld [vmem:[%s281 + $0x10] sm:$0xff]
        %v334 = vld [vmem:[%s281 + $0x18] sm:$0xff]
        %v335 = vld [vmem:[%s289] sm:$0xff]
        %v336 = vld [vmem:[%s289 + $0x8] sm:$0xff]
        %v337 = vld [vmem:[%s289 + $0x10] sm:$0xff]
        %v338 = vld [vmem:[%s289 + $0x18] sm:$0xff]
        %s339 = smul.u32 %s21, 8
        %v340 = vlaneseq
        %v341 = vshrl.u32 %v340, 7
        %v342 = vstv %s339
        %v343 = vadd.s32 %v342, %v341
        %v344 = vlaneseq
        %v345 = vand.u32 %v344, 127
        %v346 = vstv %s316
        %v347 = vadd.s32 %v346, %v345
        %vm348 = vcmp.gt.s32.totalorder %v347, %v343
        %v349 = vsel %vm348, -10000.0, 0.0
        %vm350 = vcmask 64512
        %v352 = vsel %vm350, %v327, 0
        %v355 = vsel %vm350, %v331, 0
        %357 = vmatprep.subr.mxu0 0.0
        %358 = vmatpush1.xpose.msra.mxu0 0.0
        %359 = vmatprep.subr.mxu0 0.0
        %360 = vmatpush1.xpose.msra.mxu0 0.0
        %361 = vmatprep.subr.mxu0 0.0
        %362 = vmatpush1.xpose.msra.mxu0 0.0
        %363 = vmatprep.subr.mxu0 0.0
        %364 = vmatpush1.xpose.msra.mxu0 0.0
        %365 = vmatprep.subr.mxu0 0.0
        %366 = vmatpush1.xpose.msra.mxu0 0.0
        %367 = vmatprep.subr.mxu0 0.0
        %368 = vmatpush1.xpose.msra.mxu0 0.0
        %369 = vmatprep.subr.mxu0 0.0
        %370 = vmatpush1.xpose.msra.mxu0 0.0
        %371 = vmatprep.subr.mxu0 0.0
        %372 = vmatpush1.xpose.msra.mxu0 0.0
        %373 = vmatprep.subr.mxu0 0.0
        %374 = vmatpush1.xpose.msra.mxu0 0.0
        %375 = vmatprep.subr.mxu0 0.0
        %376 = vmatpush1.xpose.msra.mxu0 0.0
        %377 = vmatprep.subr.mxu0 0.0
        %378 = vmatpush1.xpose.msra.mxu0 0.0
        %379 = vmatprep.subr.mxu0 0.0
        %380 = vmatpush1.xpose.msra.mxu0 0.0
        %381 = vmatprep.subr.mxu0 0.0
        %382 = vmatpush1.xpose.msra.mxu0 0.0
        %383 = vmatprep.subr.mxu0 0.0
        %384 = vmatpush1.xpose.msra.mxu0 0.0
        %385 = vmatprep.subr.mxu0 0.0
        %386 = vmatpush1.xpose.msra.mxu0 0.0
        %387 = vmatprep.subr.mxu0 0.0
        %388 = vmatpush1.xpose.msra.mxu0 %v355
        %389 = vmatprep.subr.mxu0 0.0
        %390 = vmatpush2.xpose.msra.mxu0 0.0
        %391 = vmatprep.subr.mxu0 0.0
        %392 = vmatpush2.xpose.msra.mxu0 0.0
        %393 = vmatprep.subr.mxu0 0.0
        %394 = vmatpush2.xpose.msra.mxu0 0.0
        %395 = vmatprep.subr.mxu0 0.0
        %396 = vmatpush2.xpose.msra.mxu0 0.0
        %397 = vmatprep.subr.mxu0 0.0
        %398 = vmatpush2.xpose.msra.mxu0 0.0
        %399 = vmatprep.subr.mxu0 0.0
        %400 = vmatpush2.xpose.msra.mxu0 0.0
        %401 = vmatprep.subr.mxu0 0.0
        %402 = vmatpush2.xpose.msra.mxu0 0.0
        %403 = vmatprep.subr.mxu0 0.0
        %404 = vmatpush2.xpose.msra.mxu0 0.0
        %405 = vmatprep.subr.mxu0 0.0
        %406 = vmatpush2.xpose.msra.mxu0 0.0
        %407 = vmatprep.subr.mxu0 0.0
        %408 = vmatpush2.xpose.msra.mxu0 0.0
        %409 = vmatprep.subr.mxu0 0.0
        %410 = vmatpush2.xpose.msra.mxu0 0.0
        %411 = vmatprep.subr.mxu0 0.0
        %412 = vmatpush2.xpose.msra.mxu0 0.0
        %413 = vmatprep.subr.mxu0 0.0
        %414 = vmatpush2.xpose.msra.mxu0 0.0
        %415 = vmatprep.subr.mxu0 0.0
        %416 = vmatpush2.xpose.msra.mxu0 0.0
        %417 = vmatprep.subr.mxu0 0.0
        %418 = vmatpush2.xpose.msra.mxu0 0.0
        %419 = vmatprep.subr.mxu0 0.0
        %420 = vmatpush2.xpose.msra.mxu0 0.0
        %421 = vmatprep.mubr.f32.mxu0 0.0
        %422 = vmatmul.mubr.f32.gmra.mxu0 %v352
        %v423 = vpop.f32.mrf.mxu0
        %v424 = vadd.f32 %v349, %v423
        %v425 = vpop.f32.mrf.mxu0
        %426 = vdwg.mxu0
        %v428 = vsel %vm350, %v328, 0
        %v431 = vsel %vm350, %v332, 0
        %433 = vmatprep.subr.mxu0 0.0
        %434 = vmatpush1.xpose.msra.mxu0 0.0
        %435 = vmatprep.subr.mxu0 0.0
        %436 = vmatpush1.xpose.msra.mxu0 0.0
        %437 = vmatprep.subr.mxu0 0.0
        %438 = vmatpush1.xpose.msra.mxu0 0.0
        %439 = vmatprep.subr.mxu0 0.0
        %440 = vmatpush1.xpose.msra.mxu0 0.0
        %441 = vmatprep.subr.mxu0 0.0
        %442 = vmatpush1.xpose.msra.mxu0 0.0
        %443 = vmatprep.subr.mxu0 0.0
        %444 = vmatpush1.xpose.msra.mxu0 0.0
        %445 = vmatprep.subr.mxu0 0.0
        %446 = vmatpush1.xpose.msra.mxu0 0.0
        %447 = vmatprep.subr.mxu0 0.0
        %448 = vmatpush1.xpose.msra.mxu0 0.0
        %449 = vmatprep.subr.mxu0 0.0
        %450 = vmatpush1.xpose.msra.mxu0 0.0
        %451 = vmatprep.subr.mxu0 0.0
        %452 = vmatpush1.xpose.msra.mxu0 0.0
        %453 = vmatprep.subr.mxu0 0.0
        %454 = vmatpush1.xpose.msra.mxu0 0.0
        %455 = vmatprep.subr.mxu0 0.0
        %456 = vmatpush1.xpose.msra.mxu0 0.0
        %457 = vmatprep.subr.mxu0 0.0
        %458 = vmatpush1.xpose.msra.mxu0 0.0
        %459 = vmatprep.subr.mxu0 0.0
        %460 = vmatpush1.xpose.msra.mxu0 0.0
        %461 = vmatprep.subr.mxu0 0.0
        %462 = vmatpush1.xpose.msra.mxu0 0.0
        %463 = vmatprep.subr.mxu0 0.0
        %464 = vmatpush1.xpose.msra.mxu0 %v431
        %465 = vmatprep.subr.mxu0 0.0
        %466 = vmatpush2.xpose.msra.mxu0 0.0
        %467 = vmatprep.subr.mxu0 0.0
        %468 = vmatpush2.xpose.msra.mxu0 0.0
        %469 = vmatprep.subr.mxu0 0.0
        %470 = vmatpush2.xpose.msra.mxu0 0.0
        %471 = vmatprep.subr.mxu0 0.0
        %472 = vmatpush2.xpose.msra.mxu0 0.0
        %473 = vmatprep.subr.mxu0 0.0
        %474 = vmatpush2.xpose.msra.mxu0 0.0
        %475 = vmatprep.subr.mxu0 0.0
        %476 = vmatpush2.xpose.msra.mxu0 0.0
        %477 = vmatprep.subr.mxu0 0.0
        %478 = vmatpush2.xpose.msra.mxu0 0.0
        %479 = vmatprep.subr.mxu0 0.0
        %480 = vmatpush2.xpose.msra.mxu0 0.0
        %481 = vmatprep.subr.mxu0 0.0
        %482 = vmatpush2.xpose.msra.mxu0 0.0
        %483 = vmatprep.subr.mxu0 0.0
        %484 = vmatpush2.xpose.msra.mxu0 0.0
        %485 = vmatprep.subr.mxu0 0.0
        %486 = vmatpush2.xpose.msra.mxu0 0.0
        %487 = vmatprep.subr.mxu0 0.0
        %488 = vmatpush2.xpose.msra.mxu0 0.0
        %489 = vmatprep.subr.mxu0 0.0
        %490 = vmatpush2.xpose.msra.mxu0 0.0
        %491 = vmatprep.subr.mxu0 0.0
        %492 = vmatpush2.xpose.msra.mxu0 0.0
        %493 = vmatprep.subr.mxu0 0.0
        %494 = vmatpush2.xpose.msra.mxu0 0.0
        %495 = vmatprep.subr.mxu0 0.0
        %496 = vmatpush2.xpose.msra.mxu0 0.0
        %497 = vmatprep.mubr.f32.mxu0 0.0
        %498 = vmatmul.mubr.f32.gmra.mxu0 %v428
        %v499 = vpop.f32.mrf.mxu0
        %v500 = vadd.f32 %v349, %v499
        %v501 = vpop.f32.mrf.mxu0
        %502 = vdwg.mxu0
        %v504 = vsel %vm350, %v329, 0
        %v507 = vsel %vm350, %v333, 0
        %509 = vmatprep.subr.mxu0 0.0
        %510 = vmatpush1.xpose.msra.mxu0 0.0
        %511 = vmatprep.subr.mxu0 0.0
        %512 = vmatpush1.xpose.msra.mxu0 0.0
        %513 = vmatprep.subr.mxu0 0.0
        %514 = vmatpush1.xpose.msra.mxu0 0.0
        %515 = vmatprep.subr.mxu0 0.0
        %516 = vmatpush1.xpose.msra.mxu0 0.0
        %517 = vmatprep.subr.mxu0 0.0
        %518 = vmatpush1.xpose.msra.mxu0 0.0
        %519 = vmatprep.subr.mxu0 0.0
        %520 = vmatpush1.xpose.msra.mxu0 0.0
        %521 = vmatprep.subr.mxu0 0.0
        %522 = vmatpush1.xpose.msra.mxu0 0.0
        %523 = vmatprep.subr.mxu0 0.0
        %524 = vmatpush1.xpose.msra.mxu0 0.0
        %525 = vmatprep.subr.mxu0 0.0
        %526 = vmatpush1.xpose.msra.mxu0 0.0
        %527 = vmatprep.subr.mxu0 0.0
        %528 = vmatpush1.xpose.msra.mxu0 0.0
        %529 = vmatprep.subr.mxu0 0.0
        %530 = vmatpush1.xpose.msra.mxu0 0.0
        %531 = vmatprep.subr.mxu0 0.0
        %532 = vmatpush1.xpose.msra.mxu0 0.0
        %533 = vmatprep.subr.mxu0 0.0
        %534 = vmatpush1.xpose.msra.mxu0 0.0
        %535 = vmatprep.subr.mxu0 0.0
        %536 = vmatpush1.xpose.msra.mxu0 0.0
        %537 = vmatprep.subr.mxu0 0.0
        %538 = vmatpush1.xpose.msra.mxu0 0.0
        %539 = vmatprep.subr.mxu0 0.0
        %540 = vmatpush1.xpose.msra.mxu0 %v507
        %541 = vmatprep.subr.mxu0 0.0
        %542 = vmatpush2.xpose.msra.mxu0 0.0
        %543 = vmatprep.subr.mxu0 0.0
        %544 = vmatpush2.xpose.msra.mxu0 0.0
        %545 = vmatprep.subr.mxu0 0.0
        %546 = vmatpush2.xpose.msra.mxu0 0.0
        %547 = vmatprep.subr.mxu0 0.0
        %548 = vmatpush2.xpose.msra.mxu0 0.0
        %549 = vmatprep.subr.mxu0 0.0
        %550 = vmatpush2.xpose.msra.mxu0 0.0
        %551 = vmatprep.subr.mxu0 0.0
        %552 = vmatpush2.xpose.msra.mxu0 0.0
        %553 = vmatprep.subr.mxu0 0.0
        %554 = vmatpush2.xpose.msra.mxu0 0.0
        %555 = vmatprep.subr.mxu0 0.0
        %556 = vmatpush2.xpose.msra.mxu0 0.0
        %557 = vmatprep.subr.mxu0 0.0
        %558 = vmatpush2.xpose.msra.mxu0 0.0
        %559 = vmatprep.subr.mxu0 0.0
        %560 = vmatpush2.xpose.msra.mxu0 0.0
        %561 = vmatprep.subr.mxu0 0.0
        %562 = vmatpush2.xpose.msra.mxu0 0.0
        %563 = vmatprep.subr.mxu0 0.0
        %564 = vmatpush2.xpose.msra.mxu0 0.0
        %565 = vmatprep.subr.mxu0 0.0
        %566 = vmatpush2.xpose.msra.mxu0 0.0
        %567 = vmatprep.subr.mxu0 0.0
        %568 = vmatpush2.xpose.msra.mxu0 0.0
        %569 = vmatprep.subr.mxu0 0.0
        %570 = vmatpush2.xpose.msra.mxu0 0.0
        %571 = vmatprep.subr.mxu0 0.0
        %572 = vmatpush2.xpose.msra.mxu0 0.0
        %573 = vmatprep.mubr.f32.mxu0 0.0
        %574 = vmatmul.mubr.f32.gmra.mxu0 %v504
        %v575 = vpop.f32.mrf.mxu0
        %v576 = vadd.f32 %v349, %v575
        %v577 = vpop.f32.mrf.mxu0
        %578 = vdwg.mxu0
        %v580 = vsel %vm350, %v330, 0
        %v583 = vsel %vm350, %v334, 0
        %585 = vmatprep.subr.mxu0 0.0
        %586 = vmatpush1.xpose.msra.mxu0 0.0
        %587 = vmatprep.subr.mxu0 0.0
        %588 = vmatpush1.xpose.msra.mxu0 0.0
        %589 = vmatprep.subr.mxu0 0.0
        %590 = vmatpush1.xpose.msra.mxu0 0.0
        %591 = vmatprep.subr.mxu0 0.0
        %592 = vmatpush1.xpose.msra.mxu0 0.0
        %593 = vmatprep.subr.mxu0 0.0
        %594 = vmatpush1.xpose.msra.mxu0 0.0
        %595 = vmatprep.subr.mxu0 0.0
        %596 = vmatpush1.xpose.msra.mxu0 0.0
        %597 = vmatprep.subr.mxu0 0.0
        %598 = vmatpush1.xpose.msra.mxu0 0.0
        %599 = vmatprep.subr.mxu0 0.0
        %600 = vmatpush1.xpose.msra.mxu0 0.0
        %601 = vmatprep.subr.mxu0 0.0
        %602 = vmatpush1.xpose.msra.mxu0 0.0
        %603 = vmatprep.subr.mxu0 0.0
        %604 = vmatpush1.xpose.msra.mxu0 0.0
        %605 = vmatprep.subr.mxu0 0.0
        %606 = vmatpush1.xpose.msra.mxu0 0.0
        %607 = vmatprep.subr.mxu0 0.0
        %608 = vmatpush1.xpose.msra.mxu0 0.0
        %609 = vmatprep.subr.mxu0 0.0
        %610 = vmatpush1.xpose.msra.mxu0 0.0
        %611 = vmatprep.subr.mxu0 0.0
        %612 = vmatpush1.xpose.msra.mxu0 0.0
        %613 = vmatprep.subr.mxu0 0.0
        %614 = vmatpush1.xpose.msra.mxu0 0.0
        %615 = vmatprep.subr.mxu0 0.0
        %616 = vmatpush1.xpose.msra.mxu0 %v583
        %617 = vmatprep.subr.mxu0 0.0
        %618 = vmatpush2.xpose.msra.mxu0 0.0
        %619 = vmatprep.subr.mxu0 0.0
        %620 = vmatpush2.xpose.msra.mxu0 0.0
        %621 = vmatprep.subr.mxu0 0.0
        %622 = vmatpush2.xpose.msra.mxu0 0.0
        %623 = vmatprep.subr.mxu0 0.0
        %624 = vmatpush2.xpose.msra.mxu0 0.0
        %625 = vmatprep.subr.mxu0 0.0
        %626 = vmatpush2.xpose.msra.mxu0 0.0
        %627 = vmatprep.subr.mxu0 0.0
        %628 = vmatpush2.xpose.msra.mxu0 0.0
        %629 = vmatprep.subr.mxu0 0.0
        %630 = vmatpush2.xpose.msra.mxu0 0.0
        %631 = vmatprep.subr.mxu0 0.0
        %632 = vmatpush2.xpose.msra.mxu0 0.0
        %633 = vmatprep.subr.mxu0 0.0
        %634 = vmatpush2.xpose.msra.mxu0 0.0
        %635 = vmatprep.subr.mxu0 0.0
        %636 = vmatpush2.xpose.msra.mxu0 0.0
        %637 = vmatprep.subr.mxu0 0.0
        %638 = vmatpush2.xpose.msra.mxu0 0.0
        %639 = vmatprep.subr.mxu0 0.0
        %640 = vmatpush2.xpose.msra.mxu0 0.0
        %641 = vmatprep.subr.mxu0 0.0
        %642 = vmatpush2.xpose.msra.mxu0 0.0
        %643 = vmatprep.subr.mxu0 0.0
        %644 = vmatpush2.xpose.msra.mxu0 0.0
        %645 = vmatprep.subr.mxu0 0.0
        %646 = vmatpush2.xpose.msra.mxu0 0.0
        %647 = vmatprep.subr.mxu0 0.0
        %648 = vmatpush2.xpose.msra.mxu0 0.0
        %649 = vmatprep.mubr.f32.mxu0 0.0
        %650 = vmatmul.mubr.f32.gmra.mxu0 %v580
        %v651 = vpop.f32.mrf.mxu0
        %v652 = vadd.f32 %v349, %v651
        %v653 = vpop.f32.mrf.mxu0
        %654 = vdwg.mxu0
        %v655 = vld [vmem:[#allocation2] sm:$0xff]
        %v656 = vld [vmem:[#allocation2 + $0x8] sm:$0xff]
        %v657 = vld [vmem:[#allocation2 + $0x10] sm:$0xff]
        %v658 = vld [vmem:[#allocation2 + $0x18] sm:$0xff]
        %v659 = vsel %vm350, %v424, -inf
        %660 = vmax.xlane.f32.xlu0 %v659
        %v661 = vpop.xlane.xlu0 %660
        %v662 = vsel %vm350, %v500, -inf
        %663 = vmax.xlane.f32.xlu0 %v662
        %v664 = vpop.xlane.xlu0 %663
        %v665 = vsel %vm350, %v576, -inf
        %666 = vmax.xlane.f32.xlu0 %v665
        %v667 = vpop.xlane.xlu0 %666
        %v668 = vsel %vm350, %v652, -inf
        %669 = vmax.xlane.f32.xlu0 %v668
        %v670 = vpop.xlane.xlu0 %669
        %v671 = vmax.f32 %v655, %v661
        %v672 = vmax.f32 %v656, %v664
        %v673 = vmax.f32 %v657, %v667
        %v674 = vmax.f32 %v658, %v670
        %v675 = vsub.f32 %v655, %v671
        %v676 = vsub.f32 %v656, %v672
        %v677 = vsub.f32 %v657, %v673
        %v678 = vsub.f32 %v658, %v674
        %v679 = vmul.f32 %v675, 1.442695
        %v680 = vpow.pop %v679
        %v681 = vmul.f32 %v676, 1.442695
        %v682 = vpow.pop %v681
        %v683 = vmul.f32 %v677, 1.442695
        %v684 = vpow.pop %v683
        %v685 = vmul.f32 %v678, 1.442695
        %v686 = vpow.pop %v685
        %688 = vset.pattern.permute.xlu0 0
        %689 = vperm.xlu0 %688, %v671
        %v690 = vpop.permute.xlu0 %689
        %693 = vset.pattern.permute.xlu0 0
        %694 = vperm.xlu0 %693, %v672
        %v695 = vpop.permute.xlu0 %694
        %698 = vset.pattern.permute.xlu0 0
        %699 = vperm.xlu0 %698, %v673
        %v700 = vpop.permute.xlu0 %699
        %703 = vset.pattern.permute.xlu0 0
        %704 = vperm.xlu0 %703, %v674
        %v705 = vpop.permute.xlu0 %704
        %v707 = vsub.f32 %v424, %v690
        %v708 = vsub.f32 %v500, %v695
        %v709 = vsub.f32 %v576, %v700
        %v710 = vsub.f32 %v652, %v705
        %v711 = vmul.f32 %v707, 1.442695
        %v712 = vpow.pop %v711
        %v713 = vmul.f32 %v708, 1.442695
        %v714 = vpow.pop %v713
        %v715 = vmul.f32 %v709, 1.442695
        %v716 = vpow.pop %v715
        %v717 = vmul.f32 %v710, 1.442695
        %v718 = vpow.pop %v717
        %v719 = vld [vmem:[#allocation3] sm:$0xff]
        %v720 = vld [vmem:[#allocation3 + $0x8] sm:$0xff]
        %v721 = vld [vmem:[#allocation3 + $0x10] sm:$0xff]
        %v722 = vld [vmem:[#allocation3 + $0x18] sm:$0xff]
        %v723 = vmul.f32 %v680, %v719
        %v724 = vmul.f32 %v682, %v720
        %v725 = vmul.f32 %v684, %v721
        %v726 = vmul.f32 %v686, %v722
        %v727 = vsel %vm350, %v712, 0.0
        %728 = vadd.xlane.f32.xlu0 %v727
        %v729 = vpop.xlane.xlu0 %728
        %v730 = vsel %vm350, %v714, 0.0
        %731 = vadd.xlane.f32.xlu0 %v730
        %v732 = vpop.xlane.xlu0 %731
        %v733 = vsel %vm350, %v716, 0.0
        %734 = vadd.xlane.f32.xlu0 %v733
        %v735 = vpop.xlane.xlu0 %734
        %v736 = vsel %vm350, %v718, 0.0
        %737 = vadd.xlane.f32.xlu0 %v736
        %v738 = vpop.xlane.xlu0 %737
        %v739 = vadd.f32 %v723, %v729
        %v740 = vadd.f32 %v724, %v732
        %v741 = vadd.f32 %v725, %v735
        %v742 = vadd.f32 %v726, %v738
        %vm743 = vcmask 7168
        %744 = vst.msk [vmem:[#allocation3] sm:$0xff] %vm743, %v739
        %745 = vst.msk [vmem:[#allocation3 + $0x8] sm:$0xff] %vm743, %v740
        %746 = vst.msk [vmem:[#allocation3 + $0x10] sm:$0xff] %vm743, %v741
        %747 = vst.msk [vmem:[#allocation3 + $0x18] sm:$0xff] %vm743, %v742
        %v748 = vld [vmem:[#allocation4] sm:$0xff]
        %v749 = vld [vmem:[#allocation4 + $0x8] sm:$0xff]
        %v750 = vld [vmem:[#allocation4 + $0x10] sm:$0xff]
        %v751 = vld [vmem:[#allocation4 + $0x18] sm:$0xff]
        %753 = vset.pattern.permute.xlu0 0
        %754 = vperm.xlu0 %753, %v680
        %v755 = vpop.permute.xlu0 %754
        %758 = vset.pattern.permute.xlu0 0
        %759 = vperm.xlu0 %758, %v682
        %v760 = vpop.permute.xlu0 %759
        %763 = vset.pattern.permute.xlu0 0
        %764 = vperm.xlu0 %763, %v684
        %v765 = vpop.permute.xlu0 %764
        %768 = vset.pattern.permute.xlu0 0
        %769 = vperm.xlu0 %768, %v686
        %v770 = vpop.permute.xlu0 %769
        %v772 = vmul.f32 %v755, %v748
        %v773 = vmul.f32 %v760, %v749
        %v774 = vmul.f32 %v765, %v750
        %v775 = vmul.f32 %v770, %v751
        %v777 = vsel %vm350, %v712, 0
        %779 = vmatprep.subr.mxu0 0.0
        %780 = vmatpush1.msra.mxu0 0.0
        %781 = vmatprep.subr.mxu0 0.0
        %782 = vmatpush1.msra.mxu0 0.0
        %783 = vmatprep.subr.mxu0 0.0
        %784 = vmatpush1.msra.mxu0 0.0
        %785 = vmatprep.subr.mxu0 0.0
        %786 = vmatpush1.msra.mxu0 0.0
        %787 = vmatprep.subr.mxu0 0.0
        %788 = vmatpush1.msra.mxu0 0.0
        %789 = vmatprep.subr.mxu0 0.0
        %790 = vmatpush1.msra.mxu0 0.0
        %791 = vmatprep.subr.mxu0 0.0
        %792 = vmatpush1.msra.mxu0 0.0
        %793 = vmatprep.subr.mxu0 0.0
        %794 = vmatpush1.msra.mxu0 0.0
        %795 = vmatprep.subr.mxu0 0.0
        %796 = vmatpush1.msra.mxu0 0.0
        %797 = vmatprep.subr.mxu0 0.0
        %798 = vmatpush1.msra.mxu0 0.0
        %799 = vmatprep.subr.mxu0 0.0
        %800 = vmatpush1.msra.mxu0 0.0
        %801 = vmatprep.subr.mxu0 0.0
        %802 = vmatpush1.msra.mxu0 0.0
        %803 = vmatprep.subr.mxu0 0.0
        %804 = vmatpush1.msra.mxu0 0.0
        %805 = vmatprep.subr.mxu0 0.0
        %806 = vmatpush1.msra.mxu0 0.0
        %807 = vmatprep.subr.mxu0 0.0
        %808 = vmatpush1.msra.mxu0 0.0
        %809 = vmatprep.subr.mxu0 0.0
        %810 = vmatpush1.msra.mxu0 %v335
        %811 = vmatprep.subr.mxu0 0.0
        %812 = vmatpush2.msra.mxu0 0.0
        %813 = vmatprep.subr.mxu0 0.0
        %814 = vmatpush2.msra.mxu0 0.0
        %815 = vmatprep.subr.mxu0 0.0
        %816 = vmatpush2.msra.mxu0 0.0
        %817 = vmatprep.subr.mxu0 0.0
        %818 = vmatpush2.msra.mxu0 0.0
        %819 = vmatprep.subr.mxu0 0.0
        %820 = vmatpush2.msra.mxu0 0.0
        %821 = vmatprep.subr.mxu0 0.0
        %822 = vmatpush2.msra.mxu0 0.0
        %823 = vmatprep.subr.mxu0 0.0
        %824 = vmatpush2.msra.mxu0 0.0
        %825 = vmatprep.subr.mxu0 0.0
        %826 = vmatpush2.msra.mxu0 0.0
        %827 = vmatprep.subr.mxu0 0.0
        %828 = vmatpush2.msra.mxu0 0.0
        %829 = vmatprep.subr.mxu0 0.0
        %830 = vmatpush2.msra.mxu0 0.0
        %831 = vmatprep.subr.mxu0 0.0
        %832 = vmatpush2.msra.mxu0 0.0
        %833 = vmatprep.subr.mxu0 0.0
        %834 = vmatpush2.msra.mxu0 0.0
        %835 = vmatprep.subr.mxu0 0.0
        %836 = vmatpush2.msra.mxu0 0.0
        %837 = vmatprep.subr.mxu0 0.0
        %838 = vmatpush2.msra.mxu0 0.0
        %839 = vmatprep.subr.mxu0 0.0
        %840 = vmatpush2.msra.mxu0 0.0
        %841 = vmatprep.subr.mxu0 0.0
        %842 = vmatpush2.msra.mxu0 0.0
        %843 = vmatprep.mubr.f32.mxu0 0.0
        %844 = vmatmul.mubr.f32.gmra.mxu0 %v777
        %v845 = vpop.f32.mrf.mxu0
        %v846 = vadd.f32 0.0, %v845
        %v847 = vpop.f32.mrf.mxu0
        %848 = vdwg.mxu0
        %v850 = vsel %vm350, %v714, 0
        %852 = vmatprep.subr.mxu0 0.0
        %853 = vmatpush1.msra.mxu0 0.0
        %854 = vmatprep.subr.mxu0 0.0
        %855 = vmatpush1.msra.mxu0 0.0
        %856 = vmatprep.subr.mxu0 0.0
        %857 = vmatpush1.msra.mxu0 0.0
        %858 = vmatprep.subr.mxu0 0.0
        %859 = vmatpush1.msra.mxu0 0.0
        %860 = vmatprep.subr.mxu0 0.0
        %861 = vmatpush1.msra.mxu0 0.0
        %862 = vmatprep.subr.mxu0 0.0
        %863 = vmatpush1.msra.mxu0 0.0
        %864 = vmatprep.subr.mxu0 0.0
        %865 = vmatpush1.msra.mxu0 0.0
        %866 = vmatprep.subr.mxu0 0.0
        %867 = vmatpush1.msra.mxu0 0.0
        %868 = vmatprep.subr.mxu0 0.0
        %869 = vmatpush1.msra.mxu0 0.0
        %870 = vmatprep.subr.mxu0 0.0
        %871 = vmatpush1.msra.mxu0 0.0
        %872 = vmatprep.subr.mxu0 0.0
        %873 = vmatpush1.msra.mxu0 0.0
        %874 = vmatprep.subr.mxu0 0.0
        %875 = vmatpush1.msra.mxu0 0.0
        %876 = vmatprep.subr.mxu0 0.0
        %877 = vmatpush1.msra.mxu0 0.0
        %878 = vmatprep.subr.mxu0 0.0
        %879 = vmatpush1.msra.mxu0 0.0
        %880 = vmatprep.subr.mxu0 0.0
        %881 = vmatpush1.msra.mxu0 0.0
        %882 = vmatprep.subr.mxu0 0.0
        %883 = vmatpush1.msra.mxu0 %v336
        %884 = vmatprep.subr.mxu0 0.0
        %885 = vmatpush2.msra.mxu0 0.0
        %886 = vmatprep.subr.mxu0 0.0
        %887 = vmatpush2.msra.mxu0 0.0
        %888 = vmatprep.subr.mxu0 0.0
        %889 = vmatpush2.msra.mxu0 0.0
        %890 = vmatprep.subr.mxu0 0.0
        %891 = vmatpush2.msra.mxu0 0.0
        %892 = vmatprep.subr.mxu0 0.0
        %893 = vmatpush2.msra.mxu0 0.0
        %894 = vmatprep.subr.mxu0 0.0
        %895 = vmatpush2.msra.mxu0 0.0
        %896 = vmatprep.subr.mxu0 0.0
        %897 = vmatpush2.msra.mxu0 0.0
        %898 = vmatprep.subr.mxu0 0.0
        %899 = vmatpush2.msra.mxu0 0.0
        %900 = vmatprep.subr.mxu0 0.0
        %901 = vmatpush2.msra.mxu0 0.0
        %902 = vmatprep.subr.mxu0 0.0
        %903 = vmatpush2.msra.mxu0 0.0
        %904 = vmatprep.subr.mxu0 0.0
        %905 = vmatpush2.msra.mxu0 0.0
        %906 = vmatprep.subr.mxu0 0.0
        %907 = vmatpush2.msra.mxu0 0.0
        %908 = vmatprep.subr.mxu0 0.0
        %909 = vmatpush2.msra.mxu0 0.0
        %910 = vmatprep.subr.mxu0 0.0
        %911 = vmatpush2.msra.mxu0 0.0
        %912 = vmatprep.subr.mxu0 0.0
        %913 = vmatpush2.msra.mxu0 0.0
        %914 = vmatprep.subr.mxu0 0.0
        %915 = vmatpush2.msra.mxu0 0.0
        %916 = vmatprep.mubr.f32.mxu0 0.0
        %917 = vmatmul.mubr.f32.gmra.mxu0 %v850
        %v918 = vpop.f32.mrf.mxu0
        %v919 = vadd.f32 0.0, %v918
        %v920 = vpop.f32.mrf.mxu0
        %921 = vdwg.mxu0
        %v923 = vsel %vm350, %v716, 0
        %925 = vmatprep.subr.mxu0 0.0
        %926 = vmatpush1.msra.mxu0 0.0
        %927 = vmatprep.subr.mxu0 0.0
        %928 = vmatpush1.msra.mxu0 0.0
        %929 = vmatprep.subr.mxu0 0.0
        %930 = vmatpush1.msra.mxu0 0.0
        %931 = vmatprep.subr.mxu0 0.0
        %932 = vmatpush1.msra.mxu0 0.0
        %933 = vmatprep.subr.mxu0 0.0
        %934 = vmatpush1.msra.mxu0 0.0
        %935 = vmatprep.subr.mxu0 0.0
        %936 = vmatpush1.msra.mxu0 0.0
        %937 = vmatprep.subr.mxu0 0.0
        %938 = vmatpush1.msra.mxu0 0.0
        %939 = vmatprep.subr.mxu0 0.0
        %940 = vmatpush1.msra.mxu0 0.0
        %941 = vmatprep.subr.mxu0 0.0
        %942 = vmatpush1.msra.mxu0 0.0
        %943 = vmatprep.subr.mxu0 0.0
        %944 = vmatpush1.msra.mxu0 0.0
        %945 = vmatprep.subr.mxu0 0.0
        %946 = vmatpush1.msra.mxu0 0.0
        %947 = vmatprep.subr.mxu0 0.0
        %948 = vmatpush1.msra.mxu0 0.0
        %949 = vmatprep.subr.mxu0 0.0
        %950 = vmatpush1.msra.mxu0 0.0
        %951 = vmatprep.subr.mxu0 0.0
        %952 = vmatpush1.msra.mxu0 0.0
        %953 = vmatprep.subr.mxu0 0.0
        %954 = vmatpush1.msra.mxu0 0.0
        %955 = vmatprep.subr.mxu0 0.0
        %956 = vmatpush1.msra.mxu0 %v337
        %957 = vmatprep.subr.mxu0 0.0
        %958 = vmatpush2.msra.mxu0 0.0
        %959 = vmatprep.subr.mxu0 0.0
        %960 = vmatpush2.msra.mxu0 0.0
        %961 = vmatprep.subr.mxu0 0.0
        %962 = vmatpush2.msra.mxu0 0.0
        %963 = vmatprep.subr.mxu0 0.0
        %964 = vmatpush2.msra.mxu0 0.0
        %965 = vmatprep.subr.mxu0 0.0
        %966 = vmatpush2.msra.mxu0 0.0
        %967 = vmatprep.subr.mxu0 0.0
        %968 = vmatpush2.msra.mxu0 0.0
        %969 = vmatprep.subr.mxu0 0.0
        %970 = vmatpush2.msra.mxu0 0.0
        %971 = vmatprep.subr.mxu0 0.0
        %972 = vmatpush2.msra.mxu0 0.0
        %973 = vmatprep.subr.mxu0 0.0
        %974 = vmatpush2.msra.mxu0 0.0
        %975 = vmatprep.subr.mxu0 0.0
        %976 = vmatpush2.msra.mxu0 0.0
        %977 = vmatprep.subr.mxu0 0.0
        %978 = vmatpush2.msra.mxu0 0.0
        %979 = vmatprep.subr.mxu0 0.0
        %980 = vmatpush2.msra.mxu0 0.0
        %981 = vmatprep.subr.mxu0 0.0
        %982 = vmatpush2.msra.mxu0 0.0
        %983 = vmatprep.subr.mxu0 0.0
        %984 = vmatpush2.msra.mxu0 0.0
        %985 = vmatprep.subr.mxu0 0.0
        %986 = vmatpush2.msra.mxu0 0.0
        %987 = vmatprep.subr.mxu0 0.0
        %988 = vmatpush2.msra.mxu0 0.0
        %989 = vmatprep.mubr.f32.mxu0 0.0
        %990 = vmatmul.mubr.f32.gmra.mxu0 %v923
        %v991 = vpop.f32.mrf.mxu0
        %v992 = vadd.f32 0.0, %v991
        %v993 = vpop.f32.mrf.mxu0
        %994 = vdwg.mxu0
        %v996 = vsel %vm350, %v718, 0
        %998 = vmatprep.subr.mxu0 0.0
        %999 = vmatpush1.msra.mxu0 0.0
        %1000 = vmatprep.subr.mxu0 0.0
        %1001 = vmatpush1.msra.mxu0 0.0
        %1002 = vmatprep.subr.mxu0 0.0
        %1003 = vmatpush1.msra.mxu0 0.0
        %1004 = vmatprep.subr.mxu0 0.0
        %1005 = vmatpush1.msra.mxu0 0.0
        %1006 = vmatprep.subr.mxu0 0.0
        %1007 = vmatpush1.msra.mxu0 0.0
        %1008 = vmatprep.subr.mxu0 0.0
        %1009 = vmatpush1.msra.mxu0 0.0
        %1010 = vmatprep.subr.mxu0 0.0
        %1011 = vmatpush1.msra.mxu0 0.0
        %1012 = vmatprep.subr.mxu0 0.0
        %1013 = vmatpush1.msra.mxu0 0.0
        %1014 = vmatprep.subr.mxu0 0.0
        %1015 = vmatpush1.msra.mxu0 0.0
        %1016 = vmatprep.subr.mxu0 0.0
        %1017 = vmatpush1.msra.mxu0 0.0
        %1018 = vmatprep.subr.mxu0 0.0
        %1019 = vmatpush1.msra.mxu0 0.0
        %1020 = vmatprep.subr.mxu0 0.0
        %1021 = vmatpush1.msra.mxu0 0.0
        %1022 = vmatprep.subr.mxu0 0.0
        %1023 = vmatpush1.msra.mxu0 0.0
        %1024 = vmatprep.subr.mxu0 0.0
        %1025 = vmatpush1.msra.mxu0 0.0
        %1026 = vmatprep.subr.mxu0 0.0
        %1027 = vmatpush1.msra.mxu0 0.0
        %1028 = vmatprep.subr.mxu0 0.0
        %1029 = vmatpush1.msra.mxu0 %v338
        %1030 = vmatprep.subr.mxu0 0.0
        %1031 = vmatpush2.msra.mxu0 0.0
        %1032 = vmatprep.subr.mxu0 0.0
        %1033 = vmatpush2.msra.mxu0 0.0
        %1034 = vmatprep.subr.mxu0 0.0
        %1035 = vmatpush2.msra.mxu0 0.0
        %1036 = vmatprep.subr.mxu0 0.0
        %1037 = vmatpush2.msra.mxu0 0.0
        %1038 = vmatprep.subr.mxu0 0.0
        %1039 = vmatpush2.msra.mxu0 0.0
        %1040 = vmatprep.subr.mxu0 0.0
        %1041 = vmatpush2.msra.mxu0 0.0
        %1042 = vmatprep.subr.mxu0 0.0
        %1043 = vmatpush2.msra.mxu0 0.0
        %1044 = vmatprep.subr.mxu0 0.0
        %1045 = vmatpush2.msra.mxu0 0.0
        %1046 = vmatprep.subr.mxu0 0.0
        %1047 = vmatpush2.msra.mxu0 0.0
        %1048 = vmatprep.subr.mxu0 0.0
        %1049 = vmatpush2.msra.mxu0 0.0
        %1050 = vmatprep.subr.mxu0 0.0
        %1051 = vmatpush2.msra.mxu0 0.0
        %1052 = vmatprep.subr.mxu0 0.0
        %1053 = vmatpush2.msra.mxu0 0.0
        %1054 = vmatprep.subr.mxu0 0.0
        %1055 = vmatpush2.msra.mxu0 0.0
        %1056 = vmatprep.subr.mxu0 0.0
        %1057 = vmatpush2.msra.mxu0 0.0
        %1058 = vmatprep.subr.mxu0 0.0
        %1059 = vmatpush2.msra.mxu0 0.0
        %1060 = vmatprep.subr.mxu0 0.0
        %1061 = vmatpush2.msra.mxu0 0.0
        %1062 = vmatprep.mubr.f32.mxu0 0.0
        %1063 = vmatmul.mubr.f32.gmra.mxu0 %v996
        %v1064 = vpop.f32.mrf.mxu0
        %v1065 = vadd.f32 0.0, %v1064
        %v1066 = vpop.f32.mrf.mxu0
        %1067 = vdwg.mxu0
        %v1068 = vadd.f32 %v772, %v846
        %v1069 = vadd.f32 %v773, %v919
        %v1070 = vadd.f32 %v774, %v992
        %v1071 = vadd.f32 %v775, %v1065
        %1072 = vst.msk [vmem:[#allocation4] sm:$0xff] %vm350, %v1068
        %1073 = vst.msk [vmem:[#allocation4 + $0x8] sm:$0xff] %vm350, %v1069
        %1074 = vst.msk [vmem:[#allocation4 + $0x10] sm:$0xff] %vm350, %v1070
        %1075 = vst.msk [vmem:[#allocation4 + $0x18] sm:$0xff] %vm350, %v1071
        %1076 = vst.msk [vmem:[#allocation2] sm:$0xff] %vm743, %v671
        %1077 = vst.msk [vmem:[#allocation2 + $0x8] sm:$0xff] %vm743, %v672
        %1078 = vst.msk [vmem:[#allocation2 + $0x10] sm:$0xff] %vm743, %v673
        %1079 = vst.msk [vmem:[#allocation2 + $0x18] sm:$0xff] %vm743, %v674
      $region44: #{unet_forward.66} parent=35 // pred_fallthru
        _
      // Predicated region
      $region45: #{unet_forward.66} parent=35 // pred_check
        %p1080 = pneg %p298
      $region46: #{unet_forward.66} parent=35 // pred_check_branch
        %1082 = sbr.rel (%p1080) target = $region48
      $region47: #{unet_forward.66} parent=35 // pred_region
        %v1083 = vld [vmem:[#allocation3] sm:$0xff]
        %v1084 = vld [vmem:[#allocation3 + $0x8] sm:$0xff]
        %v1085 = vld [vmem:[#allocation3 + $0x10] sm:$0xff]
        %v1086 = vld [vmem:[#allocation3 + $0x18] sm:$0xff]
        %v1087 = vrcp.pop %v1083
        %v1088 = vrcp.pop %v1084
        %v1089 = vrcp.pop %v1085
        %v1090 = vrcp.pop %v1086
        %v1091 = vld [vmem:[#allocation4] sm:$0xff]
        %v1092 = vld [vmem:[#allocation4 + $0x8] sm:$0xff]
        %v1093 = vld [vmem:[#allocation4 + $0x10] sm:$0xff]
        %v1094 = vld [vmem:[#allocation4 + $0x18] sm:$0xff]
        %1096 = vset.pattern.permute.xlu0 0
        %1097 = vperm.xlu0 %1096, %v1087
        %v1098 = vpop.permute.xlu0 %1097
        %1101 = vset.pattern.permute.xlu0 0
        %1102 = vperm.xlu0 %1101, %v1088
        %v1103 = vpop.permute.xlu0 %1102
        %1106 = vset.pattern.permute.xlu0 0
        %1107 = vperm.xlu0 %1106, %v1089
        %v1108 = vpop.permute.xlu0 %1107
        %1111 = vset.pattern.permute.xlu0 0
        %1112 = vperm.xlu0 %1111, %v1090
        %v1113 = vpop.permute.xlu0 %1112
        %v1115 = vmul.f32 %v1091, %v1098
        %v1116 = vmul.f32 %v1092, %v1103
        %v1117 = vmul.f32 %v1093, %v1108
        %v1118 = vmul.f32 %v1094, %v1113
        %v1119 = vld [vmem:[%s3] sm:$0x1]
        %v1120 = vld [vmem:[%s3 + $0x1] sm:$0x1]
        %v1121 = vld [vmem:[%s3 + $0x2] sm:$0x1]
        %v1122 = vld [vmem:[%s3 + $0x3] sm:$0x1]
        %v1127 = vlaneseq
        %v1128 = vshrl.u32 %v1127, 7
        %v1129 = vsub.s32 0, %v1128
        %v1130 = vrot.slane %v1119, %v1129
        %v1131 = vlaneseq
        %v1132 = vshrl.u32 %v1131, 7
        %v1133 = vsub.s32 0, %v1132
        %v1134 = vrot.slane %v1120, %v1133
        %v1135 = vlaneseq
        %v1136 = vshrl.u32 %v1135, 7
        %v1137 = vsub.s32 0, %v1136
        %v1138 = vrot.slane %v1121, %v1137
        %v1139 = vlaneseq
        %v1140 = vshrl.u32 %v1139, 7
        %v1141 = vsub.s32 0, %v1140
        %v1142 = vrot.slane %v1122, %v1141
        %1143 = vset.pattern.permute.xlu0 0
        %1144 = vperm.xlu0 %1143, %v1130
        %v1145 = vpop.permute.xlu0 %1144
        %1147 = vset.pattern.permute.xlu0 0
        %1148 = vperm.xlu0 %1147, %v1134
        %v1149 = vpop.permute.xlu0 %1148
        %1151 = vset.pattern.permute.xlu0 0
        %1152 = vperm.xlu0 %1151, %v1138
        %v1153 = vpop.permute.xlu0 %1152
        %1155 = vset.pattern.permute.xlu0 0
        %1156 = vperm.xlu0 %1155, %v1142
        %v1157 = vpop.permute.xlu0 %1156
        %v1159 = vmul.f32 %v1115, %v1145
        %v1160 = vmul.f32 %v1116, %v1149
        %v1161 = vmul.f32 %v1117, %v1153
        %v1162 = vmul.f32 %v1118, %v1157
        %vm1163 = vcmask 64512
        %1164 = vst.msk [vmem:[%s297] sm:$0xff] %vm1163, %v1159
        %1165 = vst.msk [vmem:[%s297 + $0x8] sm:$0xff] %vm1163, %v1160
        %1166 = vst.msk [vmem:[%s297 + $0x10] sm:$0xff] %vm1163, %v1161
        %1167 = vst.msk [vmem:[%s297 + $0x18] sm:$0xff] %vm1163, %v1162
      $region48: #{unet_forward.66} parent=35 // pred_fallthru
        _
      %p1168 = scmp.lt.s32.totalorder %s20, 1
      %s1169 = scalar_select %p1168, %s20, 1
      %p1170 = scmp.lt.s32.totalorder %s21, 0
      %s1171 = scalar_select %p1170, %s21, 0
      %s1172 = smul.addr %s1169, 4
      %s1173 = sadd.s32 %s1171, %s1172
      %s1174 = smul.addr %s1173, 8
      %s1175 = scalar_lea.vmem %s4, %s1174
      // Predicated region
      $region49: #{unet_forward.66} parent=35 // pred_check
        %p1176 = pneg %p159
      $region50: #{unet_forward.66} parent=35 // pred_check_branch
        %1178 = sbr.rel (%p1176) target = $region52
      $region51: #{unet_forward.66} parent=35 // pred_region
        _
      $region52: #{unet_forward.66} parent=35 // pred_fallthru
        _
    $region36: #{unet_forward.66} parent=5 // pred_fallthru
      _
    %p1179 = scmp.le.s32.totalorder 2, %s10
    // Predicated region
    $region53: #{unet_forward.66} parent=5 // pred_check
      %p1180 = pneg %p1179
    $region54: #{unet_forward.66} parent=5 // pred_check_branch
      %1182 = sbr.rel (%p1180) target = $region56
    $region55: #{unet_forward.66} parent=5 // pred_region
      %s1183 = ssub.s32 %s10, 2
      // Predicated region
      $region57: #{unet_forward.66} parent=55 // pred_check
        %p1184 = pneg %p165
      $region58: #{unet_forward.66} parent=55 // pred_check_branch
        %1186 = sbr.rel (%p1184) target = $region60
      $region59: #{unet_forward.66} parent=55 // pred_region
        %p1187 = scmp.lt.s32.totalorder %s23, 1
        %s1188 = scalar_select %p1187, %s23, 1
        %p1189 = scmp.lt.s32.totalorder %s24, 0
        %s1190 = scalar_select %p1189, %s24, 0
        %s1191 = smul.addr %s1188, 4
        %s1192 = sadd.s32 %s1190, %s1191
        %s1193 = smul.addr %s1192, 8
        %s1194 = scalar_lea.vmem %s4, %s1193
      $region60: #{unet_forward.66} parent=55 // pred_fallthru
        _
    $region56: #{unet_forward.66} parent=5 // pred_fallthru
      _
  $region6: #{unet_forward.66} parent=0 // loop_footer
    %s14 = sadd.s32 1, %s10
  $region7: #{unet_forward.66} parent=0 // loop_footer_branch
    %9 = sbr.rel target = $region3
  $region8: #{unet_forward.66} parent=0 // loop_exit
    _

// kernel: unet_forward.45
$region0: #{unet_forward.45}
  #allocation0 [shape = 'u32[]', space=smem, size = 0x4, offset = 0x4, fixed_abs, tag = 'smem constant byte address 0x4 - core index']
  #allocation1 [shape = 'u32[144,128]{1,0:T(1,128)}', space=vmem, size = 0x12000, scoped, tag = 'internal scratch']
  #allocation2 [shape = 'f32[16,32]{1,0:T(8,128)}', space=vmem, size = 0x2000, scoped, tag = 'scratch operand']
  %s0 = inlined_call_operand.vmem [shape: f32[16,32], index: 0, kind: input, shape index: {}]
  %s1 = inlined_call_operand.vmem [shape: f32[1,32], index: 1, kind: input, shape index: {}]
  %s2 = inlined_call_operand.vmem [shape: f32[1,32], index: 2, kind: input, shape index: {}]
  %s3 = inlined_call_operand.vmem [shape: f32[32,96], index: 3, kind: input, shape index: {}]
  %s4 = inlined_call_operand.vmem [shape: f32[1,96], index: 4, kind: input, shape index: {}]
  %s5 = inlined_call_operand.vmem [shape: f32[16,96], index: 5, kind: output, shape index: {}]
  %s6 = sld [smem:[#allocation0]]
  $region34: #{unet_forward.45} parent=0
    _
  %s8 = ssub.s32 1, %s6
  %s9 = scalar_select 0, %s8, %s6
  // Predicated region
  $region2: #{unet_forward.45} parent=0 // pred_check
    _
  $region3: #{unet_forward.45} parent=0 // pred_check_branch
    %11 = sbr.rel (0) target = $region5
  $region4: #{unet_forward.45} parent=0 // pred_region
    _
  $region5: #{unet_forward.45} parent=0 // pred_fallthru
    _
  // Predicated region
  $region6: #{unet_forward.45} parent=0 // pred_check
    _
  $region7: #{unet_forward.45} parent=0 // pred_check_branch
    %13 = sbr.rel (0) target = $region9
  $region8: #{unet_forward.45} parent=0 // pred_region
    _
  $region9: #{unet_forward.45} parent=0 // pred_fallthru
    _
  // Predicated region
  $region10: #{unet_forward.45} parent=0 // pred_check
    _
  $region11: #{unet_forward.45} parent=0 // pred_check_branch
    %15 = sbr.rel (0) target = $region13
  $region12: #{unet_forward.45} parent=0 // pred_region
    _
  $region13: #{unet_forward.45} parent=0 // pred_fallthru
    _
  // Predicated region
  $region14: #{unet_forward.45} parent=0 // pred_check
    _
  $region15: #{unet_forward.45} parent=0 // pred_check_branch
    %17 = sbr.rel (0) target = $region17
  $region16: #{unet_forward.45} parent=0 // pred_region
    _
  $region17: #{unet_forward.45} parent=0 // pred_fallthru
    _
  // Predicated region
  $region18: #{unet_forward.45} parent=0 // pred_check
    _
  $region19: #{unet_forward.45} parent=0 // pred_check_branch
    %19 = sbr.rel (0) target = $region21
  $region20: #{unet_forward.45} parent=0 // pred_region
    _
  $region21: #{unet_forward.45} parent=0 // pred_fallthru
    _
  %p20 = scmp.eq.s32.totalorder 0, 0
  // Predicated region
  $region22: #{unet_forward.45} parent=0 // pred_check
    %p21 = pneg %p20
  $region23: #{unet_forward.45} parent=0 // pred_check_branch
    %23 = sbr.rel (%p21) target = $region25
  $region24: #{unet_forward.45} parent=0 // pred_region
    %v24 = vld [vmem:[%s0] sm:$0xff]
    %v25 = vld [vmem:[%s0 + $0x8] sm:$0xff]
    %v26 = vld [vmem:[%s1] sm:$0x1]
    %v27 = vld [vmem:[%s2] sm:$0x1]
    %vm28 = vcmask 261120
    %v29 = vsel %vm28, %v24, 0.0
    %30 = vadd.xlane.f32.xlu0 %v29
    %v31 = vpop.xlane.xlu0 %30
    %v32 = vsel %vm28, %v25, 0.0
    %33 = vadd.xlane.f32.xlu0 %v32
    %v34 = vpop.xlane.xlu0 %33
    %v35 = vrcp.pop 32.0
    %v36 = vmul.f32 %v31, %v35
    %v37 = vmul.f32 %v34, %v35
    %v38 = vsub.f32 %v24, %v36
    %v39 = vsub.f32 %v25, %v37
    %v40 = vmul.f32 %v38, %v38
    %v41 = vmul.f32 %v39, %v39
    %v42 = vsel %vm28, %v40, 0.0
    %43 = vadd.xlane.f32.xlu0 %v42
    %v44 = vpop.xlane.xlu0 %43
    %v45 = vsel %vm28, %v41, 0.0
    %46 = vadd.xlane.f32.xlu0 %v45
    %v47 = vpop.xlane.xlu0 %46
    %v48 = vmul.f32 %v44, %v35
    %v49 = vmul.f32 %v47, %v35
    %v50 = vadd.f32 %v48, 1e-05
    %v51 = vadd.f32 %v49, 1e-05
    %v52 = vrsqrt.pop %v50
    %v53 = vrsqrt.pop %v51
    %v54 = vmul.f32 %v38, %v52
    %v55 = vmul.f32 %v39, %v53
    %v57 = vlaneseq
    %v58 = vshrl.u32 %v57, 7
    %v59 = vsub.s32 0, %v58
    %v60 = vrot.slane %v26, %v59
    %v62 = vmul.f32 %v54, %v60
    %v63 = vmul.f32 %v55, %v60
    %v65 = vlaneseq
    %v66 = vshrl.u32 %v65, 7
    %v67 = vsub.s32 0, %v66
    %v68 = vrot.slane %v27, %v67
    %v70 = vadd.f32 %v62, %v68
    %v71 = vadd.f32 %v63, %v68
    %72 = vst.msk [vmem:[#allocation2] sm:$0xff] %vm28, %v70
    %73 = vst.msk [vmem:[#allocation2 + $0x8] sm:$0xff] %vm28, %v71
  $region25: #{unet_forward.45} parent=0 // pred_fallthru
    _
  %v74 = vld [vmem:[#allocation2] sm:$0xff]
  %v75 = vld [vmem:[#allocation2 + $0x8] sm:$0xff]
  %v76 = vld [vmem:[%s3] sm:$0xff]
  %v77 = vld [vmem:[%s3 + $0x8] sm:$0xff]
  %v78 = vld [vmem:[%s3 + $0x10] sm:$0xff]
  %v79 = vld [vmem:[%s3 + $0x18] sm:$0xff]
  %v80 = vld [vmem:[%s4] sm:$0x1]
  %v82 = vlaneseq
  %v83 = vshrl.u32 %v82, 7
  %v84 = vsub.s32 0, %v83
  %v85 = vrot.slane %v80, %v84
  %vm87 = vcmask 261120
  %v89 = vsel %vm87, %v74, 0
  %v92 = vsel %vm87, %v75, 0
  %94 = vmatprep.subr.mxu0 0.0
  %95 = vmatpush1.msra.mxu0 0.0
  %96 = vmatprep.subr.mxu0 0.0
  %97 = vmatpush1.msra.mxu0 0.0
  %98 = vmatprep.subr.mxu0 0.0
  %99 = vmatpush1.msra.mxu0 0.0
  %100 = vmatprep.subr.mxu0 0.0
  %101 = vmatpush1.msra.mxu0 0.0
  %102 = vmatprep.subr.mxu0 0.0
  %103 = vmatpush1.msra.mxu0 0.0
  %104 = vmatprep.subr.mxu0 0.0
  %105 = vmatpush1.msra.mxu0 0.0
  %106 = vmatprep.subr.mxu0 0.0
  %107 = vmatpush1.msra.mxu0 0.0
  %108 = vmatprep.subr.mxu0 0.0
  %109 = vmatpush1.msra.mxu0 0.0
  %110 = vmatprep.subr.mxu0 0.0
  %111 = vmatpush1.msra.mxu0 0.0
  %112 = vmatprep.subr.mxu0 0.0
  %113 = vmatpush1.msra.mxu0 0.0
  %114 = vmatprep.subr.mxu0 0.0
  %115 = vmatpush1.msra.mxu0 0.0
  %116 = vmatprep.subr.mxu0 0.0
  %117 = vmatpush1.msra.mxu0 0.0
  %118 = vmatprep.subr.mxu0 0.0
  %119 = vmatpush1.msra.mxu0 %v79
  %120 = vmatprep.subr.mxu0 0.0
  %121 = vmatpush1.msra.mxu0 %v78
  %122 = vmatprep.subr.mxu0 0.0
  %123 = vmatpush1.msra.mxu0 %v77
  %124 = vmatprep.subr.mxu0 0.0
  %125 = vmatpush1.msra.mxu0 %v76
  %126 = vmatprep.subr.mxu0 0.0
  %127 = vmatpush2.msra.mxu0 0.0
  %128 = vmatprep.subr.mxu0 0.0
  %129 = vmatpush2.msra.mxu0 0.0
  %130 = vmatprep.subr.mxu0 0.0
  %131 = vmatpush2.msra.mxu0 0.0
  %132 = vmatprep.subr.mxu0 0.0
  %133 = vmatpush2.msra.mxu0 0.0
  %134 = vmatprep.subr.mxu0 0.0
  %135 = vmatpush2.msra.mxu0 0.0
  %136 = vmatprep.subr.mxu0 0.0
  %137 = vmatpush2.msra.mxu0 0.0
  %138 = vmatprep.subr.mxu0 0.0
  %139 = vmatpush2.msra.mxu0 0.0
  %140 = vmatprep.subr.mxu0 0.0
  %141 = vmatpush2.msra.mxu0 0.0
  %142 = vmatprep.subr.mxu0 0.0
  %143 = vmatpush2.msra.mxu0 0.0
  %144 = vmatprep.subr.mxu0 0.0
  %145 = vmatpush2.msra.mxu0 0.0
  %146 = vmatprep.subr.mxu0 0.0
  %147 = vmatpush2.msra.mxu0 0.0
  %148 = vmatprep.subr.mxu0 0.0
  %149 = vmatpush2.msra.mxu0 0.0
  %150 = vmatprep.subr.mxu0 0.0
  %151 = vmatpush2.msra.mxu0 0.0
  %152 = vmatprep.subr.mxu0 0.0
  %153 = vmatpush2.msra.mxu0 0.0
  %154 = vmatprep.subr.mxu0 0.0
  %155 = vmatpush2.msra.mxu0 0.0
  %156 = vmatprep.subr.mxu0 0.0
  %157 = vmatpush2.msra.mxu0 0.0
  %158 = vmatprep.mubr.f32.mxu0 0.0
  %159 = vmatmul.mubr.f32.gmra.mxu0 %v89
  %v160 = vpop.f32.mrf.mxu0
  %v161 = vadd.f32 %v85, %v160
  %v162 = vpop.f32.mrf.mxu0
  %163 = vmatprep.mubr.f32.mxu0 0.0
  %164 = vmatmul.mubr.f32.gmra.mxu0 %v92
  %v165 = vpop.f32.mrf.mxu0
  %v166 = vadd.f32 %v85, %v165
  %v167 = vpop.f32.mrf.mxu0
  %168 = vdwg.mxu0
  %vm169 = vcmask 785408
  %170 = vst.msk [vmem:[%s5] sm:$0xff] %vm169, %v161
  %171 = vst.msk [vmem:[%s5 + $0x8] sm:$0xff] %vm169, %v166
  // Predicated region
  $region26: #{unet_forward.45} parent=0 // pred_check
    _
  $region27: #{unet_forward.45} parent=0 // pred_check_branch
    %173 = sbr.rel (0) target = $region29
  $region28: #{unet_forward.45} parent=0 // pred_region
    _
  $region29: #{unet_forward.45} parent=0 // pred_fallthru
    _
  // Predicated region
  $region30: #{unet_forward.45} parent=0 // pred_check
    _
  $region31: #{unet_forward.45} parent=0 // pred_check_branch
    %175 = sbr.rel (0) target = $region33
  $region32: #{unet_forward.45} parent=0 // pred_region
    _
  $region33: #{unet_forward.45} parent=0 // pred_fallthru
    _

// kernel: unet_forward.48
$region0: #{unet_forward.48}
  #allocation0 [shape = 'u32[]', space=smem, size = 0x4, offset = 0x4, fixed_abs, tag = 'smem constant byte address 0x4 - core index']
  #allocation1 [shape = 'u32[144,128]{1,0:T(1,128)}', space=vmem, size = 0x12000, scoped, tag = 'internal scratch']
  #allocation2 [shape = 'f32[16,32]{1,0:T(8,128)}', space=vmem, size = 0x2000, scoped, tag = 'scratch operand']
  %s0 = inlined_call_operand.vmem [shape: f32[16,32], index: 0, kind: input, shape index: {}]
  %s1 = inlined_call_operand.vmem [shape: f32[1,32], index: 1, kind: input, shape index: {}]
  %s2 = inlined_call_operand.vmem [shape: f32[1,32], index: 2, kind: input, shape index: {}]
  %s3 = inlined_call_operand.vmem [shape: f32[32,128], index: 3, kind: input, shape index: {}]
  %s4 = inlined_call_operand.vmem [shape: f32[1,128], index: 4, kind: input, shape index: {}]
  %s5 = inlined_call_operand.vmem [shape: f32[16,128], index: 5, kind: output, shape index: {}]
  %s6 = sld [smem:[#allocation0]]
  $region34: #{unet_forward.48} parent=0
    _
  %s8 = ssub.s32 1, %s6
  %s9 = scalar_select 0, %s8, %s6
  // Predicated region
  $region2: #{unet_forward.48} parent=0 // pred_check
    _
  $region3: #{unet_forward.48} parent=0 // pred_check_branch
    %11 = sbr.rel (0) target = $region5
  $region4: #{unet_forward.48} parent=0 // pred_region
    _
  $region5: #{unet_forward.48} parent=0 // pred_fallthru
    _
  // Predicated region
  $region6: #{unet_forward.48} parent=0 // pred_check
    _
  $region7: #{unet_forward.48} parent=0 // pred_check_branch
    %13 = sbr.rel (0) target = $region9
  $region8: #{unet_forward.48} parent=0 // pred_region
    _
  $region9: #{unet_forward.48} parent=0 // pred_fallthru
    _
  // Predicated region
  $region10: #{unet_forward.48} parent=0 // pred_check
    _
  $region11: #{unet_forward.48} parent=0 // pred_check_branch
    %15 = sbr.rel (0) target = $region13
  $region12: #{unet_forward.48} parent=0 // pred_region
    _
  $region13: #{unet_forward.48} parent=0 // pred_fallthru
    _
  // Predicated region
  $region14: #{unet_forward.48} parent=0 // pred_check
    _
  $region15: #{unet_forward.48} parent=0 // pred_check_branch
    %17 = sbr.rel (0) target = $region17
  $region16: #{unet_forward.48} parent=0 // pred_region
    _
  $region17: #{unet_forward.48} parent=0 // pred_fallthru
    _
  // Predicated region
  $region18: #{unet_forward.48} parent=0 // pred_check
    _
  $region19: #{unet_forward.48} parent=0 // pred_check_branch
    %19 = sbr.rel (0) target = $region21
  $region20: #{unet_forward.48} parent=0 // pred_region
    _
  $region21: #{unet_forward.48} parent=0 // pred_fallthru
    _
  %p20 = scmp.eq.s32.totalorder 0, 0
  // Predicated region
  $region22: #{unet_forward.48} parent=0 // pred_check
    %p21 = pneg %p20
  $region23: #{unet_forward.48} parent=0 // pred_check_branch
    %23 = sbr.rel (%p21) target = $region25
  $region24: #{unet_forward.48} parent=0 // pred_region
    %v24 = vld [vmem:[%s0] sm:$0xff]
    %v25 = vld [vmem:[%s0 + $0x8] sm:$0xff]
    %v26 = vld [vmem:[%s1] sm:$0x1]
    %v27 = vld [vmem:[%s2] sm:$0x1]
    %vm28 = vcmask 261120
    %v29 = vsel %vm28, %v24, 0.0
    %30 = vadd.xlane.f32.xlu0 %v29
    %v31 = vpop.xlane.xlu0 %30
    %v32 = vsel %vm28, %v25, 0.0
    %33 = vadd.xlane.f32.xlu0 %v32
    %v34 = vpop.xlane.xlu0 %33
    %v35 = vrcp.pop 32.0
    %v36 = vmul.f32 %v31, %v35
    %v37 = vmul.f32 %v34, %v35
    %v38 = vsub.f32 %v24, %v36
    %v39 = vsub.f32 %v25, %v37
    %v40 = vmul.f32 %v38, %v38
    %v41 = vmul.f32 %v39, %v39
    %v42 = vsel %vm28, %v40, 0.0
    %43 = vadd.xlane.f32.xlu0 %v42
    %v44 = vpop.xlane.xlu0 %43
    %v45 = vsel %vm28, %v41, 0.0
    %46 = vadd.xlane.f32.xlu0 %v45
    %v47 = vpop.xlane.xlu0 %46
    %v48 = vmul.f32 %v44, %v35
    %v49 = vmul.f32 %v47, %v35
    %v50 = vadd.f32 %v48, 1e-05
    %v51 = vadd.f32 %v49, 1e-05
    %v52 = vrsqrt.pop %v50
    %v53 = vrsqrt.pop %v51
    %v54 = vmul.f32 %v38, %v52
    %v55 = vmul.f32 %v39, %v53
    %v57 = vlaneseq
    %v58 = vshrl.u32 %v57, 7
    %v59 = vsub.s32 0, %v58
    %v60 = vrot.slane %v26, %v59
    %v62 = vmul.f32 %v54, %v60
    %v63 = vmul.f32 %v55, %v60
    %v65 = vlaneseq
    %v66 = vshrl.u32 %v65, 7
    %v67 = vsub.s32 0, %v66
    %v68 = vrot.slane %v27, %v67
    %v70 = vadd.f32 %v62, %v68
    %v71 = vadd.f32 %v63, %v68
    %72 = vst.msk [vmem:[#allocation2] sm:$0xff] %vm28, %v70
    %73 = vst.msk [vmem:[#allocation2 + $0x8] sm:$0xff] %vm28, %v71
  $region25: #{unet_forward.48} parent=0 // pred_fallthru
    _
  %v74 = vld [vmem:[#allocation2] sm:$0xff]
  %v75 = vld [vmem:[#allocation2 + $0x8] sm:$0xff]
  %v76 = vld [vmem:[%s3] sm:$0xff]
  %v77 = vld [vmem:[%s3 + $0x8] sm:$0xff]
  %v78 = vld [vmem:[%s3 + $0x10] sm:$0xff]
  %v79 = vld [vmem:[%s3 + $0x18] sm:$0xff]
  %v80 = vld [vmem:[%s4] sm:$0x1]
  %v82 = vlaneseq
  %v83 = vshrl.u32 %v82, 7
  %v84 = vsub.s32 0, %v83
  %v85 = vrot.slane %v80, %v84
  %vm87 = vcmask 261120
  %v89 = vsel %vm87, %v74, 0
  %v92 = vsel %vm87, %v75, 0
  %94 = vmatprep.subr.mxu0 0.0
  %95 = vmatpush1.msra.mxu0 0.0
  %96 = vmatprep.subr.mxu0 0.0
  %97 = vmatpush1.msra.mxu0 0.0
  %98 = vmatprep.subr.mxu0 0.0
  %99 = vmatpush1.msra.mxu0 0.0
  %100 = vmatprep.subr.mxu0 0.0
  %101 = vmatpush1.msra.mxu0 0.0
  %102 = vmatprep.subr.mxu0 0.0
  %103 = vmatpush1.msra.mxu0 0.0
  %104 = vmatprep.subr.mxu0 0.0
  %105 = vmatpush1.msra.mxu0 0.0
  %106 = vmatprep.subr.mxu0 0.0
  %107 = vmatpush1.msra.mxu0 0.0
  %108 = vmatprep.subr.mxu0 0.0
  %109 = vmatpush1.msra.mxu0 0.0
  %110 = vmatprep.subr.mxu0 0.0
  %111 = vmatpush1.msra.mxu0 0.0
  %112 = vmatprep.subr.mxu0 0.0
  %113 = vmatpush1.msra.mxu0 0.0
  %114 = vmatprep.subr.mxu0 0.0
  %115 = vmatpush1.msra.mxu0 0.0
  %116 = vmatprep.subr.mxu0 0.0
  %117 = vmatpush1.msra.mxu0 0.0
  %118 = vmatprep.subr.mxu0 0.0
  %119 = vmatpush1.msra.mxu0 %v79
  %120 = vmatprep.subr.mxu0 0.0
  %121 = vmatpush1.msra.mxu0 %v78
  %122 = vmatprep.subr.mxu0 0.0
  %123 = vmatpush1.msra.mxu0 %v77
  %124 = vmatprep.subr.mxu0 0.0
  %125 = vmatpush1.msra.mxu0 %v76
  %126 = vmatprep.subr.mxu0 0.0
  %127 = vmatpush2.msra.mxu0 0.0
  %128 = vmatprep.subr.mxu0 0.0
  %129 = vmatpush2.msra.mxu0 0.0
  %130 = vmatprep.subr.mxu0 0.0
  %131 = vmatpush2.msra.mxu0 0.0
  %132 = vmatprep.subr.mxu0 0.0
  %133 = vmatpush2.msra.mxu0 0.0
  %134 = vmatprep.subr.mxu0 0.0
  %135 = vmatpush2.msra.mxu0 0.0
  %136 = vmatprep.subr.mxu0 0.0
  %137 = vmatpush2.msra.mxu0 0.0
  %138 = vmatprep.subr.mxu0 0.0
  %139 = vmatpush2.msra.mxu0 0.0
  %140 = vmatprep.subr.mxu0 0.0
  %141 = vmatpush2.msra.mxu0 0.0
  %142 = vmatprep.subr.mxu0 0.0
  %143 = vmatpush2.msra.mxu0 0.0
  %144 = vmatprep.subr.mxu0 0.0
  %145 = vmatpush2.msra.mxu0 0.0
  %146 = vmatprep.subr.mxu0 0.0
  %147 = vmatpush2.msra.mxu0 0.0
  %148 = vmatprep.subr.mxu0 0.0
  %149 = vmatpush2.msra.mxu0 0.0
  %150 = vmatprep.subr.mxu0 0.0
  %151 = vmatpush2.msra.mxu0 0.0
  %152 = vmatprep.subr.mxu0 0.0
  %153 = vmatpush2.msra.mxu0 0.0
  %154 = vmatprep.subr.mxu0 0.0
  %155 = vmatpush2.msra.mxu0 0.0
  %156 = vmatprep.subr.mxu0 0.0
  %157 = vmatpush2.msra.mxu0 0.0
  %158 = vmatprep.mubr.f32.mxu0 0.0
  %159 = vmatmul.mubr.f32.gmra.mxu0 %v89
  %v160 = vpop.f32.mrf.mxu0
  %v161 = vadd.f32 %v85, %v160
  %v162 = vpop.f32.mrf.mxu0
  %163 = vmatprep.mubr.f32.mxu0 0.0
  %164 = vmatmul.mubr.f32.gmra.mxu0 %v92
  %v165 = vpop.f32.mrf.mxu0
  %v166 = vadd.f32 %v85, %v165
  %v167 = vpop.f32.mrf.mxu0
  %168 = vdwg.mxu0
  %v169 = vmul.f32 %v161, %v161
  %v170 = vmul.f32 %v166, %v166
  %v171 = vmul.f32 %v161, %v169
  %v172 = vmul.f32 %v166, %v170
  %v173 = vmul.f32 %v171, 0.044715
  %v174 = vmul.f32 %v172, 0.044715
  %v175 = vadd.f32 %v161, %v173
  %v176 = vadd.f32 %v166, %v174
  %v177 = vmul.f32 %v175, 0.7978846
  %v178 = vmul.f32 %v176, 0.7978846
  %v179 = vtanh.pop %v177
  %v180 = vtanh.pop %v178
  %v181 = vadd.f32 %v179, 1.0
  %v182 = vadd.f32 %v180, 1.0
  %v183 = vmul.f32 %v181, 0.5
  %v184 = vmul.f32 %v182, 0.5
  %v185 = vmul.f32 %v161, %v183
  %v186 = vmul.f32 %v166, %v184
  %187 = vst [vmem:[%s5] sm:$0xff] %v185
  %188 = vst [vmem:[%s5 + $0x8] sm:$0xff] %v186
  // Predicated region
  $region26: #{unet_forward.48} parent=0 // pred_check
    _
  $region27: #{unet_forward.48} parent=0 // pred_check_branch
    %190 = sbr.rel (0) target = $region29
  $region28: #{unet_forward.48} parent=0 // pred_region
    _
  $region29: #{unet_forward.48} parent=0 // pred_fallthru
    _
  // Predicated region
  $region30: #{unet_forward.48} parent=0 // pred_check
    _
  $region31: #{unet_forward.48} parent=0 // pred_check_branch
    %192 = sbr.rel (0) target = $region33
  $region32: #{unet_forward.48} parent=0 // pred_region
    _
  $region33: #{unet_forward.48} parent=0 // pred_fallthru
    _

// kernel: unet_forward.69
$region0: #{unet_forward.69}
  #allocation0 [shape = 'u32[]', space=smem, size = 0x4, offset = 0x4, fixed_abs, tag = 'smem constant byte address 0x4 - core index']
  #allocation1 [shape = 'u32[144,128]{1,0:T(1,128)}', space=vmem, size = 0x12000, scoped, tag = 'internal scratch']
  #allocation2 [shape = 'f32[16,32]{1,0:T(8,128)}', space=vmem, size = 0x2000, scoped, tag = 'scratch operand']
  %s0 = inlined_call_operand.vmem [shape: f32[16,128], index: 0, kind: input, shape index: {}]
  %s1 = inlined_call_operand.vmem [shape: f32[128,32], index: 1, kind: input, shape index: {}]
  %s2 = inlined_call_operand.vmem [shape: f32[1,32], index: 2, kind: input, shape index: {}]
  %s3 = inlined_call_operand.vmem [shape: f32[16,32], index: 3, kind: input, shape index: {}]
  %s4 = inlined_call_operand.vmem [shape: f32[16,32], index: 4, kind: output, shape index: {}]
  %s5 = sld [smem:[#allocation0]]
  $region34: #{unet_forward.69} parent=0
    _
  %s7 = ssub.s32 1, %s5
  %s8 = scalar_select 0, %s7, %s5
  // Predicated region
  $region2: #{unet_forward.69} parent=0 // pred_check
    _
  $region3: #{unet_forward.69} parent=0 // pred_check_branch
    %10 = sbr.rel (0) target = $region5
  $region4: #{unet_forward.69} parent=0 // pred_region
    _
  $region5: #{unet_forward.69} parent=0 // pred_fallthru
    _
  // Predicated region
  $region6: #{unet_forward.69} parent=0 // pred_check
    _
  $region7: #{unet_forward.69} parent=0 // pred_check_branch
    %12 = sbr.rel (0) target = $region9
  $region8: #{unet_forward.69} parent=0 // pred_region
    _
  $region9: #{unet_forward.69} parent=0 // pred_fallthru
    _
  // Predicated region
  $region10: #{unet_forward.69} parent=0 // pred_check
    _
  $region11: #{unet_forward.69} parent=0 // pred_check_branch
    %14 = sbr.rel (0) target = $region13
  $region12: #{unet_forward.69} parent=0 // pred_region
    _
  $region13: #{unet_forward.69} parent=0 // pred_fallthru
    _
  // Predicated region
  $region14: #{unet_forward.69} parent=0 // pred_check
    _
  $region15: #{unet_forward.69} parent=0 // pred_check_branch
    %16 = sbr.rel (0) target = $region17
  $region16: #{unet_forward.69} parent=0 // pred_region
    _
  $region17: #{unet_forward.69} parent=0 // pred_fallthru
    _
  %p17 = scmp.eq.s32.totalorder 0, 0
  // Predicated region
  $region18: #{unet_forward.69} parent=0 // pred_check
    %p18 = pneg %p17
  $region19: #{unet_forward.69} parent=0 // pred_check_branch
    %20 = sbr.rel (%p18) target = $region21
  $region20: #{unet_forward.69} parent=0 // pred_region
    %vm21 = vcmask 261120
    %22 = vst.msk [vmem:[#allocation2] sm:$0xff] %vm21, 0.0
    %23 = vst.msk [vmem:[#allocation2 + $0x8] sm:$0xff] %vm21, 0.0
  $region21: #{unet_forward.69} parent=0 // pred_fallthru
    _
  %v24 = vld [vmem:[#allocation2] sm:$0xff]
  %v25 = vld [vmem:[#allocation2 + $0x8] sm:$0xff]
  %v26 = vld [vmem:[%s0] sm:$0xff]
  %v27 = vld [vmem:[%s0 + $0x8] sm:$0xff]
  %v28 = vld [vmem:[%s1] sm:$0xff]
  %v29 = vld [vmem:[%s1 + $0x8] sm:$0xff]
  %v30 = vld [vmem:[%s1 + $0x10] sm:$0xff]
  %v31 = vld [vmem:[%s1 + $0x18] sm:$0xff]
  %v32 = vld [vmem:[%s1 + $0x20] sm:$0xff]
  %v33 = vld [vmem:[%s1 + $0x28] sm:$0xff]
  %v34 = vld [vmem:[%s1 + $0x30] sm:$0xff]
  %v35 = vld [vmem:[%s1 + $0x38] sm:$0xff]
  %v36 = vld [vmem:[%s1 + $0x40] sm:$0xff]
  %v37 = vld [vmem:[%s1 + $0x48] sm:$0xff]
  %v38 = vld [vmem:[%s1 + $0x50] sm:$0xff]
  %v39 = vld [vmem:[%s1 + $0x58] sm:$0xff]
  %v40 = vld [vmem:[%s1 + $0x60] sm:$0xff]
  %v41 = vld [vmem:[%s1 + $0x68] sm:$0xff]
  %v42 = vld [vmem:[%s1 + $0x70] sm:$0xff]
  %v43 = vld [vmem:[%s1 + $0x78] sm:$0xff]
  %44 = vmatprep.subr.mxu0 0.0
  %45 = vmatpush1.msra.mxu0 %v43
  %46 = vmatprep.subr.mxu0 0.0
  %47 = vmatpush1.msra.mxu0 %v42
  %48 = vmatprep.subr.mxu0 0.0
  %49 = vmatpush1.msra.mxu0 %v41
  %50 = vmatprep.subr.mxu0 0.0
  %51 = vmatpush1.msra.mxu0 %v40
  %52 = vmatprep.subr.mxu0 0.0
  %53 = vmatpush1.msra.mxu0 %v39
  %54 = vmatprep.subr.mxu0 0.0
  %55 = vmatpush1.msra.mxu0 %v38
  %56 = vmatprep.subr.mxu0 0.0
  %57 = vmatpush1.msra.mxu0 %v37
  %58 = vmatprep.subr.mxu0 0.0
  %59 = vmatpush1.msra.mxu0 %v36
  %60 = vmatprep.subr.mxu0 0.0
  %61 = vmatpush1.msra.mxu0 %v35
  %62 = vmatprep.subr.mxu0 0.0
  %63 = vmatpush1.msra.mxu0 %v34
  %64 = vmatprep.subr.mxu0 0.0
  %65 = vmatpush1.msra.mxu0 %v33
  %66 = vmatprep.subr.mxu0 0.0
  %67 = vmatpush1.msra.mxu0 %v32
  %68 = vmatprep.subr.mxu0 0.0
  %69 = vmatpush1.msra.mxu0 %v31
  %70 = vmatprep.subr.mxu0 0.0
  %71 = vmatpush1.msra.mxu0 %v30
  %72 = vmatprep.subr.mxu0 0.0
  %73 = vmatpush1.msra.mxu0 %v29
  %74 = vmatprep.subr.mxu0 0.0
  %75 = vmatpush1.msra.mxu0 %v28
  %76 = vmatprep.subr.mxu0 0.0
  %77 = vmatpush2.msra.mxu0 0.0
  %78 = vmatprep.subr.mxu0 0.0
  %79 = vmatpush2.msra.mxu0 0.0
  %80 = vmatprep.subr.mxu0 0.0
  %81 = vmatpush2.msra.mxu0 0.0
  %82 = vmatprep.subr.mxu0 0.0
  %83 = vmatpush2.msra.mxu0 0.0
  %84 = vmatprep.subr.mxu0 0.0
  %85 = vmatpush2.msra.mxu0 0.0
  %86 = vmatprep.subr.mxu0 0.0
  %87 = vmatpush2.msra.mxu0 0.0
  %88 = vmatprep.subr.mxu0 0.0
  %89 = vmatpush2.msra.mxu0 0.0
  %90 = vmatprep.subr.mxu0 0.0
  %91 = vmatpush2.msra.mxu0 0.0
  %92 = vmatprep.subr.mxu0 0.0
  %93 = vmatpush2.msra.mxu0 0.0
  %94 = vmatprep.subr.mxu0 0.0
  %95 = vmatpush2.msra.mxu0 0.0
  %96 = vmatprep.subr.mxu0 0.0
  %97 = vmatpush2.msra.mxu0 0.0
  %98 = vmatprep.subr.mxu0 0.0
  %99 = vmatpush2.msra.mxu0 0.0
  %100 = vmatprep.subr.mxu0 0.0
  %101 = vmatpush2.msra.mxu0 0.0
  %102 = vmatprep.subr.mxu0 0.0
  %103 = vmatpush2.msra.mxu0 0.0
  %104 = vmatprep.subr.mxu0 0.0
  %105 = vmatpush2.msra.mxu0 0.0
  %106 = vmatprep.subr.mxu0 0.0
  %107 = vmatpush2.msra.mxu0 0.0
  %108 = vmatprep.mubr.f32.mxu0 0.0
  %109 = vmatmul.mubr.f32.gmra.mxu0 %v26
  %v110 = vpop.f32.mrf.mxu0
  %v111 = vadd.f32 0.0, %v110
  %v112 = vpop.f32.mrf.mxu0
  %113 = vmatprep.mubr.f32.mxu0 0.0
  %114 = vmatmul.mubr.f32.gmra.mxu0 %v27
  %v115 = vpop.f32.mrf.mxu0
  %v116 = vadd.f32 0.0, %v115
  %v117 = vpop.f32.mrf.mxu0
  %118 = vdwg.mxu0
  %v119 = vadd.f32 %v24, %v111
  %v120 = vadd.f32 %v25, %v116
  %vm121 = vcmask 261120
  %122 = vst.msk [vmem:[#allocation2] sm:$0xff] %vm121, %v119
  %123 = vst.msk [vmem:[#allocation2 + $0x8] sm:$0xff] %vm121, %v120
  // Predicated region
  $region22: #{unet_forward.69} parent=0 // pred_check
    %p124 = pneg %p17
  $region23: #{unet_forward.69} parent=0 // pred_check_branch
    %126 = sbr.rel (%p124) target = $region25
  $region24: #{unet_forward.69} parent=0 // pred_region
    %v127 = vld [vmem:[#allocation2] sm:$0xff]
    %v128 = vld [vmem:[#allocation2 + $0x8] sm:$0xff]
    %v129 = vld [vmem:[%s2] sm:$0x1]
    %v131 = vlaneseq
    %v132 = vshrl.u32 %v131, 7
    %v133 = vsub.s32 0, %v132
    %v134 = vrot.slane %v129, %v133
    %v136 = vadd.f32 %v127, %v134
    %v137 = vadd.f32 %v128, %v134
    %v138 = vld [vmem:[%s3] sm:$0xff]
    %v139 = vld [vmem:[%s3 + $0x8] sm:$0xff]
    %v140 = vadd.f32 %v136, %v138
    %v141 = vadd.f32 %v137, %v139
    %142 = vst.msk [vmem:[%s4] sm:$0xff] %vm121, %v140
    %143 = vst.msk [vmem:[%s4 + $0x8] sm:$0xff] %vm121, %v141
  $region25: #{unet_forward.69} parent=0 // pred_fallthru
    _
  // Predicated region
  $region26: #{unet_forward.69} parent=0 // pred_check
    _
  $region27: #{unet_forward.69} parent=0 // pred_check_branch
    %145 = sbr.rel (0) target = $region29
  $region28: #{unet_forward.69} parent=0 // pred_region
    _
  $region29: #{unet_forward.69} parent=0 // pred_fallthru
    _
  // Predicated region
  $region30: #{unet_forward.69} parent=0 // pred_check
    _
  $region31: #{unet_forward.69} parent=0 // pred_check_branch
    %147 = sbr.rel (0) target = $region33
  $region32: #{unet_forward.69} parent=0 // pred_region
    _
  $region33: #{unet_forward.69} parent=0 // pred_fallthru
    _

// kernel: unet_forward.78
$region0: #{unet_forward.78}
  #allocation0 [shape = 'u32[]', space=smem, size = 0x4, offset = 0x4, fixed_abs, tag = 'smem constant byte address 0x4 - core index']
  #allocation1 [shape = 'u32[144,128]{1,0:T(1,128)}', space=vmem, size = 0x12000, scoped, tag = 'internal scratch']
  #allocation2 [shape = 'f32[1]{0:T(128)S(6)}', space=smem, size = 0x200, scoped, tag = 'scoped memory for unet_forward.78']
  %s0 = inlined_call_operand.vmem [shape: f32[16,32], index: 0, kind: input, shape index: {}]
  %s1 = inlined_call_operand.vmem [shape: f32[1,32], index: 1, kind: input, shape index: {}]
  %s2 = inlined_call_operand.vmem [shape: f32[1,32], index: 2, kind: input, shape index: {}]
  %s3 = inlined_call_operand.vmem [shape: f32[32,32], index: 3, kind: input, shape index: {}]
  %s4 = inlined_call_operand.vmem [shape: f32[1,32], index: 4, kind: input, shape index: {}]
  %s5 = inlined_call_operand.vmem [shape: f32[16,32], index: 5, kind: input, shape index: {}]
  %s6 = inlined_call_operand.<no memory space> [shape: f32[1], index: 6, kind: input, shape index: {}]
  %s7 = inlined_call_operand.vmem [shape: f32[16,32], index: 7, kind: output, shape index: {}]
  %s8 = sld [smem:[#allocation0]]
  $region38: #{unet_forward.78} parent=0
    _
  %s10 = ssub.s32 1, %s8
  %s11 = scalar_select 0, %s10, %s8
  %12 = sst [smem:[#allocation2]] %s6
  // Predicated region
  $region2: #{unet_forward.78} parent=0 // pred_check
    _
  $region3: #{unet_forward.78} parent=0 // pred_check_branch
    %14 = sbr.rel (0) target = $region5
  $region4: #{unet_forward.78} parent=0 // pred_region
    _
  $region5: #{unet_forward.78} parent=0 // pred_fallthru
    _
  // Predicated region
  $region6: #{unet_forward.78} parent=0 // pred_check
    _
  $region7: #{unet_forward.78} parent=0 // pred_check_branch
    %16 = sbr.rel (0) target = $region9
  $region8: #{unet_forward.78} parent=0 // pred_region
    _
  $region9: #{unet_forward.78} parent=0 // pred_fallthru
    _
  // Predicated region
  $region10: #{unet_forward.78} parent=0 // pred_check
    _
  $region11: #{unet_forward.78} parent=0 // pred_check_branch
    %18 = sbr.rel (0) target = $region13
  $region12: #{unet_forward.78} parent=0 // pred_region
    _
  $region13: #{unet_forward.78} parent=0 // pred_fallthru
    _
  // Predicated region
  $region14: #{unet_forward.78} parent=0 // pred_check
    _
  $region15: #{unet_forward.78} parent=0 // pred_check_branch
    %20 = sbr.rel (0) target = $region17
  $region16: #{unet_forward.78} parent=0 // pred_region
    _
  $region17: #{unet_forward.78} parent=0 // pred_fallthru
    _
  // Predicated region
  $region18: #{unet_forward.78} parent=0 // pred_check
    _
  $region19: #{unet_forward.78} parent=0 // pred_check_branch
    %22 = sbr.rel (0) target = $region21
  $region20: #{unet_forward.78} parent=0 // pred_region
    _
  $region21: #{unet_forward.78} parent=0 // pred_fallthru
    _
  // Predicated region
  $region22: #{unet_forward.78} parent=0 // pred_check
    _
  $region23: #{unet_forward.78} parent=0 // pred_check_branch
    %24 = sbr.rel (0) target = $region25
  $region24: #{unet_forward.78} parent=0 // pred_region
    _
  $region25: #{unet_forward.78} parent=0 // pred_fallthru
    _
  // Predicated region
  $region26: #{unet_forward.78} parent=0 // pred_check
    _
  $region27: #{unet_forward.78} parent=0 // pred_check_branch
    %26 = sbr.rel (0) target = $region29
  $region28: #{unet_forward.78} parent=0 // pred_region
    _
  $region29: #{unet_forward.78} parent=0 // pred_fallthru
    _
  %v27 = vld [vmem:[%s0] sm:$0xff]
  %v28 = vld [vmem:[%s0 + $0x8] sm:$0xff]
  %v29 = vld [vmem:[%s1] sm:$0x1]
  %v30 = vld [vmem:[%s2] sm:$0x1]
  %vm31 = vcmask 261120
  %v32 = vsel %vm31, %v27, 0.0
  %33 = vadd.xlane.f32.xlu0 %v32
  %v34 = vpop.xlane.xlu0 %33
  %v35 = vsel %vm31, %v28, 0.0
  %36 = vadd.xlane.f32.xlu0 %v35
  %v37 = vpop.xlane.xlu0 %36
  %v38 = vrcp.pop 32.0
  %v39 = vmul.f32 %v34, %v38
  %v40 = vmul.f32 %v37, %v38
  %v41 = vsub.f32 %v27, %v39
  %v42 = vsub.f32 %v28, %v40
  %v43 = vmul.f32 %v41, %v41
  %v44 = vmul.f32 %v42, %v42
  %v45 = vsel %vm31, %v43, 0.0
  %46 = vadd.xlane.f32.xlu0 %v45
  %v47 = vpop.xlane.xlu0 %46
  %v48 = vsel %vm31, %v44, 0.0
  %49 = vadd.xlane.f32.xlu0 %v48
  %v50 = vpop.xlane.xlu0 %49
  %v51 = vmul.f32 %v47, %v38
  %v52 = vmul.f32 %v50, %v38
  %v53 = vadd.f32 %v51, 1e-12
  %v54 = vadd.f32 %v52, 1e-12
  %v55 = vrsqrt.pop %v53
  %v56 = vrsqrt.pop %v54
  %v57 = vmul.f32 %v41, %v55
  %v58 = vmul.f32 %v42, %v56
  %v60 = vlaneseq
  %v61 = vshrl.u32 %v60, 7
  %v62 = vsub.s32 0, %v61
  %v63 = vrot.slane %v29, %v62
  %v65 = vmul.f32 %v57, %v63
  %v66 = vmul.f32 %v58, %v63
  %v68 = vlaneseq
  %v69 = vshrl.u32 %v68, 7
  %v70 = vsub.s32 0, %v69
  %v71 = vrot.slane %v30, %v70
  %v73 = vadd.f32 %v65, %v71
  %v74 = vadd.f32 %v66, %v71
  %v75 = vld [vmem:[%s3] sm:$0xff]
  %v76 = vld [vmem:[%s3 + $0x8] sm:$0xff]
  %v77 = vld [vmem:[%s3 + $0x10] sm:$0xff]
  %v78 = vld [vmem:[%s3 + $0x18] sm:$0xff]
  %v79 = vld [vmem:[%s4] sm:$0x1]
  %v81 = vlaneseq
  %v82 = vshrl.u32 %v81, 7
  %v83 = vsub.s32 0, %v82
  %v84 = vrot.slane %v79, %v83
  %v87 = vsel %vm31, %v73, 0
  %v90 = vsel %vm31, %v74, 0
  %92 = vmatprep.subr.mxu0 0.0
  %93 = vmatpush1.msra.mxu0 0.0
  %94 = vmatprep.subr.mxu0 0.0
  %95 = vmatpush1.msra.mxu0 0.0
  %96 = vmatprep.subr.mxu0 0.0
  %97 = vmatpush1.msra.mxu0 0.0
  %98 = vmatprep.subr.mxu0 0.0
  %99 = vmatpush1.msra.mxu0 0.0
  %100 = vmatprep.subr.mxu0 0.0
  %101 = vmatpush1.msra.mxu0 0.0
  %102 = vmatprep.subr.mxu0 0.0
  %103 = vmatpush1.msra.mxu0 0.0
  %104 = vmatprep.subr.mxu0 0.0
  %105 = vmatpush1.msra.mxu0 0.0
  %106 = vmatprep.subr.mxu0 0.0
  %107 = vmatpush1.msra.mxu0 0.0
  %108 = vmatprep.subr.mxu0 0.0
  %109 = vmatpush1.msra.mxu0 0.0
  %110 = vmatprep.subr.mxu0 0.0
  %111 = vmatpush1.msra.mxu0 0.0
  %112 = vmatprep.subr.mxu0 0.0
  %113 = vmatpush1.msra.mxu0 0.0
  %114 = vmatprep.subr.mxu0 0.0
  %115 = vmatpush1.msra.mxu0 0.0
  %116 = vmatprep.subr.mxu0 0.0
  %117 = vmatpush1.msra.mxu0 %v78
  %118 = vmatprep.subr.mxu0 0.0
  %119 = vmatpush1.msra.mxu0 %v77
  %120 = vmatprep.subr.mxu0 0.0
  %121 = vmatpush1.msra.mxu0 %v76
  %122 = vmatprep.subr.mxu0 0.0
  %123 = vmatpush1.msra.mxu0 %v75
  %124 = vmatprep.subr.mxu0 0.0
  %125 = vmatpush2.msra.mxu0 0.0
  %126 = vmatprep.subr.mxu0 0.0
  %127 = vmatpush2.msra.mxu0 0.0
  %128 = vmatprep.subr.mxu0 0.0
  %129 = vmatpush2.msra.mxu0 0.0
  %130 = vmatprep.subr.mxu0 0.0
  %131 = vmatpush2.msra.mxu0 0.0
  %132 = vmatprep.subr.mxu0 0.0
  %133 = vmatpush2.msra.mxu0 0.0
  %134 = vmatprep.subr.mxu0 0.0
  %135 = vmatpush2.msra.mxu0 0.0
  %136 = vmatprep.subr.mxu0 0.0
  %137 = vmatpush2.msra.mxu0 0.0
  %138 = vmatprep.subr.mxu0 0.0
  %139 = vmatpush2.msra.mxu0 0.0
  %140 = vmatprep.subr.mxu0 0.0
  %141 = vmatpush2.msra.mxu0 0.0
  %142 = vmatprep.subr.mxu0 0.0
  %143 = vmatpush2.msra.mxu0 0.0
  %144 = vmatprep.subr.mxu0 0.0
  %145 = vmatpush2.msra.mxu0 0.0
  %146 = vmatprep.subr.mxu0 0.0
  %147 = vmatpush2.msra.mxu0 0.0
  %148 = vmatprep.subr.mxu0 0.0
  %149 = vmatpush2.msra.mxu0 0.0
  %150 = vmatprep.subr.mxu0 0.0
  %151 = vmatpush2.msra.mxu0 0.0
  %152 = vmatprep.subr.mxu0 0.0
  %153 = vmatpush2.msra.mxu0 0.0
  %154 = vmatprep.subr.mxu0 0.0
  %155 = vmatpush2.msra.mxu0 0.0
  %156 = vmatprep.mubr.f32.mxu0 0.0
  %157 = vmatmul.mubr.f32.gmra.mxu0 %v87
  %v158 = vpop.f32.mrf.mxu0
  %v159 = vadd.f32 %v84, %v158
  %v160 = vpop.f32.mrf.mxu0
  %161 = vmatprep.mubr.f32.mxu0 0.0
  %162 = vmatmul.mubr.f32.gmra.mxu0 %v90
  %v163 = vpop.f32.mrf.mxu0
  %v164 = vadd.f32 %v84, %v163
  %v165 = vpop.f32.mrf.mxu0
  %166 = vdwg.mxu0
  %s167 = sld [smem:[#allocation2]]
  %v168 = vld [vmem:[%s5] sm:$0xff]
  %v169 = vld [vmem:[%s5 + $0x8] sm:$0xff]
  %s170 = ssub.f32 1.0, %s167
  %v171 = vstv %s170
  %v172 = vmul.f32 %v168, %v171
  %v173 = vmul.f32 %v169, %v171
  %v174 = vstv %s167
  %v175 = vmul.f32 %v159, %v174
  %v176 = vmul.f32 %v164, %v174
  %v177 = vadd.f32 %v172, %v175
  %v178 = vadd.f32 %v173, %v176
  %179 = vst.msk [vmem:[%s7] sm:$0xff] %vm31, %v177
  %180 = vst.msk [vmem:[%s7 + $0x8] sm:$0xff] %vm31, %v178
  // Predicated region
  $region30: #{unet_forward.78} parent=0 // pred_check
    _
  $region31: #{unet_forward.78} parent=0 // pred_check_branch
    %182 = sbr.rel (0) target = $region33
  $region32: #{unet_forward.78} parent=0 // pred_region
    _
  $region33: #{unet_forward.78} parent=0 // pred_fallthru
    _
  // Predicated region
  $region34: #{unet_forward.78} parent=0 // pred_check
    _
  $region35: #{unet_forward.78} parent=0 // pred_check_branch
    %184 = sbr.rel (0) target = $region37
  $region36: #{unet_forward.78} parent=0 // pred_region
    _
  $region37: #{unet_forward.78} parent=0 // pred_fallthru
    _

// kernel: unet_forward.79
$region0: #{unet_forward.79}
  #allocation0 [shape = 'u32[]', space=smem, size = 0x4, offset = 0x4, fixed_abs, tag = 'smem constant byte address 0x4 - core index']
  #allocation1 [shape = 'u32[144,128]{1,0:T(1,128)}', space=vmem, size = 0x12000, scoped, tag = 'internal scratch']
  %s0 = inlined_call_operand.vmem [shape: f32[16,32], index: 0, kind: input, shape index: {}, may-alias: {0,5}]
  %s1 = inlined_call_operand.vmem [shape: f32[16,32], index: 1, kind: input, shape index: {}]
  %s2 = inlined_call_operand.vmem [shape: f32[32,32], index: 2, kind: input, shape index: {}]
  %s3 = inlined_call_operand.vmem [shape: f32[32,32], index: 3, kind: input, shape index: {}]
  %s4 = inlined_call_operand.vmem [shape: f32[1,32], index: 4, kind: input, shape index: {}]
  %s5 = inlined_call_operand.vmem [shape: f32[16,32], index: 5, kind: input, shape index: {}, may-alias: {0,5}]
  %s6 = inlined_call_operand.vmem [shape: f32[16,32], index: 6, kind: output, shape index: {}]
  %s7 = sld [smem:[#allocation0]]
  $region34: #{unet_forward.79} parent=0
    _
  %s9 = ssub.s32 1, %s7
  %s10 = scalar_select 0, %s9, %s7
  // Predicated region
  $region2: #{unet_forward.79} parent=0 // pred_check
    _
  $region3: #{unet_forward.79} parent=0 // pred_check_branch
    %12 = sbr.rel (0) target = $region5
  $region4: #{unet_forward.79} parent=0 // pred_region
    _
  $region5: #{unet_forward.79} parent=0 // pred_fallthru
    _
  // Predicated region
  $region6: #{unet_forward.79} parent=0 // pred_check
    _
  $region7: #{unet_forward.79} parent=0 // pred_check_branch
    %14 = sbr.rel (0) target = $region9
  $region8: #{unet_forward.79} parent=0 // pred_region
    _
  $region9: #{unet_forward.79} parent=0 // pred_fallthru
    _
  // Predicated region
  $region10: #{unet_forward.79} parent=0 // pred_check
    _
  $region11: #{unet_forward.79} parent=0 // pred_check_branch
    %16 = sbr.rel (0) target = $region13
  $region12: #{unet_forward.79} parent=0 // pred_region
    _
  $region13: #{unet_forward.79} parent=0 // pred_fallthru
    _
  // Predicated region
  $region14: #{unet_forward.79} parent=0 // pred_check
    _
  $region15: #{unet_forward.79} parent=0 // pred_check_branch
    %18 = sbr.rel (0) target = $region17
  $region16: #{unet_forward.79} parent=0 // pred_region
    _
  $region17: #{unet_forward.79} parent=0 // pred_fallthru
    _
  // Predicated region
  $region18: #{unet_forward.79} parent=0 // pred_check
    _
  $region19: #{unet_forward.79} parent=0 // pred_check_branch
    %20 = sbr.rel (0) target = $region21
  $region20: #{unet_forward.79} parent=0 // pred_region
    _
  $region21: #{unet_forward.79} parent=0 // pred_fallthru
    _
  // Predicated region
  $region22: #{unet_forward.79} parent=0 // pred_check
    _
  $region23: #{unet_forward.79} parent=0 // pred_check_branch
    %22 = sbr.rel (0) target = $region25
  $region24: #{unet_forward.79} parent=0 // pred_region
    _
  $region25: #{unet_forward.79} parent=0 // pred_fallthru
    _
  %v23 = vld [vmem:[%s0] sm:$0xff]
  %v24 = vld [vmem:[%s0 + $0x8] sm:$0xff]
  %v25 = vld [vmem:[%s2] sm:$0xff]
  %v26 = vld [vmem:[%s2 + $0x8] sm:$0xff]
  %v27 = vld [vmem:[%s2 + $0x10] sm:$0xff]
  %v28 = vld [vmem:[%s2 + $0x18] sm:$0xff]
  %v29 = vld [vmem:[%s1] sm:$0xff]
  %v30 = vld [vmem:[%s1 + $0x8] sm:$0xff]
  %v31 = vld [vmem:[%s3] sm:$0xff]
  %v32 = vld [vmem:[%s3 + $0x8] sm:$0xff]
  %v33 = vld [vmem:[%s3 + $0x10] sm:$0xff]
  %v34 = vld [vmem:[%s3 + $0x18] sm:$0xff]
  %vm35 = vcmask 261120
  %v37 = vsel %vm35, %v29, 0
  %v40 = vsel %vm35, %v30, 0
  %42 = vmatprep.subr.mxu0 0.0
  %43 = vmatpush1.msra.mxu0 0.0
  %44 = vmatprep.subr.mxu0 0.0
  %45 = vmatpush1.msra.mxu0 0.0
  %46 = vmatprep.subr.mxu0 0.0
  %47 = vmatpush1.msra.mxu0 0.0
  %48 = vmatprep.subr.mxu0 0.0
  %49 = vmatpush1.msra.mxu0 0.0
  %50 = vmatprep.subr.mxu0 0.0
  %51 = vmatpush1.msra.mxu0 0.0
  %52 = vmatprep.subr.mxu0 0.0
  %53 = vmatpush1.msra.mxu0 0.0
  %54 = vmatprep.subr.mxu0 0.0
  %55 = vmatpush1.msra.mxu0 0.0
  %56 = vmatprep.subr.mxu0 0.0
  %57 = vmatpush1.msra.mxu0 0.0
  %58 = vmatprep.subr.mxu0 0.0
  %59 = vmatpush1.msra.mxu0 0.0
  %60 = vmatprep.subr.mxu0 0.0
  %61 = vmatpush1.msra.mxu0 0.0
  %62 = vmatprep.subr.mxu0 0.0
  %63 = vmatpush1.msra.mxu0 0.0
  %64 = vmatprep.subr.mxu0 0.0
  %65 = vmatpush1.msra.mxu0 0.0
  %66 = vmatprep.subr.mxu0 0.0
  %67 = vmatpush1.msra.mxu0 %v34
  %68 = vmatprep.subr.mxu0 0.0
  %69 = vmatpush1.msra.mxu0 %v33
  %70 = vmatprep.subr.mxu0 0.0
  %71 = vmatpush1.msra.mxu0 %v32
  %72 = vmatprep.subr.mxu0 0.0
  %73 = vmatpush1.msra.mxu0 %v31
  %74 = vmatprep.subr.mxu0 0.0
  %75 = vmatpush2.msra.mxu0 0.0
  %76 = vmatprep.subr.mxu0 0.0
  %77 = vmatpush2.msra.mxu0 0.0
  %78 = vmatprep.subr.mxu0 0.0
  %79 = vmatpush2.msra.mxu0 0.0
  %80 = vmatprep.subr.mxu0 0.0
  %81 = vmatpush2.msra.mxu0 0.0
  %82 = vmatprep.subr.mxu0 0.0
  %83 = vmatpush2.msra.mxu0 0.0
  %84 = vmatprep.subr.mxu0 0.0
  %85 = vmatpush2.msra.mxu0 0.0
  %86 = vmatprep.subr.mxu0 0.0
  %87 = vmatpush2.msra.mxu0 0.0
  %88 = vmatprep.subr.mxu0 0.0
  %89 = vmatpush2.msra.mxu0 0.0
  %90 = vmatprep.subr.mxu0 0.0
  %91 = vmatpush2.msra.mxu0 0.0
  %92 = vmatprep.subr.mxu0 0.0
  %93 = vmatpush2.msra.mxu0 0.0
  %94 = vmatprep.subr.mxu0 0.0
  %95 = vmatpush2.msra.mxu0 0.0
  %96 = vmatprep.subr.mxu0 0.0
  %97 = vmatpush2.msra.mxu0 0.0
  %98 = vmatprep.subr.mxu0 0.0
  %99 = vmatpush2.msra.mxu0 0.0
  %100 = vmatprep.subr.mxu0 0.0
  %101 = vmatpush2.msra.mxu0 0.0
  %102 = vmatprep.subr.mxu0 0.0
  %103 = vmatpush2.msra.mxu0 0.0
  %104 = vmatprep.subr.mxu0 0.0
  %105 = vmatpush2.msra.mxu0 0.0
  %106 = vmatprep.mubr.f32.mxu0 0.0
  %107 = vmatmul.mubr.f32.gmra.mxu0 %v37
  %v108 = vpop.f32.mrf.mxu0
  %v109 = vadd.f32 0.0, %v108
  %v110 = vpop.f32.mrf.mxu0
  %111 = vmatprep.mubr.f32.mxu0 0.0
  %112 = vmatmul.mubr.f32.gmra.mxu0 %v40
  %v113 = vpop.f32.mrf.mxu0
  %v114 = vadd.f32 0.0, %v113
  %v115 = vpop.f32.mrf.mxu0
  %116 = vdwg.mxu0
  %v118 = vsel %vm35, %v23, 0
  %v121 = vsel %vm35, %v24, 0
  %123 = vmatprep.subr.mxu0 0.0
  %124 = vmatpush1.msra.mxu0 0.0
  %125 = vmatprep.subr.mxu0 0.0
  %126 = vmatpush1.msra.mxu0 0.0
  %127 = vmatprep.subr.mxu0 0.0
  %128 = vmatpush1.msra.mxu0 0.0
  %129 = vmatprep.subr.mxu0 0.0
  %130 = vmatpush1.msra.mxu0 0.0
  %131 = vmatprep.subr.mxu0 0.0
  %132 = vmatpush1.msra.mxu0 0.0
  %133 = vmatprep.subr.mxu0 0.0
  %134 = vmatpush1.msra.mxu0 0.0
  %135 = vmatprep.subr.mxu0 0.0
  %136 = vmatpush1.msra.mxu0 0.0
  %137 = vmatprep.subr.mxu0 0.0
  %138 = vmatpush1.msra.mxu0 0.0
  %139 = vmatprep.subr.mxu0 0.0
  %140 = vmatpush1.msra.mxu0 0.0
  %141 = vmatprep.subr.mxu0 0.0
  %142 = vmatpush1.msra.mxu0 0.0
  %143 = vmatprep.subr.mxu0 0.0
  %144 = vmatpush1.msra.mxu0 0.0
  %145 = vmatprep.subr.mxu0 0.0
  %146 = vmatpush1.msra.mxu0 0.0
  %147 = vmatprep.subr.mxu0 0.0
  %148 = vmatpush1.msra.mxu0 %v28
  %149 = vmatprep.subr.mxu0 0.0
  %150 = vmatpush1.msra.mxu0 %v27
  %151 = vmatprep.subr.mxu0 0.0
  %152 = vmatpush1.msra.mxu0 %v26
  %153 = vmatprep.subr.mxu0 0.0
  %154 = vmatpush1.msra.mxu0 %v25
  %155 = vmatprep.subr.mxu0 0.0
  %156 = vmatpush2.msra.mxu0 0.0
  %157 = vmatprep.subr.mxu0 0.0
  %158 = vmatpush2.msra.mxu0 0.0
  %159 = vmatprep.subr.mxu0 0.0
  %160 = vmatpush2.msra.mxu0 0.0
  %161 = vmatprep.subr.mxu0 0.0
  %162 = vmatpush2.msra.mxu0 0.0
  %163 = vmatprep.subr.mxu0 0.0
  %164 = vmatpush2.msra.mxu0 0.0
  %165 = vmatprep.subr.mxu0 0.0
  %166 = vmatpush2.msra.mxu0 0.0
  %167 = vmatprep.subr.mxu0 0.0
  %168 = vmatpush2.msra.mxu0 0.0
  %169 = vmatprep.subr.mxu0 0.0
  %170 = vmatpush2.msra.mxu0 0.0
  %171 = vmatprep.subr.mxu0 0.0
  %172 = vmatpush2.msra.mxu0 0.0
  %173 = vmatprep.subr.mxu0 0.0
  %174 = vmatpush2.msra.mxu0 0.0
  %175 = vmatprep.subr.mxu0 0.0
  %176 = vmatpush2.msra.mxu0 0.0
  %177 = vmatprep.subr.mxu0 0.0
  %178 = vmatpush2.msra.mxu0 0.0
  %179 = vmatprep.subr.mxu0 0.0
  %180 = vmatpush2.msra.mxu0 0.0
  %181 = vmatprep.subr.mxu0 0.0
  %182 = vmatpush2.msra.mxu0 0.0
  %183 = vmatprep.subr.mxu0 0.0
  %184 = vmatpush2.msra.mxu0 0.0
  %185 = vmatprep.subr.mxu0 0.0
  %186 = vmatpush2.msra.mxu0 0.0
  %187 = vmatprep.mubr.f32.mxu0 0.0
  %188 = vmatmul.mubr.f32.gmra.mxu0 %v118
  %v189 = vpop.f32.mrf.mxu0
  %v190 = vadd.f32 %v109, %v189
  %v191 = vpop.f32.mrf.mxu0
  %192 = vmatprep.mubr.f32.mxu0 0.0
  %193 = vmatmul.mubr.f32.gmra.mxu0 %v121
  %v194 = vpop.f32.mrf.mxu0
  %v195 = vadd.f32 %v114, %v194
  %v196 = vpop.f32.mrf.mxu0
  %197 = vdwg.mxu0
  %v198 = vld [vmem:[%s4] sm:$0x1]
  %v200 = vlaneseq
  %v201 = vshrl.u32 %v200, 7
  %v202 = vsub.s32 0, %v201
  %v203 = vrot.slane %v198, %v202
  %v205 = vadd.f32 %v190, %v203
  %v206 = vadd.f32 %v195, %v203
  %v207 = vld [vmem:[%s5] sm:$0xff]
  %v208 = vld [vmem:[%s5 + $0x8] sm:$0xff]
  %v209 = vmul.f32 %v205, 0.1
  %v210 = vmul.f32 %v206, 0.1
  %v211 = vadd.f32 %v207, %v209
  %v212 = vadd.f32 %v208, %v210
  %213 = vst.msk [vmem:[%s6] sm:$0xff] %vm35, %v211
  %214 = vst.msk [vmem:[%s6 + $0x8] sm:$0xff] %vm35, %v212
  // Predicated region
  $region26: #{unet_forward.79} parent=0 // pred_check
    _
  $region27: #{unet_forward.79} parent=0 // pred_check_branch
    %216 = sbr.rel (0) target = $region29
  $region28: #{unet_forward.79} parent=0 // pred_region
    _
  $region29: #{unet_forward.79} parent=0 // pred_fallthru
    _
  // Predicated region
  $region30: #{unet_forward.79} parent=0 // pred_check
    _
  $region31: #{unet_forward.79} parent=0 // pred_check_branch
    %218 = sbr.rel (0) target = $region33
  $region32: #{unet_forward.79} parent=0 // pred_region
    _
  $region33: #{unet_forward.79} parent=0 // pred_fallthru
    _

// kernel: unet_forward.86
$region0: #{unet_forward.86}
  #allocation0 [shape = 'u32[]', space=smem, size = 0x4, offset = 0x4, fixed_abs, tag = 'smem constant byte address 0x4 - core index']
  #allocation1 [shape = 'u32[144,128]{1,0:T(1,128)}', space=vmem, size = 0x12000, scoped, tag = 'internal scratch']
  %s0 = inlined_call_operand.vmem [shape: f32[16,32], index: 0, kind: input, shape index: {}, may-alias: {0,5}]
  %s1 = inlined_call_operand.vmem [shape: f32[16,32], index: 1, kind: input, shape index: {}]
  %s2 = inlined_call_operand.vmem [shape: f32[32,32], index: 2, kind: input, shape index: {}]
  %s3 = inlined_call_operand.vmem [shape: f32[32,32], index: 3, kind: input, shape index: {}]
  %s4 = inlined_call_operand.vmem [shape: f32[1,32], index: 4, kind: input, shape index: {}]
  %s5 = inlined_call_operand.vmem [shape: f32[16,32], index: 5, kind: input, shape index: {}, may-alias: {0,5}]
  %s6 = inlined_call_operand.vmem [shape: f32[16,32], index: 6, kind: output, shape index: {}]
  %s7 = sld [smem:[#allocation0]]
  $region34: #{unet_forward.86} parent=0
    _
  %s9 = ssub.s32 1, %s7
  %s10 = scalar_select 0, %s9, %s7
  // Predicated region
  $region2: #{unet_forward.86} parent=0 // pred_check
    _
  $region3: #{unet_forward.86} parent=0 // pred_check_branch
    %12 = sbr.rel (0) target = $region5
  $region4: #{unet_forward.86} parent=0 // pred_region
    _
  $region5: #{unet_forward.86} parent=0 // pred_fallthru
    _
  // Predicated region
  $region6: #{unet_forward.86} parent=0 // pred_check
    _
  $region7: #{unet_forward.86} parent=0 // pred_check_branch
    %14 = sbr.rel (0) target = $region9
  $region8: #{unet_forward.86} parent=0 // pred_region
    _
  $region9: #{unet_forward.86} parent=0 // pred_fallthru
    _
  // Predicated region
  $region10: #{unet_forward.86} parent=0 // pred_check
    _
  $region11: #{unet_forward.86} parent=0 // pred_check_branch
    %16 = sbr.rel (0) target = $region13
  $region12: #{unet_forward.86} parent=0 // pred_region
    _
  $region13: #{unet_forward.86} parent=0 // pred_fallthru
    _
  // Predicated region
  $region14: #{unet_forward.86} parent=0 // pred_check
    _
  $region15: #{unet_forward.86} parent=0 // pred_check_branch
    %18 = sbr.rel (0) target = $region17
  $region16: #{unet_forward.86} parent=0 // pred_region
    _
  $region17: #{unet_forward.86} parent=0 // pred_fallthru
    _
  // Predicated region
  $region18: #{unet_forward.86} parent=0 // pred_check
    _
  $region19: #{unet_forward.86} parent=0 // pred_check_branch
    %20 = sbr.rel (0) target = $region21
  $region20: #{unet_forward.86} parent=0 // pred_region
    _
  $region21: #{unet_forward.86} parent=0 // pred_fallthru
    _
  // Predicated region
  $region22: #{unet_forward.86} parent=0 // pred_check
    _
  $region23: #{unet_forward.86} parent=0 // pred_check_branch
    %22 = sbr.rel (0) target = $region25
  $region24: #{unet_forward.86} parent=0 // pred_region
    _
  $region25: #{unet_forward.86} parent=0 // pred_fallthru
    _
  %v23 = vld [vmem:[%s0] sm:$0xff]
  %v24 = vld [vmem:[%s0 + $0x8] sm:$0xff]
  %v25 = vld [vmem:[%s2] sm:$0xff]
  %v26 = vld [vmem:[%s2 + $0x8] sm:$0xff]
  %v27 = vld [vmem:[%s2 + $0x10] sm:$0xff]
  %v28 = vld [vmem:[%s2 + $0x18] sm:$0xff]
  %v29 = vld [vmem:[%s1] sm:$0xff]
  %v30 = vld [vmem:[%s1 + $0x8] sm:$0xff]
  %v31 = vld [vmem:[%s3] sm:$0xff]
  %v32 = vld [vmem:[%s3 + $0x8] sm:$0xff]
  %v33 = vld [vmem:[%s3 + $0x10] sm:$0xff]
  %v34 = vld [vmem:[%s3 + $0x18] sm:$0xff]
  %vm35 = vcmask 261120
  %v37 = vsel %vm35, %v29, 0
  %v40 = vsel %vm35, %v30, 0
  %42 = vmatprep.subr.mxu0 0.0
  %43 = vmatpush1.msra.mxu0 0.0
  %44 = vmatprep.subr.mxu0 0.0
  %45 = vmatpush1.msra.mxu0 0.0
  %46 = vmatprep.subr.mxu0 0.0
  %47 = vmatpush1.msra.mxu0 0.0
  %48 = vmatprep.subr.mxu0 0.0
  %49 = vmatpush1.msra.mxu0 0.0
  %50 = vmatprep.subr.mxu0 0.0
  %51 = vmatpush1.msra.mxu0 0.0
  %52 = vmatprep.subr.mxu0 0.0
  %53 = vmatpush1.msra.mxu0 0.0
  %54 = vmatprep.subr.mxu0 0.0
  %55 = vmatpush1.msra.mxu0 0.0
  %56 = vmatprep.subr.mxu0 0.0
  %57 = vmatpush1.msra.mxu0 0.0
  %58 = vmatprep.subr.mxu0 0.0
  %59 = vmatpush1.msra.mxu0 0.0
  %60 = vmatprep.subr.mxu0 0.0
  %61 = vmatpush1.msra.mxu0 0.0
  %62 = vmatprep.subr.mxu0 0.0
  %63 = vmatpush1.msra.mxu0 0.0
  %64 = vmatprep.subr.mxu0 0.0
  %65 = vmatpush1.msra.mxu0 0.0
  %66 = vmatprep.subr.mxu0 0.0
  %67 = vmatpush1.msra.mxu0 %v34
  %68 = vmatprep.subr.mxu0 0.0
  %69 = vmatpush1.msra.mxu0 %v33
  %70 = vmatprep.subr.mxu0 0.0
  %71 = vmatpush1.msra.mxu0 %v32
  %72 = vmatprep.subr.mxu0 0.0
  %73 = vmatpush1.msra.mxu0 %v31
  %74 = vmatprep.subr.mxu0 0.0
  %75 = vmatpush2.msra.mxu0 0.0
  %76 = vmatprep.subr.mxu0 0.0
  %77 = vmatpush2.msra.mxu0 0.0
  %78 = vmatprep.subr.mxu0 0.0
  %79 = vmatpush2.msra.mxu0 0.0
  %80 = vmatprep.subr.mxu0 0.0
  %81 = vmatpush2.msra.mxu0 0.0
  %82 = vmatprep.subr.mxu0 0.0
  %83 = vmatpush2.msra.mxu0 0.0
  %84 = vmatprep.subr.mxu0 0.0
  %85 = vmatpush2.msra.mxu0 0.0
  %86 = vmatprep.subr.mxu0 0.0
  %87 = vmatpush2.msra.mxu0 0.0
  %88 = vmatprep.subr.mxu0 0.0
  %89 = vmatpush2.msra.mxu0 0.0
  %90 = vmatprep.subr.mxu0 0.0
  %91 = vmatpush2.msra.mxu0 0.0
  %92 = vmatprep.subr.mxu0 0.0
  %93 = vmatpush2.msra.mxu0 0.0
  %94 = vmatprep.subr.mxu0 0.0
  %95 = vmatpush2.msra.mxu0 0.0
  %96 = vmatprep.subr.mxu0 0.0
  %97 = vmatpush2.msra.mxu0 0.0
  %98 = vmatprep.subr.mxu0 0.0
  %99 = vmatpush2.msra.mxu0 0.0
  %100 = vmatprep.subr.mxu0 0.0
  %101 = vmatpush2.msra.mxu0 0.0
  %102 = vmatprep.subr.mxu0 0.0
  %103 = vmatpush2.msra.mxu0 0.0
  %104 = vmatprep.subr.mxu0 0.0
  %105 = vmatpush2.msra.mxu0 0.0
  %106 = vmatprep.mubr.f32.mxu0 0.0
  %107 = vmatmul.mubr.f32.gmra.mxu0 %v37
  %v108 = vpop.f32.mrf.mxu0
  %v109 = vadd.f32 0.0, %v108
  %v110 = vpop.f32.mrf.mxu0
  %111 = vmatprep.mubr.f32.mxu0 0.0
  %112 = vmatmul.mubr.f32.gmra.mxu0 %v40
  %v113 = vpop.f32.mrf.mxu0
  %v114 = vadd.f32 0.0, %v113
  %v115 = vpop.f32.mrf.mxu0
  %116 = vdwg.mxu0
  %v118 = vsel %vm35, %v23, 0
  %v121 = vsel %vm35, %v24, 0
  %123 = vmatprep.subr.mxu0 0.0
  %124 = vmatpush1.msra.mxu0 0.0
  %125 = vmatprep.subr.mxu0 0.0
  %126 = vmatpush1.msra.mxu0 0.0
  %127 = vmatprep.subr.mxu0 0.0
  %128 = vmatpush1.msra.mxu0 0.0
  %129 = vmatprep.subr.mxu0 0.0
  %130 = vmatpush1.msra.mxu0 0.0
  %131 = vmatprep.subr.mxu0 0.0
  %132 = vmatpush1.msra.mxu0 0.0
  %133 = vmatprep.subr.mxu0 0.0
  %134 = vmatpush1.msra.mxu0 0.0
  %135 = vmatprep.subr.mxu0 0.0
  %136 = vmatpush1.msra.mxu0 0.0
  %137 = vmatprep.subr.mxu0 0.0
  %138 = vmatpush1.msra.mxu0 0.0
  %139 = vmatprep.subr.mxu0 0.0
  %140 = vmatpush1.msra.mxu0 0.0
  %141 = vmatprep.subr.mxu0 0.0
  %142 = vmatpush1.msra.mxu0 0.0
  %143 = vmatprep.subr.mxu0 0.0
  %144 = vmatpush1.msra.mxu0 0.0
  %145 = vmatprep.subr.mxu0 0.0
  %146 = vmatpush1.msra.mxu0 0.0
  %147 = vmatprep.subr.mxu0 0.0
  %148 = vmatpush1.msra.mxu0 %v28
  %149 = vmatprep.subr.mxu0 0.0
  %150 = vmatpush1.msra.mxu0 %v27
  %151 = vmatprep.subr.mxu0 0.0
  %152 = vmatpush1.msra.mxu0 %v26
  %153 = vmatprep.subr.mxu0 0.0
  %154 = vmatpush1.msra.mxu0 %v25
  %155 = vmatprep.subr.mxu0 0.0
  %156 = vmatpush2.msra.mxu0 0.0
  %157 = vmatprep.subr.mxu0 0.0
  %158 = vmatpush2.msra.mxu0 0.0
  %159 = vmatprep.subr.mxu0 0.0
  %160 = vmatpush2.msra.mxu0 0.0
  %161 = vmatprep.subr.mxu0 0.0
  %162 = vmatpush2.msra.mxu0 0.0
  %163 = vmatprep.subr.mxu0 0.0
  %164 = vmatpush2.msra.mxu0 0.0
  %165 = vmatprep.subr.mxu0 0.0
  %166 = vmatpush2.msra.mxu0 0.0
  %167 = vmatprep.subr.mxu0 0.0
  %168 = vmatpush2.msra.mxu0 0.0
  %169 = vmatprep.subr.mxu0 0.0
  %170 = vmatpush2.msra.mxu0 0.0
  %171 = vmatprep.subr.mxu0 0.0
  %172 = vmatpush2.msra.mxu0 0.0
  %173 = vmatprep.subr.mxu0 0.0
  %174 = vmatpush2.msra.mxu0 0.0
  %175 = vmatprep.subr.mxu0 0.0
  %176 = vmatpush2.msra.mxu0 0.0
  %177 = vmatprep.subr.mxu0 0.0
  %178 = vmatpush2.msra.mxu0 0.0
  %179 = vmatprep.subr.mxu0 0.0
  %180 = vmatpush2.msra.mxu0 0.0
  %181 = vmatprep.subr.mxu0 0.0
  %182 = vmatpush2.msra.mxu0 0.0
  %183 = vmatprep.subr.mxu0 0.0
  %184 = vmatpush2.msra.mxu0 0.0
  %185 = vmatprep.subr.mxu0 0.0
  %186 = vmatpush2.msra.mxu0 0.0
  %187 = vmatprep.mubr.f32.mxu0 0.0
  %188 = vmatmul.mubr.f32.gmra.mxu0 %v118
  %v189 = vpop.f32.mrf.mxu0
  %v190 = vadd.f32 %v109, %v189
  %v191 = vpop.f32.mrf.mxu0
  %192 = vmatprep.mubr.f32.mxu0 0.0
  %193 = vmatmul.mubr.f32.gmra.mxu0 %v121
  %v194 = vpop.f32.mrf.mxu0
  %v195 = vadd.f32 %v114, %v194
  %v196 = vpop.f32.mrf.mxu0
  %197 = vdwg.mxu0
  %v198 = vld [vmem:[%s4] sm:$0x1]
  %v200 = vlaneseq
  %v201 = vshrl.u32 %v200, 7
  %v202 = vsub.s32 0, %v201
  %v203 = vrot.slane %v198, %v202
  %v205 = vadd.f32 %v190, %v203
  %v206 = vadd.f32 %v195, %v203
  %v207 = vld [vmem:[%s5] sm:$0xff]
  %v208 = vld [vmem:[%s5 + $0x8] sm:$0xff]
  %v209 = vmul.f32 %v205, 0.15
  %v210 = vmul.f32 %v206, 0.15
  %v211 = vadd.f32 %v207, %v209
  %v212 = vadd.f32 %v208, %v210
  %213 = vst.msk [vmem:[%s6] sm:$0xff] %vm35, %v211
  %214 = vst.msk [vmem:[%s6 + $0x8] sm:$0xff] %vm35, %v212
  // Predicated region
  $region26: #{unet_forward.86} parent=0 // pred_check
    _
  $region27: #{unet_forward.86} parent=0 // pred_check_branch
    %216 = sbr.rel (0) target = $region29
  $region28: #{unet_forward.86} parent=0 // pred_region
    _
  $region29: #{unet_forward.86} parent=0 // pred_fallthru
    _
  // Predicated region
  $region30: #{unet_forward.86} parent=0 // pred_check
    _
  $region31: #{unet_forward.86} parent=0 // pred_check_branch
    %218 = sbr.rel (0) target = $region33
  $region32: #{unet_forward.86} parent=0 // pred_region
    _
  $region33: #{unet_forward.86} parent=0 // pred_fallthru
    _

// kernel: unet_forward.89
$region0: #{unet_forward.89}
  #allocation0 [shape = 'u32[]', space=smem, size = 0x4, offset = 0x4, fixed_abs, tag = 'smem constant byte address 0x4 - core index']
  #allocation1 [shape = 'u32[144,128]{1,0:T(1,128)}', space=vmem, size = 0x12000, scoped, tag = 'internal scratch']
  #allocation2 [shape = 'f32[16,32]{1,0:T(8,128)}', space=vmem, size = 0x2000, scoped, tag = 'scratch operand']
  %s0 = inlined_call_operand.vmem [shape: f32[16,32], index: 0, kind: input, shape index: {}]
  %s1 = inlined_call_operand.vmem [shape: f32[1,32], index: 1, kind: input, shape index: {}]
  %s2 = inlined_call_operand.vmem [shape: f32[1,32], index: 2, kind: input, shape index: {}]
  %s3 = inlined_call_operand.vmem [shape: f32[128,32], index: 3, kind: input, shape index: {}]
  %s4 = inlined_call_operand.hbm [shape: f32[16,128], index: 4, kind: output, shape index: {}]
  %s5 = sld [smem:[#allocation0]]
  $region30: #{unet_forward.89} parent=0
    _
  %s7 = ssub.s32 1, %s5
  %s8 = scalar_select 0, %s7, %s5
  $region1: #{unet_forward.89} parent=0
    #allocation3 [shape = 'u8[8192]{0}', space=vmem, size = 0x2000, scoped, tag = 'output window, operand 0, single buffered']
    #allocation4 [shape = 's32[1]{0}', space=sflag, size = 0x4, scoped, tag = 'scoped memory for unet_forward.89']
    %9 = vsyncpa [#allocation4], 0
    // Predicated region
    $region2: #{unet_forward.89} parent=1 // pred_check
      _
    $region3: #{unet_forward.89} parent=1 // pred_check_branch
      %11 = sbr.rel (0) target = $region5
    $region4: #{unet_forward.89} parent=1 // pred_region
      _
    $region5: #{unet_forward.89} parent=1 // pred_fallthru
      _
    // Predicated region
    $region6: #{unet_forward.89} parent=1 // pred_check
      _
    $region7: #{unet_forward.89} parent=1 // pred_check_branch
      %13 = sbr.rel (0) target = $region9
    $region8: #{unet_forward.89} parent=1 // pred_region
      _
    $region9: #{unet_forward.89} parent=1 // pred_fallthru
      _
    // Predicated region
    $region10: #{unet_forward.89} parent=1 // pred_check
      _
    $region11: #{unet_forward.89} parent=1 // pred_check_branch
      %15 = sbr.rel (0) target = $region13
    $region12: #{unet_forward.89} parent=1 // pred_region
      _
    $region13: #{unet_forward.89} parent=1 // pred_fallthru
      _
    // Predicated region
    $region14: #{unet_forward.89} parent=1 // pred_check
      _
    $region15: #{unet_forward.89} parent=1 // pred_check_branch
      %17 = sbr.rel (0) target = $region17
    $region16: #{unet_forward.89} parent=1 // pred_region
      _
    $region17: #{unet_forward.89} parent=1 // pred_fallthru
      _
    %p18 = scmp.eq.s32.totalorder 0, 0
    // Predicated region
    $region18: #{unet_forward.89} parent=1 // pred_check
      %p19 = pneg %p18
    $region19: #{unet_forward.89} parent=1 // pred_check_branch
      %21 = sbr.rel (%p19) target = $region21
    $region20: #{unet_forward.89} parent=1 // pred_region
      %v22 = vld [vmem:[%s0] sm:$0xff]
      %v23 = vld [vmem:[%s0 + $0x8] sm:$0xff]
      %v24 = vld [vmem:[%s1] sm:$0x1]
      %v25 = vld [vmem:[%s2] sm:$0x1]
      %vm26 = vcmask 261120
      %v27 = vsel %vm26, %v22, 0.0
      %28 = vadd.xlane.f32.xlu0 %v27
      %v29 = vpop.xlane.xlu0 %28
      %v30 = vsel %vm26, %v23, 0.0
      %31 = vadd.xlane.f32.xlu0 %v30
      %v32 = vpop.xlane.xlu0 %31
      %v33 = vrcp.pop 32.0
      %v34 = vmul.f32 %v29, %v33
      %v35 = vmul.f32 %v32, %v33
      %v36 = vsub.f32 %v22, %v34
      %v37 = vsub.f32 %v23, %v35
      %v38 = vmul.f32 %v36, %v36
      %v39 = vmul.f32 %v37, %v37
      %v40 = vsel %vm26, %v38, 0.0
      %41 = vadd.xlane.f32.xlu0 %v40
      %v42 = vpop.xlane.xlu0 %41
      %v43 = vsel %vm26, %v39, 0.0
      %44 = vadd.xlane.f32.xlu0 %v43
      %v45 = vpop.xlane.xlu0 %44
      %v46 = vmul.f32 %v42, %v33
      %v47 = vmul.f32 %v45, %v33
      %v48 = vadd.f32 %v46, 1e-05
      %v49 = vadd.f32 %v47, 1e-05
      %v50 = vrsqrt.pop %v48
      %v51 = vrsqrt.pop %v49
      %v52 = vmul.f32 %v36, %v50
      %v53 = vmul.f32 %v37, %v51
      %v55 = vlaneseq
      %v56 = vshrl.u32 %v55, 7
      %v57 = vsub.s32 0, %v56
      %v58 = vrot.slane %v24, %v57
      %v60 = vmul.f32 %v52, %v58
      %v61 = vmul.f32 %v53, %v58
      %v63 = vlaneseq
      %v64 = vshrl.u32 %v63, 7
      %v65 = vsub.s32 0, %v64
      %v66 = vrot.slane %v25, %v65
      %v68 = vadd.f32 %v60, %v66
      %v69 = vadd.f32 %v61, %v66
      %70 = vst.msk [vmem:[#allocation2] sm:$0xff] %vm26, %v68
      %71 = vst.msk [vmem:[#allocation2 + $0x8] sm:$0xff] %vm26, %v69
    $region21: #{unet_forward.89} parent=1 // pred_fallthru
      _
    %v72 = vld [vmem:[#allocation2] sm:$0xff]
    %v73 = vld [vmem:[#allocation2 + $0x8] sm:$0xff]
    %v74 = vld [vmem:[%s3] sm:$0xff]
    %v75 = vld [vmem:[%s3 + $0x8] sm:$0xff]
    %v76 = vld [vmem:[%s3 + $0x10] sm:$0xff]
    %v77 = vld [vmem:[%s3 + $0x18] sm:$0xff]
    %v78 = vld [vmem:[%s3 + $0x20] sm:$0xff]
    %v79 = vld [vmem:[%s3 + $0x28] sm:$0xff]
    %v80 = vld [vmem:[%s3 + $0x30] sm:$0xff]
    %v81 = vld [vmem:[%s3 + $0x38] sm:$0xff]
    %v82 = vld [vmem:[%s3 + $0x40] sm:$0xff]
    %v83 = vld [vmem:[%s3 + $0x48] sm:$0xff]
    %v84 = vld [vmem:[%s3 + $0x50] sm:$0xff]
    %v85 = vld [vmem:[%s3 + $0x58] sm:$0xff]
    %v86 = vld [vmem:[%s3 + $0x60] sm:$0xff]
    %v87 = vld [vmem:[%s3 + $0x68] sm:$0xff]
    %v88 = vld [vmem:[%s3 + $0x70] sm:$0xff]
    %v89 = vld [vmem:[%s3 + $0x78] sm:$0xff]
    %vm90 = vcmask 261120
    %v92 = vsel %vm90, %v72, 0
    %v95 = vsel %vm90, %v73, 0
    %v98 = vsel %vm90, %v74, 0
    %v101 = vsel %vm90, %v75, 0
    %v104 = vsel %vm90, %v76, 0
    %v107 = vsel %vm90, %v77, 0
    %v110 = vsel %vm90, %v78, 0
    %v113 = vsel %vm90, %v79, 0
    %v116 = vsel %vm90, %v80, 0
    %v119 = vsel %vm90, %v81, 0
    %v122 = vsel %vm90, %v82, 0
    %v125 = vsel %vm90, %v83, 0
    %v128 = vsel %vm90, %v84, 0
    %v131 = vsel %vm90, %v85, 0
    %v134 = vsel %vm90, %v86, 0
    %v137 = vsel %vm90, %v87, 0
    %v140 = vsel %vm90, %v88, 0
    %v143 = vsel %vm90, %v89, 0
    %145 = vmatprep.subr.mxu0 0.0
    %146 = vmatpush1.xpose.msra.mxu0 %v143
    %147 = vmatprep.subr.mxu0 0.0
    %148 = vmatpush1.xpose.msra.mxu0 %v140
    %149 = vmatprep.subr.mxu0 0.0
    %150 = vmatpush1.xpose.msra.mxu0 %v137
    %151 = vmatprep.subr.mxu0 0.0
    %152 = vmatpush1.xpose.msra.mxu0 %v134
    %153 = vmatprep.subr.mxu0 0.0
    %154 = vmatpush1.xpose.msra.mxu0 %v131
    %155 = vmatprep.subr.mxu0 0.0
    %156 = vmatpush1.xpose.msra.mxu0 %v128
    %157 = vmatprep.subr.mxu0 0.0
    %158 = vmatpush1.xpose.msra.mxu0 %v125
    %159 = vmatprep.subr.mxu0 0.0
    %160 = vmatpush1.xpose.msra.mxu0 %v122
    %161 = vmatprep.subr.mxu0 0.0
    %162 = vmatpush1.xpose.msra.mxu0 %v119
    %163 = vmatprep.subr.mxu0 0.0
    %164 = vmatpush1.xpose.msra.mxu0 %v116
    %165 = vmatprep.subr.mxu0 0.0
    %166 = vmatpush1.xpose.msra.mxu0 %v113
    %167 = vmatprep.subr.mxu0 0.0
    %168 = vmatpush1.xpose.msra.mxu0 %v110
    %169 = vmatprep.subr.mxu0 0.0
    %170 = vmatpush1.xpose.msra.mxu0 %v107
    %171 = vmatprep.subr.mxu0 0.0
    %172 = vmatpush1.xpose.msra.mxu0 %v104
    %173 = vmatprep.subr.mxu0 0.0
    %174 = vmatpush1.xpose.msra.mxu0 %v101
    %175 = vmatprep.subr.mxu0 0.0
    %176 = vmatpush1.xpose.msra.mxu0 %v98
    %177 = vmatprep.subr.mxu0 0.0
    %178 = vmatpush2.xpose.msra.mxu0 0.0
    %179 = vmatprep.subr.mxu0 0.0
    %180 = vmatpush2.xpose.msra.mxu0 0.0
    %181 = vmatprep.subr.mxu0 0.0
    %182 = vmatpush2.xpose.msra.mxu0 0.0
    %183 = vmatprep.subr.mxu0 0.0
    %184 = vmatpush2.xpose.msra.mxu0 0.0
    %185 = vmatprep.subr.mxu0 0.0
    %186 = vmatpush2.xpose.msra.mxu0 0.0
    %187 = vmatprep.subr.mxu0 0.0
    %188 = vmatpush2.xpose.msra.mxu0 0.0
    %189 = vmatprep.subr.mxu0 0.0
    %190 = vmatpush2.xpose.msra.mxu0 0.0
    %191 = vmatprep.subr.mxu0 0.0
    %192 = vmatpush2.xpose.msra.mxu0 0.0
    %193 = vmatprep.subr.mxu0 0.0
    %194 = vmatpush2.xpose.msra.mxu0 0.0
    %195 = vmatprep.subr.mxu0 0.0
    %196 = vmatpush2.xpose.msra.mxu0 0.0
    %197 = vmatprep.subr.mxu0 0.0
    %198 = vmatpush2.xpose.msra.mxu0 0.0
    %199 = vmatprep.subr.mxu0 0.0
    %200 = vmatpush2.xpose.msra.mxu0 0.0
    %201 = vmatprep.subr.mxu0 0.0
    %202 = vmatpush2.xpose.msra.mxu0 0.0
    %203 = vmatprep.subr.mxu0 0.0
    %204 = vmatpush2.xpose.msra.mxu0 0.0
    %205 = vmatprep.subr.mxu0 0.0
    %206 = vmatpush2.xpose.msra.mxu0 0.0
    %207 = vmatprep.subr.mxu0 0.0
    %208 = vmatpush2.xpose.msra.mxu0 0.0
    %209 = vmatprep.mubr.f32.mxu0 0.0
    %210 = vmatmul.mubr.f32.gmra.mxu0 %v92
    %v211 = vpop.f32.mrf.mxu0
    %v212 = vadd.f32 0.0, %v211
    %v213 = vpop.f32.mrf.mxu0
    %214 = vmatprep.mubr.f32.mxu0 0.0
    %215 = vmatmul.mubr.f32.gmra.mxu0 %v95
    %v216 = vpop.f32.mrf.mxu0
    %v217 = vadd.f32 0.0, %v216
    %v218 = vpop.f32.mrf.mxu0
    %219 = vdwg.mxu0
    %220 = vst [vmem:[#allocation3] sm:$0xff] %v212
    %221 = vst [vmem:[#allocation3 + $0x8] sm:$0xff] %v217
    // Predicated region
    $region22: #{unet_forward.89} parent=1 // pred_check
      _
    $region23: #{unet_forward.89} parent=1 // pred_check_branch
      %223 = sbr.rel (0) target = $region25
    $region24: #{unet_forward.89} parent=1 // pred_region
      %s225 = ssub.s32 256, 256
      %226 = vsyncadd [#allocation4], %s225
      %s227 = sshll.u32 [#allocation3], 4
      %s228 = int_to_ptr.vmem [resolvable:$true] %s227
      %233 = dma.vmem_to_hbm [thread:$0]  %s228, 256, %s4, [#allocation4], 128, 128, 8
    $region25: #{unet_forward.89} parent=1 // pred_fallthru
      _
    // Predicated region
    $region26: #{unet_forward.89} parent=1 // pred_check
      _
    $region27: #{unet_forward.89} parent=1 // pred_check_branch
      %235 = sbr.rel (0) target = $region29
    $region28: #{unet_forward.89} parent=1 // pred_region
      %236 = dma.done [#allocation4], 256
    $region29: #{unet_forward.89} parent=1 // pred_fallthru
      _
    %237 = vsyncpa [#allocation4], 1

</llo_original>
